<compile_context>
chip_gen: v5e
topology: v5e:2x2
jax: 0.10.0
libtpu: 0.0.40
codegen_flags: <defaults>
</compile_context>

<pallas_src>
import functools
import numpy as np

import jax
import jax.numpy as jnp
from jax.experimental import pallas as pl
from jax.experimental.pallas import tpu as pltpu

_BN_EPS = 1e-5


# ----------------------------------------------------------------------------
# Static host-side operators
# ----------------------------------------------------------------------------
def bilinear_matrix(in_size, out_size):
    """1-D bilinear interpolation matrix matching align_corners=True."""
    m = np.zeros((out_size, in_size), dtype=np.float32)
    if out_size == 1 or in_size == 1:
        m[:, 0] = 1.0
        return m
    scale = (in_size - 1) / (out_size - 1)
    for i in range(out_size):
        src = i * scale
        i0 = min(int(np.floor(src)), in_size - 1)
        i1 = min(i0 + 1, in_size - 1)
        f = src - i0
        m[i, i0] += 1.0 - f
        m[i, i1] += f
    return m


def _edge_masks(H2, W2):
    """(2, P) horizontal-boundary masks.

    Row 0: zero where w == 0      (kx == 0 taps read the previous spatial row's last pixel)
    Row 1: zero where w == W2 - 1 (kx == 2 taps read the next spatial row's first pixel)
    Vertical out-of-range taps read the +-(W2+1) zero pad and need no mask.
    """
    wcol = np.arange(H2 * W2) % W2
    left = (wcol != 0).astype(np.float32)
    right = (wcol != W2 - 1).astype(np.float32)
    return np.stack([left, right])


def _col_index_map(G, C_in, C_skip):
    """Activation-row index (within a group) of each conv1 input channel per local batch."""
    C1 = C_in + C_skip
    col = np.zeros((G, C1), np.int64)
    for b in range(G):
        col[b, :C_in] = b * C_in + np.arange(C_in)
        if C_skip:
            col[b, C_in:] = G * C_in + b * C_skip + np.arange(C_skip)
    return col


def _block_diag_tap_weights(w_scaled, col_of, G, c_out, n_cols):
    """Per-tap block-diagonal weights: (9, G*c_out, n_cols) for batch-folded activations."""
    cin = w_scaled.shape[1]
    taps = w_scaled.reshape(c_out, cin, 9).transpose(2, 0, 1)   # (9, c_out, cin), t = ky*3+kx
    out = np.zeros((9, G * c_out, n_cols), np.float32)
    for b in range(G):
        for ic in range(cin):
            out[:, b * c_out:(b + 1) * c_out, col_of[b, ic]] = taps[:, :, ic]
    return out


def _pick_batch_per_step(n):
    """Fold the whole batch on single-TC chips; split in 2 groups on v7x (2 TCs/chip)."""
    try:
        kind = jax.devices()[0].device_kind.lower()
    except Exception:
        kind = ""
    if "v7" in kind and n >= 2 and n % 2 == 0:
        return n // 2
    return n


# ----------------------------------------------------------------------------
# Fused Pallas kernel (one batch *group* per grid step)
# ----------------------------------------------------------------------------
def _upsample_block_kernel(x_ref, skip_ref, u_ref, mask_ref, w1_ref, w2_ref, bias_ref,
                           out_ref, pad_ref, *, G, C_in, C_skip, c_out, W2, P):
    GC_in = G * C_in
    GC1 = G * (C_in + C_skip)
    GC_out = G * c_out
    PAD = W2 + 1                      # max |flattened 3x3 tap shift|
    rows_total = pad_ref.shape[0]

    # Zero only the pad strips (the centre columns are fully overwritten below and the
    # strips are never written afterwards, so vertical boundary taps read zeros).
    zeros_strip = jnp.zeros((rows_total, PAD), jnp.float32)
    pad_ref[:, 0:PAD] = zeros_strip
    pad_ref[:, PAD + P:PAD + P + PAD] = zeros_strip

    # ---- 1) bilinear 2x upsample: ONE kron(Wh,Ww)^T matmul into the flat layout ---------
    up = jnp.dot(x_ref[0], u_ref[...], preferred_element_type=jnp.float32)   # (GC_in, P)
    pad_ref[0:GC_in, PAD:PAD + P] = up

    # ---- 2) channel concat with the skip connection -------------------------------------
    if C_skip > 0:
        pad_ref[GC_in:GC1, PAD:PAD + P] = skip_ref[0].astype(jnp.float32)

    # ---- 3/4) conv3x3 (pad 1, no bias) + folded-BN bias + ReLU ---------------------------
    def conv_stage(rows, w_ref, bias):
        # Accumulate over the 9 taps: each shifted window is read once from the
        # zero-padded buffer, masked only on the horizontal boundaries, and fed straight
        # to a small (block-diagonal over batch) MXU matmul — no patch matrix in VMEM.
        acc = None
        for t in range(9):
            ky, kx = divmod(t, 3)
            sh = (ky - 1) * W2 + (kx - 1)
            win = pad_ref[0:rows, PAD + sh:PAD + sh + P]
            if kx == 0:
                win = win * mask_ref[0:1, :]
            elif kx == 2:
                win = win * mask_ref[1:2, :]
            contrib = jnp.dot(w_ref[t], win, preferred_element_type=jnp.float32)
            acc = contrib if acc is None else acc + contrib
        return jnp.maximum(acc + bias, 0.0)        # (GC_out, P)

    y1 = conv_stage(GC1, w1_ref, bias_ref[0])
    # Stage-2 input: rewrite the centre of rows 0..GC_out (their pad strips are still zero).
    pad_ref[0:GC_out, PAD:PAD + P] = y1
    y2 = conv_stage(GC_out, w2_ref, bias_ref[1])

    out_ref[0] = y2.astype(out_ref.dtype)


# ----------------------------------------------------------------------------
# Wrapper
# ----------------------------------------------------------------------------
def upsample_block_forward(x_nchw, skip_nchw, params, eps=_BN_EPS, batch_per_step=None):
    """UpsampleBlock forward (parametric=False, identical=False, use_bn=True)."""
    assert skip_nchw is not None, "this fused kernel expects a skip connection"
    N, C_in, H, W = x_nchw.shape
    H2, W2 = 2 * H, 2 * W
    P = H2 * W2
    C_skip = skip_nchw.shape[1]
    C1 = C_in + C_skip
    c_out = params['w1'].shape[0]

    # Batch-group size: all N on single-TC chips, N/2 on v7x to keep both TCs busy.
    G = batch_per_step if batch_per_step is not None else _pick_batch_per_step(N)
    if G < 1 or N % G != 0:
        G = N
    GRP = N // G

    # ---- static operators (host, one-time) ----------------------------------------------
    u_t = np.kron(bilinear_matrix(H, H2), bilinear_matrix(W, W2)).T.astype(np.float32)  # (H*W, P)
    masks = _edge_masks(H2, W2)                                                          # (2, P)

    # Fold inference BatchNorm scale into the conv weights; keep only the bias.
    w1 = np.asarray(params['w1'], np.float32)
    w2 = np.asarray(params['w2'], np.float32)
    s1 = np.asarray(params['g1'], np.float32) / np.sqrt(np.asarray(params['v1'], np.float32) + eps)
    s2 = np.asarray(params['g2'], np.float32) / np.sqrt(np.asarray(params['v2'], np.float32) + eps)
    b1f = np.asarray(params['b1'], np.float32) - np.asarray(params['m1'], np.float32) * s1
    b2f = np.asarray(params['b2'], np.float32) - np.asarray(params['m2'], np.float32) * s2
    w1s = w1 * s1[:, None, None, None]
    w2s = w2 * s2[:, None, None, None]

    # Block-diagonal per-tap weights matching the batch-folded activation row order
    # ([all b: up channels] then [all b: skip channels] for stage 1; [b*c_out+oc] for stage 2).
    col1 = _col_index_map(G, C_in, C_skip)
    col2 = np.stack([b * c_out + np.arange(c_out) for b in range(G)])
    w1bd = _block_diag_tap_weights(w1s, col1, G, c_out, G * C1)       # (9, G*c_out, G*C1)
    w2bd = _block_diag_tap_weights(w2s, col2, G, c_out, G * c_out)    # (9, G*c_out, G*c_out)
    bias_pack = np.stack([np.tile(b1f, G), np.tile(b2f, G)]).reshape(2, G * c_out, 1)

    # Contiguous (free) reshapes: group on the leading axis, channels(+batch) on sublanes,
    # flat spatial on lanes (1024-wide, 128-multiple -> unmasked lane-dense stores).
    x_g = x_nchw.reshape(GRP, G * C_in, H * W)
    skip_g = skip_nchw.reshape(GRP, G * C_skip, P)

    kernel = functools.partial(
        _upsample_block_kernel, G=G, C_in=C_in, C_skip=C_skip, c_out=c_out, W2=W2, P=P)

    def _full(shape):
        return pl.BlockSpec(shape, lambda g, _nd=len(shape): (0,) * _nd)

    rows_scratch = max(G * C1, G * c_out)

    # TODO(synk): for much larger decoder feature maps, tile the flat-spatial axis as a
    # second "arbitrary" grid dimension (kron and masks grow with P; v7x VMEM is 64 MiB).
    out_g = pl.pallas_call(
        kernel,
        out_shape=jax.ShapeDtypeStruct((GRP, G * c_out, P), x_nchw.dtype),
        grid=(GRP,),
        in_specs=[
            pl.BlockSpec((1, G * C_in, H * W), lambda g: (g, 0, 0)),   # x (grouped)
            pl.BlockSpec((1, G * C_skip, P), lambda g: (g, 0, 0)),     # skip (grouped)
            _full((H * W, P)),                                         # kron(Wh,Ww)^T
            _full((2, P)),                                             # left/right masks
            _full((9, G * c_out, G * C1)),                             # conv1 per-tap (BN folded)
            _full((9, G * c_out, G * c_out)),                          # conv2 per-tap (BN folded)
            _full((2, G * c_out, 1)),                                  # packed biases
        ],
        out_specs=pl.BlockSpec((1, G * c_out, P), lambda g: (g, 0, 0)),
        scratch_shapes=[
            pltpu.VMEM((rows_scratch, P + 2 * (W2 + 1)), jnp.float32),  # zero-padded activation
        ],
        compiler_params=pltpu.CompilerParams(
            dimension_semantics=("parallel",),        # shards batch groups across TCs (v7x)
            vmem_limit_bytes=32 * 1024 * 1024),
    )(x_g, skip_g, jnp.asarray(u_t), jnp.asarray(masks),
      jnp.asarray(w1bd), jnp.asarray(w2bd), jnp.asarray(bias_pack))

    # Contiguous (free) reshape back to NCHW.
    return out_g.reshape(N, c_out, H2, W2)


# ----------------------------------------------------------------------------
# Pure-JAX reference (same math) for a sanity check
# ----------------------------------------------------------------------------
def reference_forward(x_nchw, skip_nchw, params, eps=_BN_EPS):
    N, C, H, W = x_nchw.shape
    U = jnp.asarray(np.kron(bilinear_matrix(H, 2 * H), bilinear_matrix(W, 2 * W)))
    y = jnp.einsum('oi,nci->nco', U, x_nchw.reshape(N, C, H * W),
                   precision=jax.lax.Precision.HIGHEST).reshape(N, C, 2 * H, 2 * W)
    if skip_nchw is not None:
        y = jnp.concatenate([y, skip_nchw], axis=1)

    def conv_bn_relu(z, w, g, b, m, v):
        z = jax.lax.conv_general_dilated(
            z, w, window_strides=(1, 1), padding=((1, 1), (1, 1)),
            dimension_numbers=('NCHW', 'OIHW', 'NCHW'),
            precision=jax.lax.Precision.HIGHEST)
        s = g / jnp.sqrt(v + eps)
        z = z * s[None, :, None, None] + (b - m * s)[None, :, None, None]
        return jnp.maximum(z, 0.0)

    y = conv_bn_relu(y, params['w1'], params['g1'], params['b1'],
                     params['m1'], params['v1'])
    y = conv_bn_relu(y, params['w2'], params['g2'], params['b2'],
                     params['m2'], params['v2'])
    return y


# ----------------------------------------------------------------------------
# Main
# ----------------------------------------------------------------------------
if __name__ == "__main__":
    # Module config: ch_in=4, ch_out=4, skip_in=4, use_bn=True, parametric=False
    N, CH_IN, CH_OUT, SKIP_IN, H, W = 2, 4, 4, 4, 16, 16
    C1_IN = CH_IN + SKIP_IN  # conv1 input channels

    key = jax.random.PRNGKey(0)
    ks = jax.random.split(key, 12)

    x = jax.random.normal(ks[0], (N, CH_IN, H, W), jnp.float32)
    skip = jax.random.normal(ks[1], (N, SKIP_IN, 2 * H, 2 * W), jnp.float32)

    params = {
        # conv1: Conv2d(C1_IN -> CH_OUT, 3x3, pad 1, bias=False)
        'w1': 0.1 * jax.random.normal(ks[2], (CH_OUT, C1_IN, 3, 3), jnp.float32),
        'g1': 1.0 + 0.1 * jax.random.normal(ks[3], (CH_OUT,), jnp.float32),
        'b1': 0.1 * jax.random.normal(ks[4], (CH_OUT,), jnp.float32),
        'm1': 0.1 * jax.random.normal(ks[5], (CH_OUT,), jnp.float32),
        'v1': 0.5 + 0.5 * jnp.abs(jax.random.normal(ks[6], (CH_OUT,), jnp.float32)),
        # conv2: Conv2d(CH_OUT -> CH_OUT, 3x3, pad 1, bias=False)
        'w2': 0.1 * jax.random.normal(ks[7], (CH_OUT, CH_OUT, 3, 3), jnp.float32),
        'g2': 1.0 + 0.1 * jax.random.normal(ks[8], (CH_OUT,), jnp.float32),
        'b2': 0.1 * jax.random.normal(ks[9], (CH_OUT,), jnp.float32),
        'm2': 0.1 * jax.random.normal(ks[10], (CH_OUT,), jnp.float32),
        'v2': 0.5 + 0.5 * jnp.abs(jax.random.normal(ks[11], (CH_OUT,), jnp.float32)),
    }

    out = jax.block_until_ready(upsample_block_forward(x, skip, params))
    assert out.shape == (N, CH_OUT, 2 * H, 2 * W), out.shape

    ref = jax.block_until_ready(reference_forward(x, skip, params))
    np.testing.assert_allclose(np.asarray(out), np.asarray(ref),
                               rtol=2e-3, atol=2e-3)

    print("KERNEL_OK")
</pallas_src>

<mosaic_0001>
module attributes {stable_mosaic.version = 11 : i64} {
  func.func @_upsample_block_kernel(%arg0: i32, %arg1: memref<1x8x256xf32, #tpu.memory_space<vmem>>, %arg2: memref<1x8x1024xf32, #tpu.memory_space<vmem>>, %arg3: memref<256x1024xf32, #tpu.memory_space<vmem>>, %arg4: memref<2x1024xf32, #tpu.memory_space<vmem>>, %arg5: memref<9x8x16xf32, #tpu.memory_space<vmem>>, %arg6: memref<9x8x8xf32, #tpu.memory_space<vmem>>, %arg7: memref<2x8x1xf32, #tpu.memory_space<vmem>>, %arg8: memref<1x8x1024xf32, #tpu.memory_space<vmem>>, %arg9: memref<16x1090xf32, #tpu.memory_space<vmem>>) attributes {dimension_semantics = [#tpu.dimension_semantics<parallel>], iteration_bounds = array<i64: 1>, scalar_prefetch = 0 : i64, scratch_operands = 1 : i64, tpu.core_type = #tpu.core_type<tc>, window_params = [{transform_indices = @transform_0, window_bounds = array<i64: 1, 8, 256>}, {transform_indices = @transform_1, window_bounds = array<i64: 1, 8, 1024>}, {pipeline_mode = #tpu.pipeline_mode<synchronous>, transform_indices = @transform_2, window_bounds = array<i64: 256, 1024>}, {pipeline_mode = #tpu.pipeline_mode<synchronous>, transform_indices = @transform_3, window_bounds = array<i64: 2, 1024>}, {pipeline_mode = #tpu.pipeline_mode<synchronous>, transform_indices = @transform_4, window_bounds = array<i64: 9, 8, 16>}, {pipeline_mode = #tpu.pipeline_mode<synchronous>, transform_indices = @transform_5, window_bounds = array<i64: 9, 8, 8>}, {pipeline_mode = #tpu.pipeline_mode<synchronous>, transform_indices = @transform_6, window_bounds = array<i64: 2, 8, 1>}, {transform_indices = @transform_7, window_bounds = array<i64: 1, 8, 1024>}]} {
    %cst = arith.constant 0.000000e+00 : f32
    %0 = vector.broadcast %cst : f32 to vector<16x33xf32>
    %c0 = arith.constant 0 : index
    %c0_0 = arith.constant 0 : index
    %1 = vector.load %arg9[%c0, %c0_0] : memref<16x1090xf32, #tpu.memory_space<vmem>>, vector<16x33xf32>
    tpu.vector_store %arg9[%c0, %c0_0], %0 {strides = array<i32>} : memref<16x1090xf32, #tpu.memory_space<vmem>>, vector<16x33xf32>,
    %c0_1 = arith.constant 0 : index
    %c1057 = arith.constant 1057 : index
    %2 = vector.load %arg9[%c0_1, %c1057] : memref<16x1090xf32, #tpu.memory_space<vmem>>, vector<16x33xf32>
    tpu.vector_store %arg9[%c0_1, %c1057], %0 {strides = array<i32>} : memref<16x1090xf32, #tpu.memory_space<vmem>>, vector<16x33xf32>,
    %c0_2 = arith.constant 0 : index
    %c0_3 = arith.constant 0 : index
    %c0_4 = arith.constant 0 : index
    %3 = vector.load %arg1[%c0_2, %c0_3, %c0_4] : memref<1x8x256xf32, #tpu.memory_space<vmem>>, vector<1x8x256xf32>
    %4 = vector.shape_cast %3 : vector<1x8x256xf32> to vector<8x256xf32>
    %c0_5 = arith.constant 0 : index
    %c0_6 = arith.constant 0 : index
    %5 = vector.load %arg3[%c0_5, %c0_6] : memref<256x1024xf32, #tpu.memory_space<vmem>>, vector<256x1024xf32>
    %cst_7 = arith.constant dense<0.000000e+00> : vector<8x1024xf32>
    %6 = tpu.matmul %4, %5, %cst_7 {dimension_numbers = #tpu.dot_dimension_numbers<[1], [0], [0], [1], [0, 0, 1, 1], [], []>} : vector<8x256xf32>, vector<256x1024xf32>, vector<8x1024xf32> -> vector<8x1024xf32>
    %c0_8 = arith.constant 0 : index
    %c33 = arith.constant 33 : index
    %7 = vector.load %arg9[%c0_8, %c33] : memref<16x1090xf32, #tpu.memory_space<vmem>>, vector<8x1024xf32>
    tpu.vector_store %arg9[%c0_8, %c33], %6 {strides = array<i32>} : memref<16x1090xf32, #tpu.memory_space<vmem>>, vector<8x1024xf32>,
    %c0_9 = arith.constant 0 : index
    %c0_10 = arith.constant 0 : index
    %c0_11 = arith.constant 0 : index
    %8 = vector.load %arg2[%c0_9, %c0_10, %c0_11] : memref<1x8x1024xf32, #tpu.memory_space<vmem>>, vector<1x8x1024xf32>
    %9 = vector.shape_cast %8 : vector<1x8x1024xf32> to vector<8x1024xf32>
    %c8 = arith.constant 8 : index
    %c33_12 = arith.constant 33 : index
    %10 = vector.load %arg9[%c8, %c33_12] : memref<16x1090xf32, #tpu.memory_space<vmem>>, vector<8x1024xf32>
    tpu.vector_store %arg9[%c8, %c33_12], %9 {strides = array<i32>} : memref<16x1090xf32, #tpu.memory_space<vmem>>, vector<8x1024xf32>,
    %c0_13 = arith.constant 0 : index
    %c0_14 = arith.constant 0 : index
    %c0_15 = arith.constant 0 : index
    %11 = vector.load %arg7[%c0_13, %c0_14, %c0_15] : memref<2x8x1xf32, #tpu.memory_space<vmem>>, vector<1x8x1xf32>
    %12 = vector.shape_cast %11 : vector<1x8x1xf32> to vector<8x1xf32>
    %c0_16 = arith.constant 0 : index
    %c0_17 = arith.constant 0 : index
    %13 = vector.load %arg9[%c0_16, %c0_17] : memref<16x1090xf32, #tpu.memory_space<vmem>>, vector<16x1024xf32>
    %c0_18 = arith.constant 0 : index
    %c0_19 = arith.constant 0 : index
    %14 = vector.load %arg4[%c0_18, %c0_19] : memref<2x1024xf32, #tpu.memory_space<vmem>>, vector<1x1024xf32>
    %15 = vector.broadcast %14 : vector<1x1024xf32> to vector<16x1024xf32>
    %16 = arith.mulf %13, %15 : vector<16x1024xf32>
    %c0_20 = arith.constant 0 : index
    %c0_21 = arith.constant 0 : index
    %c0_22 = arith.constant 0 : index
    %17 = vector.load %arg5[%c0_20, %c0_21, %c0_22] : memref<9x8x16xf32, #tpu.memory_space<vmem>>, vector<1x8x16xf32>
    %18 = vector.shape_cast %17 : vector<1x8x16xf32> to vector<8x16xf32>
    %cst_23 = arith.constant dense<0.000000e+00> : vector<8x1024xf32>
    %19 = tpu.matmul %18, %16, %cst_23 {dimension_numbers = #tpu.dot_dimension_numbers<[1], [0], [0], [1], [0, 0, 1, 1], [], []>} : vector<8x16xf32>, vector<16x1024xf32>, vector<8x1024xf32> -> vector<8x1024xf32>
    %c0_24 = arith.constant 0 : index
    %c1 = arith.constant 1 : index
    %20 = vector.load %arg9[%c0_24, %c1] : memref<16x1090xf32, #tpu.memory_space<vmem>>, vector<16x1024xf32>
    %c1_25 = arith.constant 1 : index
    %c0_26 = arith.constant 0 : index
    %c0_27 = arith.constant 0 : index
    %21 = vector.load %arg5[%c1_25, %c0_26, %c0_27] : memref<9x8x16xf32, #tpu.memory_space<vmem>>, vector<1x8x16xf32>
    %22 = vector.shape_cast %21 : vector<1x8x16xf32> to vector<8x16xf32>
    %cst_28 = arith.constant dense<0.000000e+00> : vector<8x1024xf32>
    %23 = tpu.matmul %22, %20, %cst_28 {dimension_numbers = #tpu.dot_dimension_numbers<[1], [0], [0], [1], [0, 0, 1, 1], [], []>} : vector<8x16xf32>, vector<16x1024xf32>, vector<8x1024xf32> -> vector<8x1024xf32>
    %24 = arith.addf %19, %23 : vector<8x1024xf32>
    %c0_29 = arith.constant 0 : index
    %c2 = arith.constant 2 : index
    %25 = vector.load %arg9[%c0_29, %c2] : memref<16x1090xf32, #tpu.memory_space<vmem>>, vector<16x1024xf32>
    %c1_30 = arith.constant 1 : index
    %c0_31 = arith.constant 0 : index
    %26 = vector.load %arg4[%c1_30, %c0_31] : memref<2x1024xf32, #tpu.memory_space<vmem>>, vector<1x1024xf32>
    %27 = vector.broadcast %26 : vector<1x1024xf32> to vector<16x1024xf32>
    %28 = arith.mulf %25, %27 : vector<16x1024xf32>
    %c2_32 = arith.constant 2 : index
    %c0_33 = arith.constant 0 : index
    %c0_34 = arith.constant 0 : index
    %29 = vector.load %arg5[%c2_32, %c0_33, %c0_34] : memref<9x8x16xf32, #tpu.memory_space<vmem>>, vector<1x8x16xf32>
    %30 = vector.shape_cast %29 : vector<1x8x16xf32> to vector<8x16xf32>
    %cst_35 = arith.constant dense<0.000000e+00> : vector<8x1024xf32>
    %31 = tpu.matmul %30, %28, %cst_35 {dimension_numbers = #tpu.dot_dimension_numbers<[1], [0], [0], [1], [0, 0, 1, 1], [], []>} : vector<8x16xf32>, vector<16x1024xf32>, vector<8x1024xf32> -> vector<8x1024xf32>
    %32 = arith.addf %24, %31 : vector<8x1024xf32>
    %c0_36 = arith.constant 0 : index
    %c32 = arith.constant 32 : index
    %33 = vector.load %arg9[%c0_36, %c32] : memref<16x1090xf32, #tpu.memory_space<vmem>>, vector<16x1024xf32>
    %c0_37 = arith.constant 0 : index
    %c0_38 = arith.constant 0 : index
    %34 = vector.load %arg4[%c0_37, %c0_38] : memref<2x1024xf32, #tpu.memory_space<vmem>>, vector<1x1024xf32>
    %35 = vector.broadcast %34 : vector<1x1024xf32> to vector<16x1024xf32>
    %36 = arith.mulf %33, %35 : vector<16x1024xf32>
    %c3 = arith.constant 3 : index
    %c0_39 = arith.constant 0 : index
    %c0_40 = arith.constant 0 : index
    %37 = vector.load %arg5[%c3, %c0_39, %c0_40] : memref<9x8x16xf32, #tpu.memory_space<vmem>>, vector<1x8x16xf32>
    %38 = vector.shape_cast %37 : vector<1x8x16xf32> to vector<8x16xf32>
    %cst_41 = arith.constant dense<0.000000e+00> : vector<8x1024xf32>
    %39 = tpu.matmul %38, %36, %cst_41 {dimension_numbers = #tpu.dot_dimension_numbers<[1], [0], [0], [1], [0, 0, 1, 1], [], []>} : vector<8x16xf32>, vector<16x1024xf32>, vector<8x1024xf32> -> vector<8x1024xf32>
    %40 = arith.addf %32, %39 : vector<8x1024xf32>
    %c0_42 = arith.constant 0 : index
    %c33_43 = arith.constant 33 : index
    %41 = vector.load %arg9[%c0_42, %c33_43] : memref<16x1090xf32, #tpu.memory_space<vmem>>, vector<16x1024xf32>
    %c4 = arith.constant 4 : index
    %c0_44 = arith.constant 0 : index
    %c0_45 = arith.constant 0 : index
    %42 = vector.load %arg5[%c4, %c0_44, %c0_45] : memref<9x8x16xf32, #tpu.memory_space<vmem>>, vector<1x8x16xf32>
    %43 = vector.shape_cast %42 : vector<1x8x16xf32> to vector<8x16xf32>
    %cst_46 = arith.constant dense<0.000000e+00> : vector<8x1024xf32>
    %44 = tpu.matmul %43, %41, %cst_46 {dimension_numbers = #tpu.dot_dimension_numbers<[1], [0], [0], [1], [0, 0, 1, 1], [], []>} : vector<8x16xf32>, vector<16x1024xf32>, vector<8x1024xf32> -> vector<8x1024xf32>
    %45 = arith.addf %40, %44 : vector<8x1024xf32>
    %c0_47 = arith.constant 0 : index
    %c34 = arith.constant 34 : index
    %46 = vector.load %arg9[%c0_47, %c34] : memref<16x1090xf32, #tpu.memory_space<vmem>>, vector<16x1024xf32>
    %c1_48 = arith.constant 1 : index
    %c0_49 = arith.constant 0 : index
    %47 = vector.load %arg4[%c1_48, %c0_49] : memref<2x1024xf32, #tpu.memory_space<vmem>>, vector<1x1024xf32>
    %48 = vector.broadcast %47 : vector<1x1024xf32> to vector<16x1024xf32>
    %49 = arith.mulf %46, %48 : vector<16x1024xf32>
    %c5 = arith.constant 5 : index
    %c0_50 = arith.constant 0 : index
    %c0_51 = arith.constant 0 : index
    %50 = vector.load %arg5[%c5, %c0_50, %c0_51] : memref<9x8x16xf32, #tpu.memory_space<vmem>>, vector<1x8x16xf32>
    %51 = vector.shape_cast %50 : vector<1x8x16xf32> to vector<8x16xf32>
    %cst_52 = arith.constant dense<0.000000e+00> : vector<8x1024xf32>
    %52 = tpu.matmul %51, %49, %cst_52 {dimension_numbers = #tpu.dot_dimension_numbers<[1], [0], [0], [1], [0, 0, 1, 1], [], []>} : vector<8x16xf32>, vector<16x1024xf32>, vector<8x1024xf32> -> vector<8x1024xf32>
    %53 = arith.addf %45, %52 : vector<8x1024xf32>
    %c0_53 = arith.constant 0 : index
    %c64 = arith.constant 64 : index
    %54 = vector.load %arg9[%c0_53, %c64] : memref<16x1090xf32, #tpu.memory_space<vmem>>, vector<16x1024xf32>
    %c0_54 = arith.constant 0 : index
    %c0_55 = arith.constant 0 : index
    %55 = vector.load %arg4[%c0_54, %c0_55] : memref<2x1024xf32, #tpu.memory_space<vmem>>, vector<1x1024xf32>
    %56 = vector.broadcast %55 : vector<1x1024xf32> to vector<16x1024xf32>
    %57 = arith.mulf %54, %56 : vector<16x1024xf32>
    %c6 = arith.constant 6 : index
    %c0_56 = arith.constant 0 : index
    %c0_57 = arith.constant 0 : index
    %58 = vector.load %arg5[%c6, %c0_56, %c0_57] : memref<9x8x16xf32, #tpu.memory_space<vmem>>, vector<1x8x16xf32>
    %59 = vector.shape_cast %58 : vector<1x8x16xf32> to vector<8x16xf32>
    %cst_58 = arith.constant dense<0.000000e+00> : vector<8x1024xf32>
    %60 = tpu.matmul %59, %57, %cst_58 {dimension_numbers = #tpu.dot_dimension_numbers<[1], [0], [0], [1], [0, 0, 1, 1], [], []>} : vector<8x16xf32>, vector<16x1024xf32>, vector<8x1024xf32> -> vector<8x1024xf32>
    %61 = arith.addf %53, %60 : vector<8x1024xf32>
    %c0_59 = arith.constant 0 : index
    %c65 = arith.constant 65 : index
    %62 = vector.load %arg9[%c0_59, %c65] : memref<16x1090xf32, #tpu.memory_space<vmem>>, vector<16x1024xf32>
    %c7 = arith.constant 7 : index
    %c0_60 = arith.constant 0 : index
    %c0_61 = arith.constant 0 : index
    %63 = vector.load %arg5[%c7, %c0_60, %c0_61] : memref<9x8x16xf32, #tpu.memory_space<vmem>>, vector<1x8x16xf32>
    %64 = vector.shape_cast %63 : vector<1x8x16xf32> to vector<8x16xf32>
    %cst_62 = arith.constant dense<0.000000e+00> : vector<8x1024xf32>
    %65 = tpu.matmul %64, %62, %cst_62 {dimension_numbers = #tpu.dot_dimension_numbers<[1], [0], [0], [1], [0, 0, 1, 1], [], []>} : vector<8x16xf32>, vector<16x1024xf32>, vector<8x1024xf32> -> vector<8x1024xf32>
    %66 = arith.addf %61, %65 : vector<8x1024xf32>
    %c0_63 = arith.constant 0 : index
    %c66 = arith.constant 66 : index
    %67 = vector.load %arg9[%c0_63, %c66] : memref<16x1090xf32, #tpu.memory_space<vmem>>, vector<16x1024xf32>
    %c1_64 = arith.constant 1 : index
    %c0_65 = arith.constant 0 : index
    %68 = vector.load %arg4[%c1_64, %c0_65] : memref<2x1024xf32, #tpu.memory_space<vmem>>, vector<1x1024xf32>
    %69 = vector.broadcast %68 : vector<1x1024xf32> to vector<16x1024xf32>
    %70 = arith.mulf %67, %69 : vector<16x1024xf32>
    %c8_66 = arith.constant 8 : index
    %c0_67 = arith.constant 0 : index
    %c0_68 = arith.constant 0 : index
    %71 = vector.load %arg5[%c8_66, %c0_67, %c0_68] : memref<9x8x16xf32, #tpu.memory_space<vmem>>, vector<1x8x16xf32>
    %72 = vector.shape_cast %71 : vector<1x8x16xf32> to vector<8x16xf32>
    %cst_69 = arith.constant dense<0.000000e+00> : vector<8x1024xf32>
    %73 = tpu.matmul %72, %70, %cst_69 {dimension_numbers = #tpu.dot_dimension_numbers<[1], [0], [0], [1], [0, 0, 1, 1], [], []>} : vector<8x16xf32>, vector<16x1024xf32>, vector<8x1024xf32> -> vector<8x1024xf32>
    %74 = arith.addf %66, %73 : vector<8x1024xf32>
    %75 = vector.broadcast %12 : vector<8x1xf32> to vector<8x1024xf32>
    %76 = arith.addf %74, %75 : vector<8x1024xf32>
    %cst_70 = arith.constant 0.000000e+00 : f32
    %77 = vector.broadcast %cst_70 : f32 to vector<8x1024xf32>
    %78 = arith.maximumf %76, %77 : vector<8x1024xf32>
    %c0_71 = arith.constant 0 : index
    %c33_72 = arith.constant 33 : index
    %79 = vector.load %arg9[%c0_71, %c33_72] : memref<16x1090xf32, #tpu.memory_space<vmem>>, vector<8x1024xf32>
    tpu.vector_store %arg9[%c0_71, %c33_72], %78 {strides = array<i32>} : memref<16x1090xf32, #tpu.memory_space<vmem>>, vector<8x1024xf32>,
    %c1_73 = arith.constant 1 : index
    %c0_74 = arith.constant 0 : index
    %c0_75 = arith.constant 0 : index
    %80 = vector.load %arg7[%c1_73, %c0_74, %c0_75] : memref<2x8x1xf32, #tpu.memory_space<vmem>>, vector<1x8x1xf32>
    %81 = vector.shape_cast %80 : vector<1x8x1xf32> to vector<8x1xf32>
    %c0_76 = arith.constant 0 : index
    %c0_77 = arith.constant 0 : index
    %82 = vector.load %arg9[%c0_76, %c0_77] : memref<16x1090xf32, #tpu.memory_space<vmem>>, vector<8x1024xf32>
    %c0_78 = arith.constant 0 : index
    %c0_79 = arith.constant 0 : index
    %83 = vector.load %arg4[%c0_78, %c0_79] : memref<2x1024xf32, #tpu.memory_space<vmem>>, vector<1x1024xf32>
    %84 = vector.broadcast %83 : vector<1x1024xf32> to vector<8x1024xf32>
    %85 = arith.mulf %82, %84 : vector<8x1024xf32>
    %c0_80 = arith.constant 0 : index
    %c0_81 = arith.constant 0 : index
    %c0_82 = arith.constant 0 : index
    %86 = vector.load %arg6[%c0_80, %c0_81, %c0_82] : memref<9x8x8xf32, #tpu.memory_space<vmem>>, vector<1x8x8xf32>
    %87 = vector.shape_cast %86 : vector<1x8x8xf32> to vector<8x8xf32>
    %cst_83 = arith.constant dense<0.000000e+00> : vector<8x1024xf32>
    %88 = tpu.matmul %87, %85, %cst_83 {dimension_numbers = #tpu.dot_dimension_numbers<[1], [0], [0], [1], [0, 0, 1, 1], [], []>} : vector<8x8xf32>, vector<8x1024xf32>, vector<8x1024xf32> -> vector<8x1024xf32>
    %c0_84 = arith.constant 0 : index
    %c1_85 = arith.constant 1 : index
    %89 = vector.load %arg9[%c0_84, %c1_85] : memref<16x1090xf32, #tpu.memory_space<vmem>>, vector<8x1024xf32>
    %c1_86 = arith.constant 1 : index
    %c0_87 = arith.constant 0 : index
    %c0_88 = arith.constant 0 : index
    %90 = vector.load %arg6[%c1_86, %c0_87, %c0_88] : memref<9x8x8xf32, #tpu.memory_space<vmem>>, vector<1x8x8xf32>
    %91 = vector.shape_cast %90 : vector<1x8x8xf32> to vector<8x8xf32>
    %cst_89 = arith.constant dense<0.000000e+00> : vector<8x1024xf32>
    %92 = tpu.matmul %91, %89, %cst_89 {dimension_numbers = #tpu.dot_dimension_numbers<[1], [0], [0], [1], [0, 0, 1, 1], [], []>} : vector<8x8xf32>, vector<8x1024xf32>, vector<8x1024xf32> -> vector<8x1024xf32>
    %93 = arith.addf %88, %92 : vector<8x1024xf32>
    %c0_90 = arith.constant 0 : index
    %c2_91 = arith.constant 2 : index
    %94 = vector.load %arg9[%c0_90, %c2_91] : memref<16x1090xf32, #tpu.memory_space<vmem>>, vector<8x1024xf32>
    %c1_92 = arith.constant 1 : index
    %c0_93 = arith.constant 0 : index
    %95 = vector.load %arg4[%c1_92, %c0_93] : memref<2x1024xf32, #tpu.memory_space<vmem>>, vector<1x1024xf32>
    %96 = vector.broadcast %95 : vector<1x1024xf32> to vector<8x1024xf32>
    %97 = arith.mulf %94, %96 : vector<8x1024xf32>
    %c2_94 = arith.constant 2 : index
    %c0_95 = arith.constant 0 : index
    %c0_96 = arith.constant 0 : index
    %98 = vector.load %arg6[%c2_94, %c0_95, %c0_96] : memref<9x8x8xf32, #tpu.memory_space<vmem>>, vector<1x8x8xf32>
    %99 = vector.shape_cast %98 : vector<1x8x8xf32> to vector<8x8xf32>
    %cst_97 = arith.constant dense<0.000000e+00> : vector<8x1024xf32>
    %100 = tpu.matmul %99, %97, %cst_97 {dimension_numbers = #tpu.dot_dimension_numbers<[1], [0], [0], [1], [0, 0, 1, 1], [], []>} : vector<8x8xf32>, vector<8x1024xf32>, vector<8x1024xf32> -> vector<8x1024xf32>
    %101 = arith.addf %93, %100 : vector<8x1024xf32>
    %c0_98 = arith.constant 0 : index
    %c32_99 = arith.constant 32 : index
    %102 = vector.load %arg9[%c0_98, %c32_99] : memref<16x1090xf32, #tpu.memory_space<vmem>>, vector<8x1024xf32>
    %c0_100 = arith.constant 0 : index
    %c0_101 = arith.constant 0 : index
    %103 = vector.load %arg4[%c0_100, %c0_101] : memref<2x1024xf32, #tpu.memory_space<vmem>>, vector<1x1024xf32>
    %104 = vector.broadcast %103 : vector<1x1024xf32> to vector<8x1024xf32>
    %105 = arith.mulf %102, %104 : vector<8x1024xf32>
    %c3_102 = arith.constant 3 : index
    %c0_103 = arith.constant 0 : index
    %c0_104 = arith.constant 0 : index
    %106 = vector.load %arg6[%c3_102, %c0_103, %c0_104] : memref<9x8x8xf32, #tpu.memory_space<vmem>>, vector<1x8x8xf32>
    %107 = vector.shape_cast %106 : vector<1x8x8xf32> to vector<8x8xf32>
    %cst_105 = arith.constant dense<0.000000e+00> : vector<8x1024xf32>
    %108 = tpu.matmul %107, %105, %cst_105 {dimension_numbers = #tpu.dot_dimension_numbers<[1], [0], [0], [1], [0, 0, 1, 1], [], []>} : vector<8x8xf32>, vector<8x1024xf32>, vector<8x1024xf32> -> vector<8x1024xf32>
    %109 = arith.addf %101, %108 : vector<8x1024xf32>
    %c0_106 = arith.constant 0 : index
    %c33_107 = arith.constant 33 : index
    %110 = vector.load %arg9[%c0_106, %c33_107] : memref<16x1090xf32, #tpu.memory_space<vmem>>, vector<8x1024xf32>
    %c4_108 = arith.constant 4 : index
    %c0_109 = arith.constant 0 : index
    %c0_110 = arith.constant 0 : index
    %111 = vector.load %arg6[%c4_108, %c0_109, %c0_110] : memref<9x8x8xf32, #tpu.memory_space<vmem>>, vector<1x8x8xf32>
    %112 = vector.shape_cast %111 : vector<1x8x8xf32> to vector<8x8xf32>
    %cst_111 = arith.constant dense<0.000000e+00> : vector<8x1024xf32>
    %113 = tpu.matmul %112, %110, %cst_111 {dimension_numbers = #tpu.dot_dimension_numbers<[1], [0], [0], [1], [0, 0, 1, 1], [], []>} : vector<8x8xf32>, vector<8x1024xf32>, vector<8x1024xf32> -> vector<8x1024xf32>
    %114 = arith.addf %109, %113 : vector<8x1024xf32>
    %c0_112 = arith.constant 0 : index
    %c34_113 = arith.constant 34 : index
    %115 = vector.load %arg9[%c0_112, %c34_113] : memref<16x1090xf32, #tpu.memory_space<vmem>>, vector<8x1024xf32>
    %c1_114 = arith.constant 1 : index
    %c0_115 = arith.constant 0 : index
    %116 = vector.load %arg4[%c1_114, %c0_115] : memref<2x1024xf32, #tpu.memory_space<vmem>>, vector<1x1024xf32>
    %117 = vector.broadcast %116 : vector<1x1024xf32> to vector<8x1024xf32>
    %118 = arith.mulf %115, %117 : vector<8x1024xf32>
    %c5_116 = arith.constant 5 : index
    %c0_117 = arith.constant 0 : index
    %c0_118 = arith.constant 0 : index
    %119 = vector.load %arg6[%c5_116, %c0_117, %c0_118] : memref<9x8x8xf32, #tpu.memory_space<vmem>>, vector<1x8x8xf32>
    %120 = vector.shape_cast %119 : vector<1x8x8xf32> to vector<8x8xf32>
    %cst_119 = arith.constant dense<0.000000e+00> : vector<8x1024xf32>
    %121 = tpu.matmul %120, %118, %cst_119 {dimension_numbers = #tpu.dot_dimension_numbers<[1], [0], [0], [1], [0, 0, 1, 1], [], []>} : vector<8x8xf32>, vector<8x1024xf32>, vector<8x1024xf32> -> vector<8x1024xf32>
    %122 = arith.addf %114, %121 : vector<8x1024xf32>
    %c0_120 = arith.constant 0 : index
    %c64_121 = arith.constant 64 : index
    %123 = vector.load %arg9[%c0_120, %c64_121] : memref<16x1090xf32, #tpu.memory_space<vmem>>, vector<8x1024xf32>
    %c0_122 = arith.constant 0 : index
    %c0_123 = arith.constant 0 : index
    %124 = vector.load %arg4[%c0_122, %c0_123] : memref<2x1024xf32, #tpu.memory_space<vmem>>, vector<1x1024xf32>
    %125 = vector.broadcast %124 : vector<1x1024xf32> to vector<8x1024xf32>
    %126 = arith.mulf %123, %125 : vector<8x1024xf32>
    %c6_124 = arith.constant 6 : index
    %c0_125 = arith.constant 0 : index
    %c0_126 = arith.constant 0 : index
    %127 = vector.load %arg6[%c6_124, %c0_125, %c0_126] : memref<9x8x8xf32, #tpu.memory_space<vmem>>, vector<1x8x8xf32>
    %128 = vector.shape_cast %127 : vector<1x8x8xf32> to vector<8x8xf32>
    %cst_127 = arith.constant dense<0.000000e+00> : vector<8x1024xf32>
    %129 = tpu.matmul %128, %126, %cst_127 {dimension_numbers = #tpu.dot_dimension_numbers<[1], [0], [0], [1], [0, 0, 1, 1], [], []>} : vector<8x8xf32>, vector<8x1024xf32>, vector<8x1024xf32> -> vector<8x1024xf32>
    %130 = arith.addf %122, %129 : vector<8x1024xf32>
    %c0_128 = arith.constant 0 : index
    %c65_129 = arith.constant 65 : index
    %131 = vector.load %arg9[%c0_128, %c65_129] : memref<16x1090xf32, #tpu.memory_space<vmem>>, vector<8x1024xf32>
    %c7_130 = arith.constant 7 : index
    %c0_131 = arith.constant 0 : index
    %c0_132 = arith.constant 0 : index
    %132 = vector.load %arg6[%c7_130, %c0_131, %c0_132] : memref<9x8x8xf32, #tpu.memory_space<vmem>>, vector<1x8x8xf32>
    %133 = vector.shape_cast %132 : vector<1x8x8xf32> to vector<8x8xf32>
    %cst_133 = arith.constant dense<0.000000e+00> : vector<8x1024xf32>
    %134 = tpu.matmul %133, %131, %cst_133 {dimension_numbers = #tpu.dot_dimension_numbers<[1], [0], [0], [1], [0, 0, 1, 1], [], []>} : vector<8x8xf32>, vector<8x1024xf32>, vector<8x1024xf32> -> vector<8x1024xf32>
    %135 = arith.addf %130, %134 : vector<8x1024xf32>
    %c0_134 = arith.constant 0 : index
    %c66_135 = arith.constant 66 : index
    %136 = vector.load %arg9[%c0_134, %c66_135] : memref<16x1090xf32, #tpu.memory_space<vmem>>, vector<8x1024xf32>
    %c1_136 = arith.constant 1 : index
    %c0_137 = arith.constant 0 : index
    %137 = vector.load %arg4[%c1_136, %c0_137] : memref<2x1024xf32, #tpu.memory_space<vmem>>, vector<1x1024xf32>
    %138 = vector.broadcast %137 : vector<1x1024xf32> to vector<8x1024xf32>
    %139 = arith.mulf %136, %138 : vector<8x1024xf32>
    %c8_138 = arith.constant 8 : index
    %c0_139 = arith.constant 0 : index
    %c0_140 = arith.constant 0 : index
    %140 = vector.load %arg6[%c8_138, %c0_139, %c0_140] : memref<9x8x8xf32, #tpu.memory_space<vmem>>, vector<1x8x8xf32>
    %141 = vector.shape_cast %140 : vector<1x8x8xf32> to vector<8x8xf32>
    %cst_141 = arith.constant dense<0.000000e+00> : vector<8x1024xf32>
    %142 = tpu.matmul %141, %139, %cst_141 {dimension_numbers = #tpu.dot_dimension_numbers<[1], [0], [0], [1], [0, 0, 1, 1], [], []>} : vector<8x8xf32>, vector<8x1024xf32>, vector<8x1024xf32> -> vector<8x1024xf32>
    %143 = arith.addf %135, %142 : vector<8x1024xf32>
    %144 = vector.broadcast %81 : vector<8x1xf32> to vector<8x1024xf32>
    %145 = arith.addf %143, %144 : vector<8x1024xf32>
    %cst_142 = arith.constant 0.000000e+00 : f32
    %146 = vector.broadcast %cst_142 : f32 to vector<8x1024xf32>
    %147 = arith.maximumf %145, %146 : vector<8x1024xf32>
    %c0_143 = arith.constant 0 : index
    %c0_144 = arith.constant 0 : index
    %c0_145 = arith.constant 0 : index
    %148 = vector.load %arg8[%c0_143, %c0_144, %c0_145] : memref<1x8x1024xf32, #tpu.memory_space<vmem>>, vector<1x8x1024xf32>
    %149 = vector.shape_cast %148 : vector<1x8x1024xf32> to vector<8x1024xf32>
    %150 = vector.shape_cast %147 : vector<8x1024xf32> to vector<1x8x1024xf32>
    tpu.vector_store %arg8[%c0_143, %c0_144, %c0_145], %150 {strides = array<i32>} : memref<1x8x1024xf32, #tpu.memory_space<vmem>>, vector<1x8x1024xf32>,
    return
  }
  func.func @transform_0(%arg0: i32) -> (i32, i32, i32) {
    %c0_i32 = arith.constant 0 : i32
    %c0_i32_0 = arith.constant 0 : i32
    %c0_i32_1 = arith.constant 0 : i32
    return %arg0, %c0_i32, %c0_i32_0 : i32, i32, i32
  }
  func.func @transform_1(%arg0: i32) -> (i32, i32, i32) {
    %c0_i32 = arith.constant 0 : i32
    %c0_i32_0 = arith.constant 0 : i32
    %c0_i32_1 = arith.constant 0 : i32
    return %arg0, %c0_i32, %c0_i32_0 : i32, i32, i32
  }
  func.func @transform_2(%arg0: i32) -> (i32, i32) {
    %c0_i32 = arith.constant 0 : i32
    %c0_i32_0 = arith.constant 0 : i32
    %c0_i32_1 = arith.constant 0 : i32
    return %c0_i32, %c0_i32_0 : i32, i32
  }
  func.func @transform_3(%arg0: i32) -> (i32, i32) {
    %c0_i32 = arith.constant 0 : i32
    %c0_i32_0 = arith.constant 0 : i32
    %c0_i32_1 = arith.constant 0 : i32
    return %c0_i32, %c0_i32_0 : i32, i32
  }
  func.func @transform_4(%arg0: i32) -> (i32, i32, i32) {
    %c0_i32 = arith.constant 0 : i32
    %c0_i32_0 = arith.constant 0 : i32
    %c0_i32_1 = arith.constant 0 : i32
    %c0_i32_2 = arith.constant 0 : i32
    return %c0_i32, %c0_i32_0, %c0_i32_1 : i32, i32, i32
  }
  func.func @transform_5(%arg0: i32) -> (i32, i32, i32) {
    %c0_i32 = arith.constant 0 : i32
    %c0_i32_0 = arith.constant 0 : i32
    %c0_i32_1 = arith.constant 0 : i32
    %c0_i32_2 = arith.constant 0 : i32
    return %c0_i32, %c0_i32_0, %c0_i32_1 : i32, i32, i32
  }
  func.func @transform_6(%arg0: i32) -> (i32, i32, i32) {
    %c0_i32 = arith.constant 0 : i32
    %c0_i32_0 = arith.constant 0 : i32
    %c0_i32_1 = arith.constant 0 : i32
    %c0_i32_2 = arith.constant 0 : i32
    return %c0_i32, %c0_i32_0, %c0_i32_1 : i32, i32, i32
  }
  func.func @transform_7(%arg0: i32) -> (i32, i32, i32) {
    %c0_i32 = arith.constant 0 : i32
    %c0_i32_0 = arith.constant 0 : i32
    %c0_i32_1 = arith.constant 0 : i32
    return %arg0, %c0_i32, %c0_i32_0 : i32, i32, i32
  }
}

</mosaic_0001>

<llo_original>
// kernel: tpu_custom_call.1
$region0: #{tpu_custom_call.1}
  #allocation0 [shape = 'u32[]', space=smem, size = 0x4, offset = 0x4, fixed_abs, tag = 'smem constant byte address 0x4 - core index']
  #allocation1 [shape = 'u32[72,128]{1,0:T(1,128)}', space=vmem, size = 0x9000, scoped, tag = 'internal scratch']
  #allocation2 [shape = 'f32[16,1090]{1,0:T(8,128)}', space=vmem, size = 0x12000, scoped, tag = 'scratch operand']
  %s0 = inlined_call_operand.vmem [shape: f32[1,8,256], index: 0, kind: input, shape index: {}]
  %s1 = inlined_call_operand.vmem [shape: f32[1,8,1024], index: 1, kind: input, shape index: {}]
  %s2 = inlined_call_operand.hbm [shape: f32[256,1024], index: 2, kind: input, shape index: {}]
  %s3 = inlined_call_operand.hbm [shape: f32[2,1024], index: 3, kind: input, shape index: {}]
  %s4 = inlined_call_operand.vmem [shape: f32[9,8,16], index: 4, kind: input, shape index: {}]
  %s5 = inlined_call_operand.vmem [shape: f32[9,8,8], index: 5, kind: input, shape index: {}]
  %s6 = inlined_call_operand.vmem [shape: f32[2,8,1], index: 6, kind: input, shape index: {}]
  %s7 = inlined_call_operand.hbm [shape: f32[1,8,1024], index: 7, kind: output, shape index: {}]
  %s8 = sld [smem:[#allocation0]]
  $region46: #{tpu_custom_call.1} parent=0
    _
  %s10 = ssub.s32 1, %s8
  %s11 = scalar_select 0, %s10, %s8
  $region1: #{tpu_custom_call.1} parent=0
    #allocation3 [shape = 'u8[1048576]{0}', space=vmem, size = 0x100000, scoped, tag = 'input window, operand 2, single buffered']
    #allocation4 [shape = 's32[1]{0}', space=sflag, size = 0x4, scoped, tag = 'scoped memory for tpu_custom_call.1']
    #allocation5 [shape = 's32[1]{0}', space=sflag, size = 0x4, scoped, tag = 'scoped memory for tpu_custom_call.1']
    #allocation6 [shape = 'u8[8192]{0}', space=vmem, size = 0x2000, scoped, tag = 'input window, operand 3, single buffered']
    #allocation7 [shape = 's32[1]{0}', space=sflag, size = 0x4, scoped, tag = 'scoped memory for tpu_custom_call.1']
    #allocation8 [shape = 'u8[32768]{0}', space=vmem, size = 0x8000, scoped, tag = 'output window, operand 0, single buffered']
    %12 = vsyncpa [#allocation4], 0
    %13 = vsyncpa [#allocation7], 0
    %14 = vsyncpa [#allocation5], 0
    // Predicated region
    $region2: #{tpu_custom_call.1} parent=1 // pred_check
      _
    $region3: #{tpu_custom_call.1} parent=1 // pred_check_branch
      %16 = sbr.rel (0) target = $region5
    $region4: #{tpu_custom_call.1} parent=1 // pred_region
      _
    $region5: #{tpu_custom_call.1} parent=1 // pred_fallthru
      _
    // Predicated region
    $region6: #{tpu_custom_call.1} parent=1 // pred_check
      _
    $region7: #{tpu_custom_call.1} parent=1 // pred_check_branch
      %18 = sbr.rel (0) target = $region9
    $region8: #{tpu_custom_call.1} parent=1 // pred_region
      _
    $region9: #{tpu_custom_call.1} parent=1 // pred_fallthru
      _
    // Predicated region
    $region10: #{tpu_custom_call.1} parent=1 // pred_check
      _
    $region11: #{tpu_custom_call.1} parent=1 // pred_check_branch
      %20 = sbr.rel (0) target = $region13
    $region12: #{tpu_custom_call.1} parent=1 // pred_region
      %22 = vsyncadd [#allocation4], 0
      %s23 = sshll.u32 %s2, 4
      %s24 = int_to_ptr.hbm [resolvable:$true] %s23
      %s25 = sshll.u32 [#allocation3], 4
      %s26 = int_to_ptr.vmem [resolvable:$true] %s25
      %31 = dma.hbm_to_vmem [thread:$0]  %s24, 32768, %s26, [#allocation4], 1024, 1024, 64
    $region13: #{tpu_custom_call.1} parent=1 // pred_fallthru
      _
    // Predicated region
    $region14: #{tpu_custom_call.1} parent=1 // pred_check
      _
    $region15: #{tpu_custom_call.1} parent=1 // pred_check_branch
      %33 = sbr.rel (0) target = $region17
    $region16: #{tpu_custom_call.1} parent=1 // pred_region
      %35 = vsyncadd [#allocation7], 0
      %s37 = sshll.u32 %s3, 4
      %s38 = int_to_ptr.hbm [resolvable:$true] %s37
      %s39 = sshll.u32 [#allocation6], 4
      %s40 = int_to_ptr.vmem [resolvable:$true] %s39
      %42 = dma.hbm_to_vmem [thread:$0]  %s38, 256, %s40, [#allocation7]
    $region17: #{tpu_custom_call.1} parent=1 // pred_fallthru
      _
    // Predicated region
    $region18: #{tpu_custom_call.1} parent=1 // pred_check
      _
    $region19: #{tpu_custom_call.1} parent=1 // pred_check_branch
      %44 = sbr.rel (0) target = $region21
    $region20: #{tpu_custom_call.1} parent=1 // pred_region
      _
    $region21: #{tpu_custom_call.1} parent=1 // pred_fallthru
      _
    // Predicated region
    $region22: #{tpu_custom_call.1} parent=1 // pred_check
      _
    $region23: #{tpu_custom_call.1} parent=1 // pred_check_branch
      %46 = sbr.rel (0) target = $region25
    $region24: #{tpu_custom_call.1} parent=1 // pred_region
      _
    $region25: #{tpu_custom_call.1} parent=1 // pred_fallthru
      _
    // Predicated region
    $region26: #{tpu_custom_call.1} parent=1 // pred_check
      _
    $region27: #{tpu_custom_call.1} parent=1 // pred_check_branch
      %48 = sbr.rel (0) target = $region29
    $region28: #{tpu_custom_call.1} parent=1 // pred_region
      _
    $region29: #{tpu_custom_call.1} parent=1 // pred_fallthru
      _
    // Predicated region
    $region30: #{tpu_custom_call.1} parent=1 // pred_check
      _
    $region31: #{tpu_custom_call.1} parent=1 // pred_check_branch
      %50 = sbr.rel (0) target = $region33
    $region32: #{tpu_custom_call.1} parent=1 // pred_region
      %52 = dma.done [#allocation4], 32768
    $region33: #{tpu_custom_call.1} parent=1 // pred_fallthru
      _
    // Predicated region
    $region34: #{tpu_custom_call.1} parent=1 // pred_check
      _
    $region35: #{tpu_custom_call.1} parent=1 // pred_check_branch
      %54 = sbr.rel (0) target = $region37
    $region36: #{tpu_custom_call.1} parent=1 // pred_region
      %56 = dma.done [#allocation7], 256
    $region37: #{tpu_custom_call.1} parent=1 // pred_fallthru
      _
    %vm57 = vcmask 269312
    %58 = vst.msk [vmem:[#allocation2] sm:$0xff] %vm57, 0.0
    %59 = vst.msk [vmem:[#allocation2 + $0x48] sm:$0xff] %vm57, 0.0
    %vm60 = vcmask 539912
    %61 = vst.msk [vmem:[#allocation2 + $0x40] sm:$0xff] %vm60, 0.0
    %62 = vst.msk [vmem:[#allocation2 + $0x88] sm:$0xff] %vm60, 0.0
    %v63 = vld [vmem:[%s0] sm:$0xff]
    %v64 = vld [vmem:[%s0 + $0x8] sm:$0xff]
    %v65 = vld [vmem:[#allocation3] sm:$0xff]
    %v66 = vld [vmem:[#allocation3 + $0x8] sm:$0xff]
    %v67 = vld [vmem:[#allocation3 + $0x10] sm:$0xff]
    %v68 = vld [vmem:[#allocation3 + $0x18] sm:$0xff]
    %v69 = vld [vmem:[#allocation3 + $0x20] sm:$0xff]
    %v70 = vld [vmem:[#allocation3 + $0x28] sm:$0xff]
    %v71 = vld [vmem:[#allocation3 + $0x30] sm:$0xff]
    %v72 = vld [vmem:[#allocation3 + $0x38] sm:$0xff]
    %v73 = vld [vmem:[#allocation3 + $0x40] sm:$0xff]
    %v74 = vld [vmem:[#allocation3 + $0x48] sm:$0xff]
    %v75 = vld [vmem:[#allocation3 + $0x50] sm:$0xff]
    %v76 = vld [vmem:[#allocation3 + $0x58] sm:$0xff]
    %v77 = vld [vmem:[#allocation3 + $0x60] sm:$0xff]
    %v78 = vld [vmem:[#allocation3 + $0x68] sm:$0xff]
    %v79 = vld [vmem:[#allocation3 + $0x70] sm:$0xff]
    %v80 = vld [vmem:[#allocation3 + $0x78] sm:$0xff]
    %v81 = vld [vmem:[#allocation3 + $0x80] sm:$0xff]
    %v82 = vld [vmem:[#allocation3 + $0x88] sm:$0xff]
    %v83 = vld [vmem:[#allocation3 + $0x90] sm:$0xff]
    %v84 = vld [vmem:[#allocation3 + $0x98] sm:$0xff]
    %v85 = vld [vmem:[#allocation3 + $0xa0] sm:$0xff]
    %v86 = vld [vmem:[#allocation3 + $0xa8] sm:$0xff]
    %v87 = vld [vmem:[#allocation3 + $0xb0] sm:$0xff]
    %v88 = vld [vmem:[#allocation3 + $0xb8] sm:$0xff]
    %v89 = vld [vmem:[#allocation3 + $0xc0] sm:$0xff]
    %v90 = vld [vmem:[#allocation3 + $0xc8] sm:$0xff]
    %v91 = vld [vmem:[#allocation3 + $0xd0] sm:$0xff]
    %v92 = vld [vmem:[#allocation3 + $0xd8] sm:$0xff]
    %v93 = vld [vmem:[#allocation3 + $0xe0] sm:$0xff]
    %v94 = vld [vmem:[#allocation3 + $0xe8] sm:$0xff]
    %v95 = vld [vmem:[#allocation3 + $0xf0] sm:$0xff]
    %v96 = vld [vmem:[#allocation3 + $0xf8] sm:$0xff]
    %v97 = vld [vmem:[#allocation3 + $0x100] sm:$0xff]
    %v98 = vld [vmem:[#allocation3 + $0x108] sm:$0xff]
    %v99 = vld [vmem:[#allocation3 + $0x110] sm:$0xff]
    %v100 = vld [vmem:[#allocation3 + $0x118] sm:$0xff]
    %v101 = vld [vmem:[#allocation3 + $0x120] sm:$0xff]
    %v102 = vld [vmem:[#allocation3 + $0x128] sm:$0xff]
    %v103 = vld [vmem:[#allocation3 + $0x130] sm:$0xff]
    %v104 = vld [vmem:[#allocation3 + $0x138] sm:$0xff]
    %v105 = vld [vmem:[#allocation3 + $0x140] sm:$0xff]
    %v106 = vld [vmem:[#allocation3 + $0x148] sm:$0xff]
    %v107 = vld [vmem:[#allocation3 + $0x150] sm:$0xff]
    %v108 = vld [vmem:[#allocation3 + $0x158] sm:$0xff]
    %v109 = vld [vmem:[#allocation3 + $0x160] sm:$0xff]
    %v110 = vld [vmem:[#allocation3 + $0x168] sm:$0xff]
    %v111 = vld [vmem:[#allocation3 + $0x170] sm:$0xff]
    %v112 = vld [vmem:[#allocation3 + $0x178] sm:$0xff]
    %v113 = vld [vmem:[#allocation3 + $0x180] sm:$0xff]
    %v114 = vld [vmem:[#allocation3 + $0x188] sm:$0xff]
    %v115 = vld [vmem:[#allocation3 + $0x190] sm:$0xff]
    %v116 = vld [vmem:[#allocation3 + $0x198] sm:$0xff]
    %v117 = vld [vmem:[#allocation3 + $0x1a0] sm:$0xff]
    %v118 = vld [vmem:[#allocation3 + $0x1a8] sm:$0xff]
    %v119 = vld [vmem:[#allocation3 + $0x1b0] sm:$0xff]
    %v120 = vld [vmem:[#allocation3 + $0x1b8] sm:$0xff]
    %v121 = vld [vmem:[#allocation3 + $0x1c0] sm:$0xff]
    %v122 = vld [vmem:[#allocation3 + $0x1c8] sm:$0xff]
    %v123 = vld [vmem:[#allocation3 + $0x1d0] sm:$0xff]
    %v124 = vld [vmem:[#allocation3 + $0x1d8] sm:$0xff]
    %v125 = vld [vmem:[#allocation3 + $0x1e0] sm:$0xff]
    %v126 = vld [vmem:[#allocation3 + $0x1e8] sm:$0xff]
    %v127 = vld [vmem:[#allocation3 + $0x1f0] sm:$0xff]
    %v128 = vld [vmem:[#allocation3 + $0x1f8] sm:$0xff]
    %v129 = vld [vmem:[#allocation3 + $0x200] sm:$0xff]
    %v130 = vld [vmem:[#allocation3 + $0x208] sm:$0xff]
    %v131 = vld [vmem:[#allocation3 + $0x210] sm:$0xff]
    %v132 = vld [vmem:[#allocation3 + $0x218] sm:$0xff]
    %v133 = vld [vmem:[#allocation3 + $0x220] sm:$0xff]
    %v134 = vld [vmem:[#allocation3 + $0x228] sm:$0xff]
    %v135 = vld [vmem:[#allocation3 + $0x230] sm:$0xff]
    %v136 = vld [vmem:[#allocation3 + $0x238] sm:$0xff]
    %v137 = vld [vmem:[#allocation3 + $0x240] sm:$0xff]
    %v138 = vld [vmem:[#allocation3 + $0x248] sm:$0xff]
    %v139 = vld [vmem:[#allocation3 + $0x250] sm:$0xff]
    %v140 = vld [vmem:[#allocation3 + $0x258] sm:$0xff]
    %v141 = vld [vmem:[#allocation3 + $0x260] sm:$0xff]
    %v142 = vld [vmem:[#allocation3 + $0x268] sm:$0xff]
    %v143 = vld [vmem:[#allocation3 + $0x270] sm:$0xff]
    %v144 = vld [vmem:[#allocation3 + $0x278] sm:$0xff]
    %v145 = vld [vmem:[#allocation3 + $0x280] sm:$0xff]
    %v146 = vld [vmem:[#allocation3 + $0x288] sm:$0xff]
    %v147 = vld [vmem:[#allocation3 + $0x290] sm:$0xff]
    %v148 = vld [vmem:[#allocation3 + $0x298] sm:$0xff]
    %v149 = vld [vmem:[#allocation3 + $0x2a0] sm:$0xff]
    %v150 = vld [vmem:[#allocation3 + $0x2a8] sm:$0xff]
    %v151 = vld [vmem:[#allocation3 + $0x2b0] sm:$0xff]
    %v152 = vld [vmem:[#allocation3 + $0x2b8] sm:$0xff]
    %v153 = vld [vmem:[#allocation3 + $0x2c0] sm:$0xff]
    %v154 = vld [vmem:[#allocation3 + $0x2c8] sm:$0xff]
    %v155 = vld [vmem:[#allocation3 + $0x2d0] sm:$0xff]
    %v156 = vld [vmem:[#allocation3 + $0x2d8] sm:$0xff]
    %v157 = vld [vmem:[#allocation3 + $0x2e0] sm:$0xff]
    %v158 = vld [vmem:[#allocation3 + $0x2e8] sm:$0xff]
    %v159 = vld [vmem:[#allocation3 + $0x2f0] sm:$0xff]
    %v160 = vld [vmem:[#allocation3 + $0x2f8] sm:$0xff]
    %v161 = vld [vmem:[#allocation3 + $0x300] sm:$0xff]
    %v162 = vld [vmem:[#allocation3 + $0x308] sm:$0xff]
    %v163 = vld [vmem:[#allocation3 + $0x310] sm:$0xff]
    %v164 = vld [vmem:[#allocation3 + $0x318] sm:$0xff]
    %v165 = vld [vmem:[#allocation3 + $0x320] sm:$0xff]
    %v166 = vld [vmem:[#allocation3 + $0x328] sm:$0xff]
    %v167 = vld [vmem:[#allocation3 + $0x330] sm:$0xff]
    %v168 = vld [vmem:[#allocation3 + $0x338] sm:$0xff]
    %v169 = vld [vmem:[#allocation3 + $0x340] sm:$0xff]
    %v170 = vld [vmem:[#allocation3 + $0x348] sm:$0xff]
    %v171 = vld [vmem:[#allocation3 + $0x350] sm:$0xff]
    %v172 = vld [vmem:[#allocation3 + $0x358] sm:$0xff]
    %v173 = vld [vmem:[#allocation3 + $0x360] sm:$0xff]
    %v174 = vld [vmem:[#allocation3 + $0x368] sm:$0xff]
    %v175 = vld [vmem:[#allocation3 + $0x370] sm:$0xff]
    %v176 = vld [vmem:[#allocation3 + $0x378] sm:$0xff]
    %v177 = vld [vmem:[#allocation3 + $0x380] sm:$0xff]
    %v178 = vld [vmem:[#allocation3 + $0x388] sm:$0xff]
    %v179 = vld [vmem:[#allocation3 + $0x390] sm:$0xff]
    %v180 = vld [vmem:[#allocation3 + $0x398] sm:$0xff]
    %v181 = vld [vmem:[#allocation3 + $0x3a0] sm:$0xff]
    %v182 = vld [vmem:[#allocation3 + $0x3a8] sm:$0xff]
    %v183 = vld [vmem:[#allocation3 + $0x3b0] sm:$0xff]
    %v184 = vld [vmem:[#allocation3 + $0x3b8] sm:$0xff]
    %v185 = vld [vmem:[#allocation3 + $0x3c0] sm:$0xff]
    %v186 = vld [vmem:[#allocation3 + $0x3c8] sm:$0xff]
    %v187 = vld [vmem:[#allocation3 + $0x3d0] sm:$0xff]
    %v188 = vld [vmem:[#allocation3 + $0x3d8] sm:$0xff]
    %v189 = vld [vmem:[#allocation3 + $0x3e0] sm:$0xff]
    %v190 = vld [vmem:[#allocation3 + $0x3e8] sm:$0xff]
    %v191 = vld [vmem:[#allocation3 + $0x3f0] sm:$0xff]
    %v192 = vld [vmem:[#allocation3 + $0x3f8] sm:$0xff]
    %v193 = vld [vmem:[#allocation3 + $0x400] sm:$0xff]
    %v194 = vld [vmem:[#allocation3 + $0x408] sm:$0xff]
    %v195 = vld [vmem:[#allocation3 + $0x410] sm:$0xff]
    %v196 = vld [vmem:[#allocation3 + $0x418] sm:$0xff]
    %v197 = vld [vmem:[#allocation3 + $0x420] sm:$0xff]
    %v198 = vld [vmem:[#allocation3 + $0x428] sm:$0xff]
    %v199 = vld [vmem:[#allocation3 + $0x430] sm:$0xff]
    %v200 = vld [vmem:[#allocation3 + $0x438] sm:$0xff]
    %v201 = vld [vmem:[#allocation3 + $0x440] sm:$0xff]
    %v202 = vld [vmem:[#allocation3 + $0x448] sm:$0xff]
    %v203 = vld [vmem:[#allocation3 + $0x450] sm:$0xff]
    %v204 = vld [vmem:[#allocation3 + $0x458] sm:$0xff]
    %v205 = vld [vmem:[#allocation3 + $0x460] sm:$0xff]
    %v206 = vld [vmem:[#allocation3 + $0x468] sm:$0xff]
    %v207 = vld [vmem:[#allocation3 + $0x470] sm:$0xff]
    %v208 = vld [vmem:[#allocation3 + $0x478] sm:$0xff]
    %v209 = vld [vmem:[#allocation3 + $0x480] sm:$0xff]
    %v210 = vld [vmem:[#allocation3 + $0x488] sm:$0xff]
    %v211 = vld [vmem:[#allocation3 + $0x490] sm:$0xff]
    %v212 = vld [vmem:[#allocation3 + $0x498] sm:$0xff]
    %v213 = vld [vmem:[#allocation3 + $0x4a0] sm:$0xff]
    %v214 = vld [vmem:[#allocation3 + $0x4a8] sm:$0xff]
    %v215 = vld [vmem:[#allocation3 + $0x4b0] sm:$0xff]
    %v216 = vld [vmem:[#allocation3 + $0x4b8] sm:$0xff]
    %v217 = vld [vmem:[#allocation3 + $0x4c0] sm:$0xff]
    %v218 = vld [vmem:[#allocation3 + $0x4c8] sm:$0xff]
    %v219 = vld [vmem:[#allocation3 + $0x4d0] sm:$0xff]
    %v220 = vld [vmem:[#allocation3 + $0x4d8] sm:$0xff]
    %v221 = vld [vmem:[#allocation3 + $0x4e0] sm:$0xff]
    %v222 = vld [vmem:[#allocation3 + $0x4e8] sm:$0xff]
    %v223 = vld [vmem:[#allocation3 + $0x4f0] sm:$0xff]
    %v224 = vld [vmem:[#allocation3 + $0x4f8] sm:$0xff]
    %v225 = vld [vmem:[#allocation3 + $0x500] sm:$0xff]
    %v226 = vld [vmem:[#allocation3 + $0x508] sm:$0xff]
    %v227 = vld [vmem:[#allocation3 + $0x510] sm:$0xff]
    %v228 = vld [vmem:[#allocation3 + $0x518] sm:$0xff]
    %v229 = vld [vmem:[#allocation3 + $0x520] sm:$0xff]
    %v230 = vld [vmem:[#allocation3 + $0x528] sm:$0xff]
    %v231 = vld [vmem:[#allocation3 + $0x530] sm:$0xff]
    %v232 = vld [vmem:[#allocation3 + $0x538] sm:$0xff]
    %v233 = vld [vmem:[#allocation3 + $0x540] sm:$0xff]
    %v234 = vld [vmem:[#allocation3 + $0x548] sm:$0xff]
    %v235 = vld [vmem:[#allocation3 + $0x550] sm:$0xff]
    %v236 = vld [vmem:[#allocation3 + $0x558] sm:$0xff]
    %v237 = vld [vmem:[#allocation3 + $0x560] sm:$0xff]
    %v238 = vld [vmem:[#allocation3 + $0x568] sm:$0xff]
    %v239 = vld [vmem:[#allocation3 + $0x570] sm:$0xff]
    %v240 = vld [vmem:[#allocation3 + $0x578] sm:$0xff]
    %v241 = vld [vmem:[#allocation3 + $0x580] sm:$0xff]
    %v242 = vld [vmem:[#allocation3 + $0x588] sm:$0xff]
    %v243 = vld [vmem:[#allocation3 + $0x590] sm:$0xff]
    %v244 = vld [vmem:[#allocation3 + $0x598] sm:$0xff]
    %v245 = vld [vmem:[#allocation3 + $0x5a0] sm:$0xff]
    %v246 = vld [vmem:[#allocation3 + $0x5a8] sm:$0xff]
    %v247 = vld [vmem:[#allocation3 + $0x5b0] sm:$0xff]
    %v248 = vld [vmem:[#allocation3 + $0x5b8] sm:$0xff]
    %v249 = vld [vmem:[#allocation3 + $0x5c0] sm:$0xff]
    %v250 = vld [vmem:[#allocation3 + $0x5c8] sm:$0xff]
    %v251 = vld [vmem:[#allocation3 + $0x5d0] sm:$0xff]
    %v252 = vld [vmem:[#allocation3 + $0x5d8] sm:$0xff]
    %v253 = vld [vmem:[#allocation3 + $0x5e0] sm:$0xff]
    %v254 = vld [vmem:[#allocation3 + $0x5e8] sm:$0xff]
    %v255 = vld [vmem:[#allocation3 + $0x5f0] sm:$0xff]
    %v256 = vld [vmem:[#allocation3 + $0x5f8] sm:$0xff]
    %v257 = vld [vmem:[#allocation3 + $0x600] sm:$0xff]
    %v258 = vld [vmem:[#allocation3 + $0x608] sm:$0xff]
    %v259 = vld [vmem:[#allocation3 + $0x610] sm:$0xff]
    %v260 = vld [vmem:[#allocation3 + $0x618] sm:$0xff]
    %v261 = vld [vmem:[#allocation3 + $0x620] sm:$0xff]
    %v262 = vld [vmem:[#allocation3 + $0x628] sm:$0xff]
    %v263 = vld [vmem:[#allocation3 + $0x630] sm:$0xff]
    %v264 = vld [vmem:[#allocation3 + $0x638] sm:$0xff]
    %v265 = vld [vmem:[#allocation3 + $0x640] sm:$0xff]
    %v266 = vld [vmem:[#allocation3 + $0x648] sm:$0xff]
    %v267 = vld [vmem:[#allocation3 + $0x650] sm:$0xff]
    %v268 = vld [vmem:[#allocation3 + $0x658] sm:$0xff]
    %v269 = vld [vmem:[#allocation3 + $0x660] sm:$0xff]
    %v270 = vld [vmem:[#allocation3 + $0x668] sm:$0xff]
    %v271 = vld [vmem:[#allocation3 + $0x670] sm:$0xff]
    %v272 = vld [vmem:[#allocation3 + $0x678] sm:$0xff]
    %v273 = vld [vmem:[#allocation3 + $0x680] sm:$0xff]
    %v274 = vld [vmem:[#allocation3 + $0x688] sm:$0xff]
    %v275 = vld [vmem:[#allocation3 + $0x690] sm:$0xff]
    %v276 = vld [vmem:[#allocation3 + $0x698] sm:$0xff]
    %v277 = vld [vmem:[#allocation3 + $0x6a0] sm:$0xff]
    %v278 = vld [vmem:[#allocation3 + $0x6a8] sm:$0xff]
    %v279 = vld [vmem:[#allocation3 + $0x6b0] sm:$0xff]
    %v280 = vld [vmem:[#allocation3 + $0x6b8] sm:$0xff]
    %v281 = vld [vmem:[#allocation3 + $0x6c0] sm:$0xff]
    %v282 = vld [vmem:[#allocation3 + $0x6c8] sm:$0xff]
    %v283 = vld [vmem:[#allocation3 + $0x6d0] sm:$0xff]
    %v284 = vld [vmem:[#allocation3 + $0x6d8] sm:$0xff]
    %v285 = vld [vmem:[#allocation3 + $0x6e0] sm:$0xff]
    %v286 = vld [vmem:[#allocation3 + $0x6e8] sm:$0xff]
    %v287 = vld [vmem:[#allocation3 + $0x6f0] sm:$0xff]
    %v288 = vld [vmem:[#allocation3 + $0x6f8] sm:$0xff]
    %v289 = vld [vmem:[#allocation3 + $0x700] sm:$0xff]
    %v290 = vld [vmem:[#allocation3 + $0x708] sm:$0xff]
    %v291 = vld [vmem:[#allocation3 + $0x710] sm:$0xff]
    %v292 = vld [vmem:[#allocation3 + $0x718] sm:$0xff]
    %v293 = vld [vmem:[#allocation3 + $0x720] sm:$0xff]
    %v294 = vld [vmem:[#allocation3 + $0x728] sm:$0xff]
    %v295 = vld [vmem:[#allocation3 + $0x730] sm:$0xff]
    %v296 = vld [vmem:[#allocation3 + $0x738] sm:$0xff]
    %v297 = vld [vmem:[#allocation3 + $0x740] sm:$0xff]
    %v298 = vld [vmem:[#allocation3 + $0x748] sm:$0xff]
    %v299 = vld [vmem:[#allocation3 + $0x750] sm:$0xff]
    %v300 = vld [vmem:[#allocation3 + $0x758] sm:$0xff]
    %v301 = vld [vmem:[#allocation3 + $0x760] sm:$0xff]
    %v302 = vld [vmem:[#allocation3 + $0x768] sm:$0xff]
    %v303 = vld [vmem:[#allocation3 + $0x770] sm:$0xff]
    %v304 = vld [vmem:[#allocation3 + $0x778] sm:$0xff]
    %v305 = vld [vmem:[#allocation3 + $0x780] sm:$0xff]
    %v306 = vld [vmem:[#allocation3 + $0x788] sm:$0xff]
    %v307 = vld [vmem:[#allocation3 + $0x790] sm:$0xff]
    %v308 = vld [vmem:[#allocation3 + $0x798] sm:$0xff]
    %v309 = vld [vmem:[#allocation3 + $0x7a0] sm:$0xff]
    %v310 = vld [vmem:[#allocation3 + $0x7a8] sm:$0xff]
    %v311 = vld [vmem:[#allocation3 + $0x7b0] sm:$0xff]
    %v312 = vld [vmem:[#allocation3 + $0x7b8] sm:$0xff]
    %v313 = vld [vmem:[#allocation3 + $0x7c0] sm:$0xff]
    %v314 = vld [vmem:[#allocation3 + $0x7c8] sm:$0xff]
    %v315 = vld [vmem:[#allocation3 + $0x7d0] sm:$0xff]
    %v316 = vld [vmem:[#allocation3 + $0x7d8] sm:$0xff]
    %v317 = vld [vmem:[#allocation3 + $0x7e0] sm:$0xff]
    %v318 = vld [vmem:[#allocation3 + $0x7e8] sm:$0xff]
    %v319 = vld [vmem:[#allocation3 + $0x7f0] sm:$0xff]
    %v320 = vld [vmem:[#allocation3 + $0x7f8] sm:$0xff]
    %321 = vmatpush.msra.mxu0 %v185
    %322 = vmatpush.msra.mxu0 %v177
    %323 = vmatpush.msra.mxu0 %v169
    %324 = vmatpush.msra.mxu0 %v161
    %325 = vmatpush.msra.mxu0 %v153
    %326 = vmatpush.msra.mxu0 %v145
    %327 = vmatpush.msra.mxu0 %v137
    %328 = vmatpush.msra.mxu0 %v129
    %329 = vmatpush.msra.mxu0 %v121
    %330 = vmatpush.msra.mxu0 %v113
    %331 = vmatpush.msra.mxu0 %v105
    %332 = vmatpush.msra.mxu0 %v97
    %333 = vmatpush.msra.mxu0 %v89
    %334 = vmatpush.msra.mxu0 %v81
    %335 = vmatpush.msra.mxu0 %v73
    %336 = vmatpush.msra.mxu0 %v65
    %337 = vmatmul.f32.gmra.mxu0 %v63
    %v338 = vpop.f32.mrf.mxu0
    %v339 = vadd.f32 0.0, %v338
    %340 = vdwg.mxu0
    %341 = vmatpush.msra.mxu0 %v313
    %342 = vmatpush.msra.mxu0 %v305
    %343 = vmatpush.msra.mxu0 %v297
    %344 = vmatpush.msra.mxu0 %v289
    %345 = vmatpush.msra.mxu0 %v281
    %346 = vmatpush.msra.mxu0 %v273
    %347 = vmatpush.msra.mxu0 %v265
    %348 = vmatpush.msra.mxu0 %v257
    %349 = vmatpush.msra.mxu0 %v249
    %350 = vmatpush.msra.mxu0 %v241
    %351 = vmatpush.msra.mxu0 %v233
    %352 = vmatpush.msra.mxu0 %v225
    %353 = vmatpush.msra.mxu0 %v217
    %354 = vmatpush.msra.mxu0 %v209
    %355 = vmatpush.msra.mxu0 %v201
    %356 = vmatpush.msra.mxu0 %v193
    %357 = vmatmul.f32.gmra.mxu0 %v64
    %v358 = vpop.f32.mrf.mxu0
    %v359 = vadd.f32 %v339, %v358
    %360 = vdwg.mxu0
    %361 = vmatpush.msra.mxu0 %v186
    %362 = vmatpush.msra.mxu0 %v178
    %363 = vmatpush.msra.mxu0 %v170
    %364 = vmatpush.msra.mxu0 %v162
    %365 = vmatpush.msra.mxu0 %v154
    %366 = vmatpush.msra.mxu0 %v146
    %367 = vmatpush.msra.mxu0 %v138
    %368 = vmatpush.msra.mxu0 %v130
    %369 = vmatpush.msra.mxu0 %v122
    %370 = vmatpush.msra.mxu0 %v114
    %371 = vmatpush.msra.mxu0 %v106
    %372 = vmatpush.msra.mxu0 %v98
    %373 = vmatpush.msra.mxu0 %v90
    %374 = vmatpush.msra.mxu0 %v82
    %375 = vmatpush.msra.mxu0 %v74
    %376 = vmatpush.msra.mxu0 %v66
    %377 = vmatmul.f32.gmra.mxu0 %v63
    %v378 = vpop.f32.mrf.mxu0
    %v379 = vadd.f32 0.0, %v378
    %380 = vdwg.mxu0
    %381 = vmatpush.msra.mxu0 %v314
    %382 = vmatpush.msra.mxu0 %v306
    %383 = vmatpush.msra.mxu0 %v298
    %384 = vmatpush.msra.mxu0 %v290
    %385 = vmatpush.msra.mxu0 %v282
    %386 = vmatpush.msra.mxu0 %v274
    %387 = vmatpush.msra.mxu0 %v266
    %388 = vmatpush.msra.mxu0 %v258
    %389 = vmatpush.msra.mxu0 %v250
    %390 = vmatpush.msra.mxu0 %v242
    %391 = vmatpush.msra.mxu0 %v234
    %392 = vmatpush.msra.mxu0 %v226
    %393 = vmatpush.msra.mxu0 %v218
    %394 = vmatpush.msra.mxu0 %v210
    %395 = vmatpush.msra.mxu0 %v202
    %396 = vmatpush.msra.mxu0 %v194
    %397 = vmatmul.f32.gmra.mxu0 %v64
    %v398 = vpop.f32.mrf.mxu0
    %v399 = vadd.f32 %v379, %v398
    %400 = vdwg.mxu0
    %401 = vmatpush.msra.mxu0 %v187
    %402 = vmatpush.msra.mxu0 %v179
    %403 = vmatpush.msra.mxu0 %v171
    %404 = vmatpush.msra.mxu0 %v163
    %405 = vmatpush.msra.mxu0 %v155
    %406 = vmatpush.msra.mxu0 %v147
    %407 = vmatpush.msra.mxu0 %v139
    %408 = vmatpush.msra.mxu0 %v131
    %409 = vmatpush.msra.mxu0 %v123
    %410 = vmatpush.msra.mxu0 %v115
    %411 = vmatpush.msra.mxu0 %v107
    %412 = vmatpush.msra.mxu0 %v99
    %413 = vmatpush.msra.mxu0 %v91
    %414 = vmatpush.msra.mxu0 %v83
    %415 = vmatpush.msra.mxu0 %v75
    %416 = vmatpush.msra.mxu0 %v67
    %417 = vmatmul.f32.gmra.mxu0 %v63
    %v418 = vpop.f32.mrf.mxu0
    %v419 = vadd.f32 0.0, %v418
    %420 = vdwg.mxu0
    %421 = vmatpush.msra.mxu0 %v315
    %422 = vmatpush.msra.mxu0 %v307
    %423 = vmatpush.msra.mxu0 %v299
    %424 = vmatpush.msra.mxu0 %v291
    %425 = vmatpush.msra.mxu0 %v283
    %426 = vmatpush.msra.mxu0 %v275
    %427 = vmatpush.msra.mxu0 %v267
    %428 = vmatpush.msra.mxu0 %v259
    %429 = vmatpush.msra.mxu0 %v251
    %430 = vmatpush.msra.mxu0 %v243
    %431 = vmatpush.msra.mxu0 %v235
    %432 = vmatpush.msra.mxu0 %v227
    %433 = vmatpush.msra.mxu0 %v219
    %434 = vmatpush.msra.mxu0 %v211
    %435 = vmatpush.msra.mxu0 %v203
    %436 = vmatpush.msra.mxu0 %v195
    %437 = vmatmul.f32.gmra.mxu0 %v64
    %v438 = vpop.f32.mrf.mxu0
    %v439 = vadd.f32 %v419, %v438
    %440 = vdwg.mxu0
    %441 = vmatpush.msra.mxu0 %v188
    %442 = vmatpush.msra.mxu0 %v180
    %443 = vmatpush.msra.mxu0 %v172
    %444 = vmatpush.msra.mxu0 %v164
    %445 = vmatpush.msra.mxu0 %v156
    %446 = vmatpush.msra.mxu0 %v148
    %447 = vmatpush.msra.mxu0 %v140
    %448 = vmatpush.msra.mxu0 %v132
    %449 = vmatpush.msra.mxu0 %v124
    %450 = vmatpush.msra.mxu0 %v116
    %451 = vmatpush.msra.mxu0 %v108
    %452 = vmatpush.msra.mxu0 %v100
    %453 = vmatpush.msra.mxu0 %v92
    %454 = vmatpush.msra.mxu0 %v84
    %455 = vmatpush.msra.mxu0 %v76
    %456 = vmatpush.msra.mxu0 %v68
    %457 = vmatmul.f32.gmra.mxu0 %v63
    %v458 = vpop.f32.mrf.mxu0
    %v459 = vadd.f32 0.0, %v458
    %460 = vdwg.mxu0
    %461 = vmatpush.msra.mxu0 %v316
    %462 = vmatpush.msra.mxu0 %v308
    %463 = vmatpush.msra.mxu0 %v300
    %464 = vmatpush.msra.mxu0 %v292
    %465 = vmatpush.msra.mxu0 %v284
    %466 = vmatpush.msra.mxu0 %v276
    %467 = vmatpush.msra.mxu0 %v268
    %468 = vmatpush.msra.mxu0 %v260
    %469 = vmatpush.msra.mxu0 %v252
    %470 = vmatpush.msra.mxu0 %v244
    %471 = vmatpush.msra.mxu0 %v236
    %472 = vmatpush.msra.mxu0 %v228
    %473 = vmatpush.msra.mxu0 %v220
    %474 = vmatpush.msra.mxu0 %v212
    %475 = vmatpush.msra.mxu0 %v204
    %476 = vmatpush.msra.mxu0 %v196
    %477 = vmatmul.f32.gmra.mxu0 %v64
    %v478 = vpop.f32.mrf.mxu0
    %v479 = vadd.f32 %v459, %v478
    %480 = vdwg.mxu0
    %481 = vmatpush.msra.mxu0 %v189
    %482 = vmatpush.msra.mxu0 %v181
    %483 = vmatpush.msra.mxu0 %v173
    %484 = vmatpush.msra.mxu0 %v165
    %485 = vmatpush.msra.mxu0 %v157
    %486 = vmatpush.msra.mxu0 %v149
    %487 = vmatpush.msra.mxu0 %v141
    %488 = vmatpush.msra.mxu0 %v133
    %489 = vmatpush.msra.mxu0 %v125
    %490 = vmatpush.msra.mxu0 %v117
    %491 = vmatpush.msra.mxu0 %v109
    %492 = vmatpush.msra.mxu0 %v101
    %493 = vmatpush.msra.mxu0 %v93
    %494 = vmatpush.msra.mxu0 %v85
    %495 = vmatpush.msra.mxu0 %v77
    %496 = vmatpush.msra.mxu0 %v69
    %497 = vmatmul.f32.gmra.mxu0 %v63
    %v498 = vpop.f32.mrf.mxu0
    %v499 = vadd.f32 0.0, %v498
    %500 = vdwg.mxu0
    %501 = vmatpush.msra.mxu0 %v317
    %502 = vmatpush.msra.mxu0 %v309
    %503 = vmatpush.msra.mxu0 %v301
    %504 = vmatpush.msra.mxu0 %v293
    %505 = vmatpush.msra.mxu0 %v285
    %506 = vmatpush.msra.mxu0 %v277
    %507 = vmatpush.msra.mxu0 %v269
    %508 = vmatpush.msra.mxu0 %v261
    %509 = vmatpush.msra.mxu0 %v253
    %510 = vmatpush.msra.mxu0 %v245
    %511 = vmatpush.msra.mxu0 %v237
    %512 = vmatpush.msra.mxu0 %v229
    %513 = vmatpush.msra.mxu0 %v221
    %514 = vmatpush.msra.mxu0 %v213
    %515 = vmatpush.msra.mxu0 %v205
    %516 = vmatpush.msra.mxu0 %v197
    %517 = vmatmul.f32.gmra.mxu0 %v64
    %v518 = vpop.f32.mrf.mxu0
    %v519 = vadd.f32 %v499, %v518
    %520 = vdwg.mxu0
    %521 = vmatpush.msra.mxu0 %v190
    %522 = vmatpush.msra.mxu0 %v182
    %523 = vmatpush.msra.mxu0 %v174
    %524 = vmatpush.msra.mxu0 %v166
    %525 = vmatpush.msra.mxu0 %v158
    %526 = vmatpush.msra.mxu0 %v150
    %527 = vmatpush.msra.mxu0 %v142
    %528 = vmatpush.msra.mxu0 %v134
    %529 = vmatpush.msra.mxu0 %v126
    %530 = vmatpush.msra.mxu0 %v118
    %531 = vmatpush.msra.mxu0 %v110
    %532 = vmatpush.msra.mxu0 %v102
    %533 = vmatpush.msra.mxu0 %v94
    %534 = vmatpush.msra.mxu0 %v86
    %535 = vmatpush.msra.mxu0 %v78
    %536 = vmatpush.msra.mxu0 %v70
    %537 = vmatmul.f32.gmra.mxu0 %v63
    %v538 = vpop.f32.mrf.mxu0
    %v539 = vadd.f32 0.0, %v538
    %540 = vdwg.mxu0
    %541 = vmatpush.msra.mxu0 %v318
    %542 = vmatpush.msra.mxu0 %v310
    %543 = vmatpush.msra.mxu0 %v302
    %544 = vmatpush.msra.mxu0 %v294
    %545 = vmatpush.msra.mxu0 %v286
    %546 = vmatpush.msra.mxu0 %v278
    %547 = vmatpush.msra.mxu0 %v270
    %548 = vmatpush.msra.mxu0 %v262
    %549 = vmatpush.msra.mxu0 %v254
    %550 = vmatpush.msra.mxu0 %v246
    %551 = vmatpush.msra.mxu0 %v238
    %552 = vmatpush.msra.mxu0 %v230
    %553 = vmatpush.msra.mxu0 %v222
    %554 = vmatpush.msra.mxu0 %v214
    %555 = vmatpush.msra.mxu0 %v206
    %556 = vmatpush.msra.mxu0 %v198
    %557 = vmatmul.f32.gmra.mxu0 %v64
    %v558 = vpop.f32.mrf.mxu0
    %v559 = vadd.f32 %v539, %v558
    %560 = vdwg.mxu0
    %561 = vmatpush.msra.mxu0 %v191
    %562 = vmatpush.msra.mxu0 %v183
    %563 = vmatpush.msra.mxu0 %v175
    %564 = vmatpush.msra.mxu0 %v167
    %565 = vmatpush.msra.mxu0 %v159
    %566 = vmatpush.msra.mxu0 %v151
    %567 = vmatpush.msra.mxu0 %v143
    %568 = vmatpush.msra.mxu0 %v135
    %569 = vmatpush.msra.mxu0 %v127
    %570 = vmatpush.msra.mxu0 %v119
    %571 = vmatpush.msra.mxu0 %v111
    %572 = vmatpush.msra.mxu0 %v103
    %573 = vmatpush.msra.mxu0 %v95
    %574 = vmatpush.msra.mxu0 %v87
    %575 = vmatpush.msra.mxu0 %v79
    %576 = vmatpush.msra.mxu0 %v71
    %577 = vmatmul.f32.gmra.mxu0 %v63
    %v578 = vpop.f32.mrf.mxu0
    %v579 = vadd.f32 0.0, %v578
    %580 = vdwg.mxu0
    %581 = vmatpush.msra.mxu0 %v319
    %582 = vmatpush.msra.mxu0 %v311
    %583 = vmatpush.msra.mxu0 %v303
    %584 = vmatpush.msra.mxu0 %v295
    %585 = vmatpush.msra.mxu0 %v287
    %586 = vmatpush.msra.mxu0 %v279
    %587 = vmatpush.msra.mxu0 %v271
    %588 = vmatpush.msra.mxu0 %v263
    %589 = vmatpush.msra.mxu0 %v255
    %590 = vmatpush.msra.mxu0 %v247
    %591 = vmatpush.msra.mxu0 %v239
    %592 = vmatpush.msra.mxu0 %v231
    %593 = vmatpush.msra.mxu0 %v223
    %594 = vmatpush.msra.mxu0 %v215
    %595 = vmatpush.msra.mxu0 %v207
    %596 = vmatpush.msra.mxu0 %v199
    %597 = vmatmul.f32.gmra.mxu0 %v64
    %v598 = vpop.f32.mrf.mxu0
    %v599 = vadd.f32 %v579, %v598
    %600 = vdwg.mxu0
    %601 = vmatpush.msra.mxu0 %v192
    %602 = vmatpush.msra.mxu0 %v184
    %603 = vmatpush.msra.mxu0 %v176
    %604 = vmatpush.msra.mxu0 %v168
    %605 = vmatpush.msra.mxu0 %v160
    %606 = vmatpush.msra.mxu0 %v152
    %607 = vmatpush.msra.mxu0 %v144
    %608 = vmatpush.msra.mxu0 %v136
    %609 = vmatpush.msra.mxu0 %v128
    %610 = vmatpush.msra.mxu0 %v120
    %611 = vmatpush.msra.mxu0 %v112
    %612 = vmatpush.msra.mxu0 %v104
    %613 = vmatpush.msra.mxu0 %v96
    %614 = vmatpush.msra.mxu0 %v88
    %615 = vmatpush.msra.mxu0 %v80
    %616 = vmatpush.msra.mxu0 %v72
    %617 = vmatmul.f32.gmra.mxu0 %v63
    %v618 = vpop.f32.mrf.mxu0
    %v619 = vadd.f32 0.0, %v618
    %620 = vdwg.mxu0
    %621 = vmatpush.msra.mxu0 %v320
    %622 = vmatpush.msra.mxu0 %v312
    %623 = vmatpush.msra.mxu0 %v304
    %624 = vmatpush.msra.mxu0 %v296
    %625 = vmatpush.msra.mxu0 %v288
    %626 = vmatpush.msra.mxu0 %v280
    %627 = vmatpush.msra.mxu0 %v272
    %628 = vmatpush.msra.mxu0 %v264
    %629 = vmatpush.msra.mxu0 %v256
    %630 = vmatpush.msra.mxu0 %v248
    %631 = vmatpush.msra.mxu0 %v240
    %632 = vmatpush.msra.mxu0 %v232
    %633 = vmatpush.msra.mxu0 %v224
    %634 = vmatpush.msra.mxu0 %v216
    %635 = vmatpush.msra.mxu0 %v208
    %636 = vmatpush.msra.mxu0 %v200
    %637 = vmatmul.f32.gmra.mxu0 %v64
    %v638 = vpop.f32.mrf.mxu0
    %v639 = vadd.f32 %v619, %v638
    %640 = vdwg.mxu0
    %649 = vrot.lane.b32.xlu0 %v359, 33
    %v650 = vpop.permute.xlu0 %649
    %651 = vrot.lane.b32.xlu0 %v399, 33
    %v652 = vpop.permute.xlu0 %651
    %653 = vrot.lane.b32.xlu0 %v439, 33
    %v654 = vpop.permute.xlu0 %653
    %655 = vrot.lane.b32.xlu0 %v479, 33
    %v656 = vpop.permute.xlu0 %655
    %657 = vrot.lane.b32.xlu0 %v519, 33
    %v658 = vpop.permute.xlu0 %657
    %659 = vrot.lane.b32.xlu0 %v559, 33
    %v660 = vpop.permute.xlu0 %659
    %661 = vrot.lane.b32.xlu0 %v599, 33
    %v662 = vpop.permute.xlu0 %661
    %663 = vrot.lane.b32.xlu0 %v639, 33
    %v664 = vpop.permute.xlu0 %663
    %v665 = vsel %vm57, %v650, %v652
    %v666 = vsel %vm57, %v652, %v654
    %v667 = vsel %vm57, %v654, %v656
    %v668 = vsel %vm57, %v656, %v658
    %v669 = vsel %vm57, %v658, %v660
    %v670 = vsel %vm57, %v660, %v662
    %v671 = vsel %vm57, %v662, %v664
    %vm681 = vcmask 1047816
    %682 = vst.msk [vmem:[#allocation2] sm:$0xff] %vm681, %v650
    %683 = vst [vmem:[#allocation2 + $0x8] sm:$0xff] %v665
    %684 = vst [vmem:[#allocation2 + $0x10] sm:$0xff] %v666
    %685 = vst [vmem:[#allocation2 + $0x18] sm:$0xff] %v667
    %686 = vst [vmem:[#allocation2 + $0x20] sm:$0xff] %v668
    %687 = vst [vmem:[#allocation2 + $0x28] sm:$0xff] %v669
    %688 = vst [vmem:[#allocation2 + $0x30] sm:$0xff] %v670
    %689 = vst [vmem:[#allocation2 + $0x38] sm:$0xff] %v671
    %690 = vst.msk [vmem:[#allocation2 + $0x40] sm:$0xff] %vm57, %v664
    %v691 = vld [vmem:[%s1] sm:$0xff]
    %v692 = vld [vmem:[%s1 + $0x8] sm:$0xff]
    %v693 = vld [vmem:[%s1 + $0x10] sm:$0xff]
    %v694 = vld [vmem:[%s1 + $0x18] sm:$0xff]
    %v695 = vld [vmem:[%s1 + $0x20] sm:$0xff]
    %v696 = vld [vmem:[%s1 + $0x28] sm:$0xff]
    %v697 = vld [vmem:[%s1 + $0x30] sm:$0xff]
    %v698 = vld [vmem:[%s1 + $0x38] sm:$0xff]
    %707 = vrot.lane.b32.xlu0 %v691, 33
    %v708 = vpop.permute.xlu0 %707
    %709 = vrot.lane.b32.xlu0 %v692, 33
    %v710 = vpop.permute.xlu0 %709
    %711 = vrot.lane.b32.xlu0 %v693, 33
    %v712 = vpop.permute.xlu0 %711
    %713 = vrot.lane.b32.xlu0 %v694, 33
    %v714 = vpop.permute.xlu0 %713
    %715 = vrot.lane.b32.xlu0 %v695, 33
    %v716 = vpop.permute.xlu0 %715
    %717 = vrot.lane.b32.xlu0 %v696, 33
    %v718 = vpop.permute.xlu0 %717
    %719 = vrot.lane.b32.xlu0 %v697, 33
    %v720 = vpop.permute.xlu0 %719
    %721 = vrot.lane.b32.xlu0 %v698, 33
    %v722 = vpop.permute.xlu0 %721
    %v723 = vsel %vm57, %v708, %v710
    %v724 = vsel %vm57, %v710, %v712
    %v725 = vsel %vm57, %v712, %v714
    %v726 = vsel %vm57, %v714, %v716
    %v727 = vsel %vm57, %v716, %v718
    %v728 = vsel %vm57, %v718, %v720
    %v729 = vsel %vm57, %v720, %v722
    %739 = vst.msk [vmem:[#allocation2 + $0x48] sm:$0xff] %vm681, %v708
    %740 = vst [vmem:[#allocation2 + $0x50] sm:$0xff] %v723
    %741 = vst [vmem:[#allocation2 + $0x58] sm:$0xff] %v724
    %742 = vst [vmem:[#allocation2 + $0x60] sm:$0xff] %v725
    %743 = vst [vmem:[#allocation2 + $0x68] sm:$0xff] %v726
    %744 = vst [vmem:[#allocation2 + $0x70] sm:$0xff] %v727
    %745 = vst [vmem:[#allocation2 + $0x78] sm:$0xff] %v728
    %746 = vst [vmem:[#allocation2 + $0x80] sm:$0xff] %v729
    %747 = vst.msk [vmem:[#allocation2 + $0x88] sm:$0xff] %vm57, %v722
    %v748 = vld [vmem:[%s6] sm:$0xff]
    %v749 = vld [vmem:[#allocation2] sm:$0xff]
    %v750 = vld [vmem:[#allocation2 + $0x8] sm:$0xff]
    %v751 = vld [vmem:[#allocation2 + $0x10] sm:$0xff]
    %v752 = vld [vmem:[#allocation2 + $0x18] sm:$0xff]
    %v753 = vld [vmem:[#allocation2 + $0x20] sm:$0xff]
    %v754 = vld [vmem:[#allocation2 + $0x28] sm:$0xff]
    %v755 = vld [vmem:[#allocation2 + $0x30] sm:$0xff]
    %v756 = vld [vmem:[#allocation2 + $0x38] sm:$0xff]
    %v757 = vld [vmem:[#allocation2 + $0x48] sm:$0xff]
    %v758 = vld [vmem:[#allocation2 + $0x50] sm:$0xff]
    %v759 = vld [vmem:[#allocation2 + $0x58] sm:$0xff]
    %v760 = vld [vmem:[#allocation2 + $0x60] sm:$0xff]
    %v761 = vld [vmem:[#allocation2 + $0x68] sm:$0xff]
    %v762 = vld [vmem:[#allocation2 + $0x70] sm:$0xff]
    %v763 = vld [vmem:[#allocation2 + $0x78] sm:$0xff]
    %v764 = vld [vmem:[#allocation2 + $0x80] sm:$0xff]
    %v765 = vld [vmem:[#allocation6] ss:$2 sm:$0xff]
    %v767 = vperm.slane %v765, 0
    %v768 = vperm.slane %v765, 1
    %v769 = vperm.slane %v765, 2
    %v770 = vperm.slane %v765, 3
    %v771 = vperm.slane %v765, 4
    %v772 = vperm.slane %v765, 5
    %v773 = vperm.slane %v765, 6
    %v774 = vperm.slane %v765, 7
    %v783 = vmul.f32 %v749, %v767
    %v784 = vmul.f32 %v750, %v768
    %v785 = vmul.f32 %v751, %v769
    %v786 = vmul.f32 %v752, %v770
    %v787 = vmul.f32 %v753, %v771
    %v788 = vmul.f32 %v754, %v772
    %v789 = vmul.f32 %v755, %v773
    %v790 = vmul.f32 %v756, %v774
    %v791 = vmul.f32 %v757, %v767
    %v792 = vmul.f32 %v758, %v768
    %v793 = vmul.f32 %v759, %v769
    %v794 = vmul.f32 %v760, %v770
    %v795 = vmul.f32 %v761, %v771
    %v796 = vmul.f32 %v762, %v772
    %v797 = vmul.f32 %v763, %v773
    %v798 = vmul.f32 %v764, %v774
    %v799 = vld [vmem:[%s4] sm:$0xff]
    %v800 = vld [vmem:[#allocation2 + $0x40] sm:$0xff]
    %v801 = vld [vmem:[#allocation2 + $0x88] sm:$0xff]
    %s802 = scalar_lea.vmem %s4, 8
    %v803 = vld [vmem:[%s802] sm:$0xff]
    %822 = vrot.lane.b32.xlu0 %v749, 127
    %v823 = vpop.permute.xlu0 %822
    %824 = vrot.lane.b32.xlu0 %v750, 127
    %v825 = vpop.permute.xlu0 %824
    %826 = vrot.lane.b32.xlu0 %v751, 127
    %v827 = vpop.permute.xlu0 %826
    %828 = vrot.lane.b32.xlu0 %v752, 127
    %v829 = vpop.permute.xlu0 %828
    %830 = vrot.lane.b32.xlu0 %v753, 127
    %v831 = vpop.permute.xlu0 %830
    %832 = vrot.lane.b32.xlu0 %v754, 127
    %v833 = vpop.permute.xlu0 %832
    %834 = vrot.lane.b32.xlu0 %v755, 127
    %v835 = vpop.permute.xlu0 %834
    %836 = vrot.lane.b32.xlu0 %v756, 127
    %v837 = vpop.permute.xlu0 %836
    %838 = vrot.lane.b32.xlu0 %v800, 127
    %v839 = vpop.permute.xlu0 %838
    %840 = vrot.lane.b32.xlu0 %v757, 127
    %v841 = vpop.permute.xlu0 %840
    %842 = vrot.lane.b32.xlu0 %v758, 127
    %v843 = vpop.permute.xlu0 %842
    %844 = vrot.lane.b32.xlu0 %v759, 127
    %v845 = vpop.permute.xlu0 %844
    %846 = vrot.lane.b32.xlu0 %v760, 127
    %v847 = vpop.permute.xlu0 %846
    %848 = vrot.lane.b32.xlu0 %v761, 127
    %v849 = vpop.permute.xlu0 %848
    %850 = vrot.lane.b32.xlu0 %v762, 127
    %v851 = vpop.permute.xlu0 %850
    %852 = vrot.lane.b32.xlu0 %v763, 127
    %v853 = vpop.permute.xlu0 %852
    %854 = vrot.lane.b32.xlu0 %v764, 127
    %v855 = vpop.permute.xlu0 %854
    %856 = vrot.lane.b32.xlu0 %v801, 127
    %v857 = vpop.permute.xlu0 %856
    %vm858 = vcmask 1039360
    %v859 = vsel %vm858, %v823, %v825
    %v860 = vsel %vm858, %v825, %v827
    %v861 = vsel %vm858, %v827, %v829
    %v862 = vsel %vm858, %v829, %v831
    %v863 = vsel %vm858, %v831, %v833
    %v864 = vsel %vm858, %v833, %v835
    %v865 = vsel %vm858, %v835, %v837
    %v866 = vsel %vm858, %v837, %v839
    %v867 = vsel %vm858, %v841, %v843
    %v868 = vsel %vm858, %v843, %v845
    %v869 = vsel %vm858, %v845, %v847
    %v870 = vsel %vm858, %v847, %v849
    %v871 = vsel %vm858, %v849, %v851
    %v872 = vsel %vm858, %v851, %v853
    %v873 = vsel %vm858, %v853, %v855
    %v874 = vsel %vm858, %v855, %v857
    %vm891 = vcmask 130048
    %v893 = vsel %vm891, %v803, 0
    %895 = vmatpush.msra.mxu0 0.0
    %896 = vmatpush.msra.mxu0 0.0
    %897 = vmatpush.msra.mxu0 0.0
    %898 = vmatpush.msra.mxu0 0.0
    %899 = vmatpush.msra.mxu0 0.0
    %900 = vmatpush.msra.mxu0 0.0
    %901 = vmatpush.msra.mxu0 0.0
    %902 = vmatpush.msra.mxu0 0.0
    %903 = vmatpush.msra.mxu0 0.0
    %904 = vmatpush.msra.mxu0 0.0
    %905 = vmatpush.msra.mxu0 0.0
    %906 = vmatpush.msra.mxu0 0.0
    %907 = vmatpush.msra.mxu0 0.0
    %908 = vmatpush.msra.mxu0 0.0
    %909 = vmatpush.msra.mxu0 %v867
    %910 = vmatpush.msra.mxu0 %v859
    %911 = vmatmul.f32.gmra.mxu0 %v893
    %v912 = vpop.f32.mrf.mxu0
    %v913 = vadd.f32 0.0, %v912
    %914 = vdwg.mxu0
    %915 = vmatpush.msra.mxu0 0.0
    %916 = vmatpush.msra.mxu0 0.0
    %917 = vmatpush.msra.mxu0 0.0
    %918 = vmatpush.msra.mxu0 0.0
    %919 = vmatpush.msra.mxu0 0.0
    %920 = vmatpush.msra.mxu0 0.0
    %921 = vmatpush.msra.mxu0 0.0
    %922 = vmatpush.msra.mxu0 0.0
    %923 = vmatpush.msra.mxu0 0.0
    %924 = vmatpush.msra.mxu0 0.0
    %925 = vmatpush.msra.mxu0 0.0
    %926 = vmatpush.msra.mxu0 0.0
    %927 = vmatpush.msra.mxu0 0.0
    %928 = vmatpush.msra.mxu0 0.0
    %929 = vmatpush.msra.mxu0 %v868
    %930 = vmatpush.msra.mxu0 %v860
    %931 = vmatmul.f32.gmra.mxu0 %v893
    %v932 = vpop.f32.mrf.mxu0
    %v933 = vadd.f32 0.0, %v932
    %934 = vdwg.mxu0
    %935 = vmatpush.msra.mxu0 0.0
    %936 = vmatpush.msra.mxu0 0.0
    %937 = vmatpush.msra.mxu0 0.0
    %938 = vmatpush.msra.mxu0 0.0
    %939 = vmatpush.msra.mxu0 0.0
    %940 = vmatpush.msra.mxu0 0.0
    %941 = vmatpush.msra.mxu0 0.0
    %942 = vmatpush.msra.mxu0 0.0
    %943 = vmatpush.msra.mxu0 0.0
    %944 = vmatpush.msra.mxu0 0.0
    %945 = vmatpush.msra.mxu0 0.0
    %946 = vmatpush.msra.mxu0 0.0
    %947 = vmatpush.msra.mxu0 0.0
    %948 = vmatpush.msra.mxu0 0.0
    %949 = vmatpush.msra.mxu0 %v869
    %950 = vmatpush.msra.mxu0 %v861
    %951 = vmatmul.f32.gmra.mxu0 %v893
    %v952 = vpop.f32.mrf.mxu0
    %v953 = vadd.f32 0.0, %v952
    %954 = vdwg.mxu0
    %955 = vmatpush.msra.mxu0 0.0
    %956 = vmatpush.msra.mxu0 0.0
    %957 = vmatpush.msra.mxu0 0.0
    %958 = vmatpush.msra.mxu0 0.0
    %959 = vmatpush.msra.mxu0 0.0
    %960 = vmatpush.msra.mxu0 0.0
    %961 = vmatpush.msra.mxu0 0.0
    %962 = vmatpush.msra.mxu0 0.0
    %963 = vmatpush.msra.mxu0 0.0
    %964 = vmatpush.msra.mxu0 0.0
    %965 = vmatpush.msra.mxu0 0.0
    %966 = vmatpush.msra.mxu0 0.0
    %967 = vmatpush.msra.mxu0 0.0
    %968 = vmatpush.msra.mxu0 0.0
    %969 = vmatpush.msra.mxu0 %v870
    %970 = vmatpush.msra.mxu0 %v862
    %971 = vmatmul.f32.gmra.mxu0 %v893
    %v972 = vpop.f32.mrf.mxu0
    %v973 = vadd.f32 0.0, %v972
    %974 = vdwg.mxu0
    %975 = vmatpush.msra.mxu0 0.0
    %976 = vmatpush.msra.mxu0 0.0
    %977 = vmatpush.msra.mxu0 0.0
    %978 = vmatpush.msra.mxu0 0.0
    %979 = vmatpush.msra.mxu0 0.0
    %980 = vmatpush.msra.mxu0 0.0
    %981 = vmatpush.msra.mxu0 0.0
    %982 = vmatpush.msra.mxu0 0.0
    %983 = vmatpush.msra.mxu0 0.0
    %984 = vmatpush.msra.mxu0 0.0
    %985 = vmatpush.msra.mxu0 0.0
    %986 = vmatpush.msra.mxu0 0.0
    %987 = vmatpush.msra.mxu0 0.0
    %988 = vmatpush.msra.mxu0 0.0
    %989 = vmatpush.msra.mxu0 %v871
    %990 = vmatpush.msra.mxu0 %v863
    %991 = vmatmul.f32.gmra.mxu0 %v893
    %v992 = vpop.f32.mrf.mxu0
    %v993 = vadd.f32 0.0, %v992
    %994 = vdwg.mxu0
    %995 = vmatpush.msra.mxu0 0.0
    %996 = vmatpush.msra.mxu0 0.0
    %997 = vmatpush.msra.mxu0 0.0
    %998 = vmatpush.msra.mxu0 0.0
    %999 = vmatpush.msra.mxu0 0.0
    %1000 = vmatpush.msra.mxu0 0.0
    %1001 = vmatpush.msra.mxu0 0.0
    %1002 = vmatpush.msra.mxu0 0.0
    %1003 = vmatpush.msra.mxu0 0.0
    %1004 = vmatpush.msra.mxu0 0.0
    %1005 = vmatpush.msra.mxu0 0.0
    %1006 = vmatpush.msra.mxu0 0.0
    %1007 = vmatpush.msra.mxu0 0.0
    %1008 = vmatpush.msra.mxu0 0.0
    %1009 = vmatpush.msra.mxu0 %v872
    %1010 = vmatpush.msra.mxu0 %v864
    %1011 = vmatmul.f32.gmra.mxu0 %v893
    %v1012 = vpop.f32.mrf.mxu0
    %v1013 = vadd.f32 0.0, %v1012
    %1014 = vdwg.mxu0
    %1015 = vmatpush.msra.mxu0 0.0
    %1016 = vmatpush.msra.mxu0 0.0
    %1017 = vmatpush.msra.mxu0 0.0
    %1018 = vmatpush.msra.mxu0 0.0
    %1019 = vmatpush.msra.mxu0 0.0
    %1020 = vmatpush.msra.mxu0 0.0
    %1021 = vmatpush.msra.mxu0 0.0
    %1022 = vmatpush.msra.mxu0 0.0
    %1023 = vmatpush.msra.mxu0 0.0
    %1024 = vmatpush.msra.mxu0 0.0
    %1025 = vmatpush.msra.mxu0 0.0
    %1026 = vmatpush.msra.mxu0 0.0
    %1027 = vmatpush.msra.mxu0 0.0
    %1028 = vmatpush.msra.mxu0 0.0
    %1029 = vmatpush.msra.mxu0 %v873
    %1030 = vmatpush.msra.mxu0 %v865
    %1031 = vmatmul.f32.gmra.mxu0 %v893
    %v1032 = vpop.f32.mrf.mxu0
    %v1033 = vadd.f32 0.0, %v1032
    %1034 = vdwg.mxu0
    %1035 = vmatpush.msra.mxu0 0.0
    %1036 = vmatpush.msra.mxu0 0.0
    %1037 = vmatpush.msra.mxu0 0.0
    %1038 = vmatpush.msra.mxu0 0.0
    %1039 = vmatpush.msra.mxu0 0.0
    %1040 = vmatpush.msra.mxu0 0.0
    %1041 = vmatpush.msra.mxu0 0.0
    %1042 = vmatpush.msra.mxu0 0.0
    %1043 = vmatpush.msra.mxu0 0.0
    %1044 = vmatpush.msra.mxu0 0.0
    %1045 = vmatpush.msra.mxu0 0.0
    %1046 = vmatpush.msra.mxu0 0.0
    %1047 = vmatpush.msra.mxu0 0.0
    %1048 = vmatpush.msra.mxu0 0.0
    %1049 = vmatpush.msra.mxu0 %v874
    %1050 = vmatpush.msra.mxu0 %v866
    %1051 = vmatmul.f32.gmra.mxu0 %v893
    %v1052 = vpop.f32.mrf.mxu0
    %v1053 = vadd.f32 0.0, %v1052
    %1054 = vdwg.mxu0
    %v1056 = vsel %vm891, %v799, 0
    %1058 = vmatpush.msra.mxu0 0.0
    %1059 = vmatpush.msra.mxu0 0.0
    %1060 = vmatpush.msra.mxu0 0.0
    %1061 = vmatpush.msra.mxu0 0.0
    %1062 = vmatpush.msra.mxu0 0.0
    %1063 = vmatpush.msra.mxu0 0.0
    %1064 = vmatpush.msra.mxu0 0.0
    %1065 = vmatpush.msra.mxu0 0.0
    %1066 = vmatpush.msra.mxu0 0.0
    %1067 = vmatpush.msra.mxu0 0.0
    %1068 = vmatpush.msra.mxu0 0.0
    %1069 = vmatpush.msra.mxu0 0.0
    %1070 = vmatpush.msra.mxu0 0.0
    %1071 = vmatpush.msra.mxu0 0.0
    %1072 = vmatpush.msra.mxu0 %v791
    %1073 = vmatpush.msra.mxu0 %v783
    %1074 = vmatmul.f32.gmra.mxu0 %v1056
    %v1075 = vpop.f32.mrf.mxu0
    %v1076 = vadd.f32 %v913, %v1075
    %1077 = vdwg.mxu0
    %1078 = vmatpush.msra.mxu0 0.0
    %1079 = vmatpush.msra.mxu0 0.0
    %1080 = vmatpush.msra.mxu0 0.0
    %1081 = vmatpush.msra.mxu0 0.0
    %1082 = vmatpush.msra.mxu0 0.0
    %1083 = vmatpush.msra.mxu0 0.0
    %1084 = vmatpush.msra.mxu0 0.0
    %1085 = vmatpush.msra.mxu0 0.0
    %1086 = vmatpush.msra.mxu0 0.0
    %1087 = vmatpush.msra.mxu0 0.0
    %1088 = vmatpush.msra.mxu0 0.0
    %1089 = vmatpush.msra.mxu0 0.0
    %1090 = vmatpush.msra.mxu0 0.0
    %1091 = vmatpush.msra.mxu0 0.0
    %1092 = vmatpush.msra.mxu0 %v792
    %1093 = vmatpush.msra.mxu0 %v784
    %1094 = vmatmul.f32.gmra.mxu0 %v1056
    %v1095 = vpop.f32.mrf.mxu0
    %v1096 = vadd.f32 %v933, %v1095
    %1097 = vdwg.mxu0
    %1098 = vmatpush.msra.mxu0 0.0
    %1099 = vmatpush.msra.mxu0 0.0
    %1100 = vmatpush.msra.mxu0 0.0
    %1101 = vmatpush.msra.mxu0 0.0
    %1102 = vmatpush.msra.mxu0 0.0
    %1103 = vmatpush.msra.mxu0 0.0
    %1104 = vmatpush.msra.mxu0 0.0
    %1105 = vmatpush.msra.mxu0 0.0
    %1106 = vmatpush.msra.mxu0 0.0
    %1107 = vmatpush.msra.mxu0 0.0
    %1108 = vmatpush.msra.mxu0 0.0
    %1109 = vmatpush.msra.mxu0 0.0
    %1110 = vmatpush.msra.mxu0 0.0
    %1111 = vmatpush.msra.mxu0 0.0
    %1112 = vmatpush.msra.mxu0 %v793
    %1113 = vmatpush.msra.mxu0 %v785
    %1114 = vmatmul.f32.gmra.mxu0 %v1056
    %v1115 = vpop.f32.mrf.mxu0
    %v1116 = vadd.f32 %v953, %v1115
    %1117 = vdwg.mxu0
    %1118 = vmatpush.msra.mxu0 0.0
    %1119 = vmatpush.msra.mxu0 0.0
    %1120 = vmatpush.msra.mxu0 0.0
    %1121 = vmatpush.msra.mxu0 0.0
    %1122 = vmatpush.msra.mxu0 0.0
    %1123 = vmatpush.msra.mxu0 0.0
    %1124 = vmatpush.msra.mxu0 0.0
    %1125 = vmatpush.msra.mxu0 0.0
    %1126 = vmatpush.msra.mxu0 0.0
    %1127 = vmatpush.msra.mxu0 0.0
    %1128 = vmatpush.msra.mxu0 0.0
    %1129 = vmatpush.msra.mxu0 0.0
    %1130 = vmatpush.msra.mxu0 0.0
    %1131 = vmatpush.msra.mxu0 0.0
    %1132 = vmatpush.msra.mxu0 %v794
    %1133 = vmatpush.msra.mxu0 %v786
    %1134 = vmatmul.f32.gmra.mxu0 %v1056
    %v1135 = vpop.f32.mrf.mxu0
    %v1136 = vadd.f32 %v973, %v1135
    %1137 = vdwg.mxu0
    %1138 = vmatpush.msra.mxu0 0.0
    %1139 = vmatpush.msra.mxu0 0.0
    %1140 = vmatpush.msra.mxu0 0.0
    %1141 = vmatpush.msra.mxu0 0.0
    %1142 = vmatpush.msra.mxu0 0.0
    %1143 = vmatpush.msra.mxu0 0.0
    %1144 = vmatpush.msra.mxu0 0.0
    %1145 = vmatpush.msra.mxu0 0.0
    %1146 = vmatpush.msra.mxu0 0.0
    %1147 = vmatpush.msra.mxu0 0.0
    %1148 = vmatpush.msra.mxu0 0.0
    %1149 = vmatpush.msra.mxu0 0.0
    %1150 = vmatpush.msra.mxu0 0.0
    %1151 = vmatpush.msra.mxu0 0.0
    %1152 = vmatpush.msra.mxu0 %v795
    %1153 = vmatpush.msra.mxu0 %v787
    %1154 = vmatmul.f32.gmra.mxu0 %v1056
    %v1155 = vpop.f32.mrf.mxu0
    %v1156 = vadd.f32 %v993, %v1155
    %1157 = vdwg.mxu0
    %1158 = vmatpush.msra.mxu0 0.0
    %1159 = vmatpush.msra.mxu0 0.0
    %1160 = vmatpush.msra.mxu0 0.0
    %1161 = vmatpush.msra.mxu0 0.0
    %1162 = vmatpush.msra.mxu0 0.0
    %1163 = vmatpush.msra.mxu0 0.0
    %1164 = vmatpush.msra.mxu0 0.0
    %1165 = vmatpush.msra.mxu0 0.0
    %1166 = vmatpush.msra.mxu0 0.0
    %1167 = vmatpush.msra.mxu0 0.0
    %1168 = vmatpush.msra.mxu0 0.0
    %1169 = vmatpush.msra.mxu0 0.0
    %1170 = vmatpush.msra.mxu0 0.0
    %1171 = vmatpush.msra.mxu0 0.0
    %1172 = vmatpush.msra.mxu0 %v796
    %1173 = vmatpush.msra.mxu0 %v788
    %1174 = vmatmul.f32.gmra.mxu0 %v1056
    %v1175 = vpop.f32.mrf.mxu0
    %v1176 = vadd.f32 %v1013, %v1175
    %1177 = vdwg.mxu0
    %1178 = vmatpush.msra.mxu0 0.0
    %1179 = vmatpush.msra.mxu0 0.0
    %1180 = vmatpush.msra.mxu0 0.0
    %1181 = vmatpush.msra.mxu0 0.0
    %1182 = vmatpush.msra.mxu0 0.0
    %1183 = vmatpush.msra.mxu0 0.0
    %1184 = vmatpush.msra.mxu0 0.0
    %1185 = vmatpush.msra.mxu0 0.0
    %1186 = vmatpush.msra.mxu0 0.0
    %1187 = vmatpush.msra.mxu0 0.0
    %1188 = vmatpush.msra.mxu0 0.0
    %1189 = vmatpush.msra.mxu0 0.0
    %1190 = vmatpush.msra.mxu0 0.0
    %1191 = vmatpush.msra.mxu0 0.0
    %1192 = vmatpush.msra.mxu0 %v797
    %1193 = vmatpush.msra.mxu0 %v789
    %1194 = vmatmul.f32.gmra.mxu0 %v1056
    %v1195 = vpop.f32.mrf.mxu0
    %v1196 = vadd.f32 %v1033, %v1195
    %1197 = vdwg.mxu0
    %1198 = vmatpush.msra.mxu0 0.0
    %1199 = vmatpush.msra.mxu0 0.0
    %1200 = vmatpush.msra.mxu0 0.0
    %1201 = vmatpush.msra.mxu0 0.0
    %1202 = vmatpush.msra.mxu0 0.0
    %1203 = vmatpush.msra.mxu0 0.0
    %1204 = vmatpush.msra.mxu0 0.0
    %1205 = vmatpush.msra.mxu0 0.0
    %1206 = vmatpush.msra.mxu0 0.0
    %1207 = vmatpush.msra.mxu0 0.0
    %1208 = vmatpush.msra.mxu0 0.0
    %1209 = vmatpush.msra.mxu0 0.0
    %1210 = vmatpush.msra.mxu0 0.0
    %1211 = vmatpush.msra.mxu0 0.0
    %1212 = vmatpush.msra.mxu0 %v798
    %1213 = vmatpush.msra.mxu0 %v790
    %1214 = vmatmul.f32.gmra.mxu0 %v1056
    %v1215 = vpop.f32.mrf.mxu0
    %v1216 = vadd.f32 %v1053, %v1215
    %1217 = vdwg.mxu0
    %s1218 = scalar_lea.vmem [#allocation6], 1
    %v1219 = vld [vmem:[%s1218] ss:$2 sm:$0xff]
    %v1221 = vperm.slane %v1219, 0
    %v1222 = vperm.slane %v1219, 1
    %v1223 = vperm.slane %v1219, 2
    %v1224 = vperm.slane %v1219, 3
    %v1225 = vperm.slane %v1219, 4
    %v1226 = vperm.slane %v1219, 5
    %v1227 = vperm.slane %v1219, 6
    %v1228 = vperm.slane %v1219, 7
    %1229 = vrot.lane.b32.xlu0 %v1221, 2
    %v1230 = vpop.permute.xlu0 %1229
    %1231 = vrot.lane.b32.xlu0 %v1222, 2
    %v1232 = vpop.permute.xlu0 %1231
    %1233 = vrot.lane.b32.xlu0 %v1223, 2
    %v1234 = vpop.permute.xlu0 %1233
    %1235 = vrot.lane.b32.xlu0 %v1224, 2
    %v1236 = vpop.permute.xlu0 %1235
    %1237 = vrot.lane.b32.xlu0 %v1225, 2
    %v1238 = vpop.permute.xlu0 %1237
    %1239 = vrot.lane.b32.xlu0 %v1226, 2
    %v1240 = vpop.permute.xlu0 %1239
    %1241 = vrot.lane.b32.xlu0 %v1227, 2
    %v1242 = vpop.permute.xlu0 %1241
    %1243 = vrot.lane.b32.xlu0 %v1228, 2
    %v1244 = vpop.permute.xlu0 %1243
    %vm1245 = vcmask 15360
    %v1246 = vsel %vm1245, %v1230, %v1232
    %v1247 = vsel %vm1245, %v1232, %v1234
    %v1248 = vsel %vm1245, %v1234, %v1236
    %v1249 = vsel %vm1245, %v1236, %v1238
    %v1250 = vsel %vm1245, %v1238, %v1240
    %v1251 = vsel %vm1245, %v1240, %v1242
    %v1252 = vsel %vm1245, %v1242, %v1244
    %v1262 = vmul.f32 %v749, %v1230
    %v1263 = vmul.f32 %v750, %v1246
    %v1264 = vmul.f32 %v751, %v1247
    %v1265 = vmul.f32 %v752, %v1248
    %v1266 = vmul.f32 %v753, %v1249
    %v1267 = vmul.f32 %v754, %v1250
    %v1268 = vmul.f32 %v755, %v1251
    %v1269 = vmul.f32 %v756, %v1252
    %v1270 = vmul.f32 %v800, %v1244
    %v1271 = vmul.f32 %v757, %v1230
    %v1272 = vmul.f32 %v758, %v1246
    %v1273 = vmul.f32 %v759, %v1247
    %v1274 = vmul.f32 %v760, %v1248
    %v1275 = vmul.f32 %v761, %v1249
    %v1276 = vmul.f32 %v762, %v1250
    %v1277 = vmul.f32 %v763, %v1251
    %v1278 = vmul.f32 %v764, %v1252
    %v1279 = vmul.f32 %v801, %v1244
    %s1280 = scalar_lea.vmem %s4, 16
    %v1281 = vld [vmem:[%s1280] sm:$0xff]
    %1300 = vrot.lane.b32.xlu0 %v1262, 126
    %v1301 = vpop.permute.xlu0 %1300
    %1302 = vrot.lane.b32.xlu0 %v1263, 126
    %v1303 = vpop.permute.xlu0 %1302
    %1304 = vrot.lane.b32.xlu0 %v1264, 126
    %v1305 = vpop.permute.xlu0 %1304
    %1306 = vrot.lane.b32.xlu0 %v1265, 126
    %v1307 = vpop.permute.xlu0 %1306
    %1308 = vrot.lane.b32.xlu0 %v1266, 126
    %v1309 = vpop.permute.xlu0 %1308
    %1310 = vrot.lane.b32.xlu0 %v1267, 126
    %v1311 = vpop.permute.xlu0 %1310
    %1312 = vrot.lane.b32.xlu0 %v1268, 126
    %v1313 = vpop.permute.xlu0 %1312
    %1314 = vrot.lane.b32.xlu0 %v1269, 126
    %v1315 = vpop.permute.xlu0 %1314
    %1316 = vrot.lane.b32.xlu0 %v1270, 126
    %v1317 = vpop.permute.xlu0 %1316
    %1318 = vrot.lane.b32.xlu0 %v1271, 126
    %v1319 = vpop.permute.xlu0 %1318
    %1320 = vrot.lane.b32.xlu0 %v1272, 126
    %v1321 = vpop.permute.xlu0 %1320
    %1322 = vrot.lane.b32.xlu0 %v1273, 126
    %v1323 = vpop.permute.xlu0 %1322
    %1324 = vrot.lane.b32.xlu0 %v1274, 126
    %v1325 = vpop.permute.xlu0 %1324
    %1326 = vrot.lane.b32.xlu0 %v1275, 126
    %v1327 = vpop.permute.xlu0 %1326
    %1328 = vrot.lane.b32.xlu0 %v1276, 126
    %v1329 = vpop.permute.xlu0 %1328
    %1330 = vrot.lane.b32.xlu0 %v1277, 126
    %v1331 = vpop.permute.xlu0 %1330
    %1332 = vrot.lane.b32.xlu0 %v1278, 126
    %v1333 = vpop.permute.xlu0 %1332
    %1334 = vrot.lane.b32.xlu0 %v1279, 126
    %v1335 = vpop.permute.xlu0 %1334
    %vm1336 = vcmask 1031168
    %v1337 = vsel %vm1336, %v1301, %v1303
    %v1338 = vsel %vm1336, %v1303, %v1305
    %v1339 = vsel %vm1336, %v1305, %v1307
    %v1340 = vsel %vm1336, %v1307, %v1309
    %v1341 = vsel %vm1336, %v1309, %v1311
    %v1342 = vsel %vm1336, %v1311, %v1313
    %v1343 = vsel %vm1336, %v1313, %v1315
    %v1344 = vsel %vm1336, %v1315, %v1317
    %v1345 = vsel %vm1336, %v1319, %v1321
    %v1346 = vsel %vm1336, %v1321, %v1323
    %v1347 = vsel %vm1336, %v1323, %v1325
    %v1348 = vsel %vm1336, %v1325, %v1327
    %v1349 = vsel %vm1336, %v1327, %v1329
    %v1350 = vsel %vm1336, %v1329, %v1331
    %v1351 = vsel %vm1336, %v1331, %v1333
    %v1352 = vsel %vm1336, %v1333, %v1335
    %v1370 = vsel %vm891, %v1281, 0
    %1372 = vmatpush.msra.mxu0 0.0
    %1373 = vmatpush.msra.mxu0 0.0
    %1374 = vmatpush.msra.mxu0 0.0
    %1375 = vmatpush.msra.mxu0 0.0
    %1376 = vmatpush.msra.mxu0 0.0
    %1377 = vmatpush.msra.mxu0 0.0
    %1378 = vmatpush.msra.mxu0 0.0
    %1379 = vmatpush.msra.mxu0 0.0
    %1380 = vmatpush.msra.mxu0 0.0
    %1381 = vmatpush.msra.mxu0 0.0
    %1382 = vmatpush.msra.mxu0 0.0
    %1383 = vmatpush.msra.mxu0 0.0
    %1384 = vmatpush.msra.mxu0 0.0
    %1385 = vmatpush.msra.mxu0 0.0
    %1386 = vmatpush.msra.mxu0 %v1345
    %1387 = vmatpush.msra.mxu0 %v1337
    %1388 = vmatmul.f32.gmra.mxu0 %v1370
    %v1389 = vpop.f32.mrf.mxu0
    %v1390 = vadd.f32 0.0, %v1389
    %1391 = vdwg.mxu0
    %1392 = vmatpush.msra.mxu0 0.0
    %1393 = vmatpush.msra.mxu0 0.0
    %1394 = vmatpush.msra.mxu0 0.0
    %1395 = vmatpush.msra.mxu0 0.0
    %1396 = vmatpush.msra.mxu0 0.0
    %1397 = vmatpush.msra.mxu0 0.0
    %1398 = vmatpush.msra.mxu0 0.0
    %1399 = vmatpush.msra.mxu0 0.0
    %1400 = vmatpush.msra.mxu0 0.0
    %1401 = vmatpush.msra.mxu0 0.0
    %1402 = vmatpush.msra.mxu0 0.0
    %1403 = vmatpush.msra.mxu0 0.0
    %1404 = vmatpush.msra.mxu0 0.0
    %1405 = vmatpush.msra.mxu0 0.0
    %1406 = vmatpush.msra.mxu0 %v1346
    %1407 = vmatpush.msra.mxu0 %v1338
    %1408 = vmatmul.f32.gmra.mxu0 %v1370
    %v1409 = vpop.f32.mrf.mxu0
    %v1410 = vadd.f32 0.0, %v1409
    %1411 = vdwg.mxu0
    %1412 = vmatpush.msra.mxu0 0.0
    %1413 = vmatpush.msra.mxu0 0.0
    %1414 = vmatpush.msra.mxu0 0.0
    %1415 = vmatpush.msra.mxu0 0.0
    %1416 = vmatpush.msra.mxu0 0.0
    %1417 = vmatpush.msra.mxu0 0.0
    %1418 = vmatpush.msra.mxu0 0.0
    %1419 = vmatpush.msra.mxu0 0.0
    %1420 = vmatpush.msra.mxu0 0.0
    %1421 = vmatpush.msra.mxu0 0.0
    %1422 = vmatpush.msra.mxu0 0.0
    %1423 = vmatpush.msra.mxu0 0.0
    %1424 = vmatpush.msra.mxu0 0.0
    %1425 = vmatpush.msra.mxu0 0.0
    %1426 = vmatpush.msra.mxu0 %v1347
    %1427 = vmatpush.msra.mxu0 %v1339
    %1428 = vmatmul.f32.gmra.mxu0 %v1370
    %v1429 = vpop.f32.mrf.mxu0
    %v1430 = vadd.f32 0.0, %v1429
    %1431 = vdwg.mxu0
    %1432 = vmatpush.msra.mxu0 0.0
    %1433 = vmatpush.msra.mxu0 0.0
    %1434 = vmatpush.msra.mxu0 0.0
    %1435 = vmatpush.msra.mxu0 0.0
    %1436 = vmatpush.msra.mxu0 0.0
    %1437 = vmatpush.msra.mxu0 0.0
    %1438 = vmatpush.msra.mxu0 0.0
    %1439 = vmatpush.msra.mxu0 0.0
    %1440 = vmatpush.msra.mxu0 0.0
    %1441 = vmatpush.msra.mxu0 0.0
    %1442 = vmatpush.msra.mxu0 0.0
    %1443 = vmatpush.msra.mxu0 0.0
    %1444 = vmatpush.msra.mxu0 0.0
    %1445 = vmatpush.msra.mxu0 0.0
    %1446 = vmatpush.msra.mxu0 %v1348
    %1447 = vmatpush.msra.mxu0 %v1340
    %1448 = vmatmul.f32.gmra.mxu0 %v1370
    %v1449 = vpop.f32.mrf.mxu0
    %v1450 = vadd.f32 0.0, %v1449
    %1451 = vdwg.mxu0
    %1452 = vmatpush.msra.mxu0 0.0
    %1453 = vmatpush.msra.mxu0 0.0
    %1454 = vmatpush.msra.mxu0 0.0
    %1455 = vmatpush.msra.mxu0 0.0
    %1456 = vmatpush.msra.mxu0 0.0
    %1457 = vmatpush.msra.mxu0 0.0
    %1458 = vmatpush.msra.mxu0 0.0
    %1459 = vmatpush.msra.mxu0 0.0
    %1460 = vmatpush.msra.mxu0 0.0
    %1461 = vmatpush.msra.mxu0 0.0
    %1462 = vmatpush.msra.mxu0 0.0
    %1463 = vmatpush.msra.mxu0 0.0
    %1464 = vmatpush.msra.mxu0 0.0
    %1465 = vmatpush.msra.mxu0 0.0
    %1466 = vmatpush.msra.mxu0 %v1349
    %1467 = vmatpush.msra.mxu0 %v1341
    %1468 = vmatmul.f32.gmra.mxu0 %v1370
    %v1469 = vpop.f32.mrf.mxu0
    %v1470 = vadd.f32 0.0, %v1469
    %1471 = vdwg.mxu0
    %1472 = vmatpush.msra.mxu0 0.0
    %1473 = vmatpush.msra.mxu0 0.0
    %1474 = vmatpush.msra.mxu0 0.0
    %1475 = vmatpush.msra.mxu0 0.0
    %1476 = vmatpush.msra.mxu0 0.0
    %1477 = vmatpush.msra.mxu0 0.0
    %1478 = vmatpush.msra.mxu0 0.0
    %1479 = vmatpush.msra.mxu0 0.0
    %1480 = vmatpush.msra.mxu0 0.0
    %1481 = vmatpush.msra.mxu0 0.0
    %1482 = vmatpush.msra.mxu0 0.0
    %1483 = vmatpush.msra.mxu0 0.0
    %1484 = vmatpush.msra.mxu0 0.0
    %1485 = vmatpush.msra.mxu0 0.0
    %1486 = vmatpush.msra.mxu0 %v1350
    %1487 = vmatpush.msra.mxu0 %v1342
    %1488 = vmatmul.f32.gmra.mxu0 %v1370
    %v1489 = vpop.f32.mrf.mxu0
    %v1490 = vadd.f32 0.0, %v1489
    %1491 = vdwg.mxu0
    %1492 = vmatpush.msra.mxu0 0.0
    %1493 = vmatpush.msra.mxu0 0.0
    %1494 = vmatpush.msra.mxu0 0.0
    %1495 = vmatpush.msra.mxu0 0.0
    %1496 = vmatpush.msra.mxu0 0.0
    %1497 = vmatpush.msra.mxu0 0.0
    %1498 = vmatpush.msra.mxu0 0.0
    %1499 = vmatpush.msra.mxu0 0.0
    %1500 = vmatpush.msra.mxu0 0.0
    %1501 = vmatpush.msra.mxu0 0.0
    %1502 = vmatpush.msra.mxu0 0.0
    %1503 = vmatpush.msra.mxu0 0.0
    %1504 = vmatpush.msra.mxu0 0.0
    %1505 = vmatpush.msra.mxu0 0.0
    %1506 = vmatpush.msra.mxu0 %v1351
    %1507 = vmatpush.msra.mxu0 %v1343
    %1508 = vmatmul.f32.gmra.mxu0 %v1370
    %v1509 = vpop.f32.mrf.mxu0
    %v1510 = vadd.f32 0.0, %v1509
    %1511 = vdwg.mxu0
    %1512 = vmatpush.msra.mxu0 0.0
    %1513 = vmatpush.msra.mxu0 0.0
    %1514 = vmatpush.msra.mxu0 0.0
    %1515 = vmatpush.msra.mxu0 0.0
    %1516 = vmatpush.msra.mxu0 0.0
    %1517 = vmatpush.msra.mxu0 0.0
    %1518 = vmatpush.msra.mxu0 0.0
    %1519 = vmatpush.msra.mxu0 0.0
    %1520 = vmatpush.msra.mxu0 0.0
    %1521 = vmatpush.msra.mxu0 0.0
    %1522 = vmatpush.msra.mxu0 0.0
    %1523 = vmatpush.msra.mxu0 0.0
    %1524 = vmatpush.msra.mxu0 0.0
    %1525 = vmatpush.msra.mxu0 0.0
    %1526 = vmatpush.msra.mxu0 %v1352
    %1527 = vmatpush.msra.mxu0 %v1344
    %1528 = vmatmul.f32.gmra.mxu0 %v1370
    %v1529 = vpop.f32.mrf.mxu0
    %v1530 = vadd.f32 0.0, %v1529
    %1531 = vdwg.mxu0
    %v1532 = vadd.f32 %v1076, %v1390
    %v1533 = vadd.f32 %v1096, %v1410
    %v1534 = vadd.f32 %v1116, %v1430
    %v1535 = vadd.f32 %v1136, %v1450
    %v1536 = vadd.f32 %v1156, %v1470
    %v1537 = vadd.f32 %v1176, %v1490
    %v1538 = vadd.f32 %v1196, %v1510
    %v1539 = vadd.f32 %v1216, %v1530
    %1540 = vrot.lane.b32.xlu0 %v767, 32
    %v1541 = vpop.permute.xlu0 %1540
    %1542 = vrot.lane.b32.xlu0 %v768, 32
    %v1543 = vpop.permute.xlu0 %1542
    %1544 = vrot.lane.b32.xlu0 %v769, 32
    %v1545 = vpop.permute.xlu0 %1544
    %1546 = vrot.lane.b32.xlu0 %v770, 32
    %v1547 = vpop.permute.xlu0 %1546
    %1548 = vrot.lane.b32.xlu0 %v771, 32
    %v1549 = vpop.permute.xlu0 %1548
    %1550 = vrot.lane.b32.xlu0 %v772, 32
    %v1551 = vpop.permute.xlu0 %1550
    %1552 = vrot.lane.b32.xlu0 %v773, 32
    %v1553 = vpop.permute.xlu0 %1552
    %1554 = vrot.lane.b32.xlu0 %v774, 32
    %v1555 = vpop.permute.xlu0 %1554
    %vm1556 = vcmask 261120
    %v1557 = vsel %vm1556, %v1541, %v1543
    %v1558 = vsel %vm1556, %v1543, %v1545
    %v1559 = vsel %vm1556, %v1545, %v1547
    %v1560 = vsel %vm1556, %v1547, %v1549
    %v1561 = vsel %vm1556, %v1549, %v1551
    %v1562 = vsel %vm1556, %v1551, %v1553
    %v1563 = vsel %vm1556, %v1553, %v1555
    %v1573 = vmul.f32 %v749, %v1541
    %v1574 = vmul.f32 %v750, %v1557
    %v1575 = vmul.f32 %v751, %v1558
    %v1576 = vmul.f32 %v752, %v1559
    %v1577 = vmul.f32 %v753, %v1560
    %v1578 = vmul.f32 %v754, %v1561
    %v1579 = vmul.f32 %v755, %v1562
    %v1580 = vmul.f32 %v756, %v1563
    %v1581 = vmul.f32 %v800, %v1555
    %v1582 = vmul.f32 %v757, %v1541
    %v1583 = vmul.f32 %v758, %v1557
    %v1584 = vmul.f32 %v759, %v1558
    %v1585 = vmul.f32 %v760, %v1559
    %v1586 = vmul.f32 %v761, %v1560
    %v1587 = vmul.f32 %v762, %v1561
    %v1588 = vmul.f32 %v763, %v1562
    %v1589 = vmul.f32 %v764, %v1563
    %v1590 = vmul.f32 %v801, %v1555
    %s1591 = scalar_lea.vmem %s4, 24
    %v1592 = vld [vmem:[%s1591] sm:$0xff]
    %1611 = vrot.lane.b32.xlu0 %v1573, 96
    %v1612 = vpop.permute.xlu0 %1611
    %1613 = vrot.lane.b32.xlu0 %v1574, 96
    %v1614 = vpop.permute.xlu0 %1613
    %1615 = vrot.lane.b32.xlu0 %v1575, 96
    %v1616 = vpop.permute.xlu0 %1615
    %1617 = vrot.lane.b32.xlu0 %v1576, 96
    %v1618 = vpop.permute.xlu0 %1617
    %1619 = vrot.lane.b32.xlu0 %v1577, 96
    %v1620 = vpop.permute.xlu0 %1619
    %1621 = vrot.lane.b32.xlu0 %v1578, 96
    %v1622 = vpop.permute.xlu0 %1621
    %1623 = vrot.lane.b32.xlu0 %v1579, 96
    %v1624 = vpop.permute.xlu0 %1623
    %1625 = vrot.lane.b32.xlu0 %v1580, 96
    %v1626 = vpop.permute.xlu0 %1625
    %1627 = vrot.lane.b32.xlu0 %v1581, 96
    %v1628 = vpop.permute.xlu0 %1627
    %1629 = vrot.lane.b32.xlu0 %v1582, 96
    %v1630 = vpop.permute.xlu0 %1629
    %1631 = vrot.lane.b32.xlu0 %v1583, 96
    %v1632 = vpop.permute.xlu0 %1631
    %1633 = vrot.lane.b32.xlu0 %v1584, 96
    %v1634 = vpop.permute.xlu0 %1633
    %1635 = vrot.lane.b32.xlu0 %v1585, 96
    %v1636 = vpop.permute.xlu0 %1635
    %1637 = vrot.lane.b32.xlu0 %v1586, 96
    %v1638 = vpop.permute.xlu0 %1637
    %1639 = vrot.lane.b32.xlu0 %v1587, 96
    %v1640 = vpop.permute.xlu0 %1639
    %1641 = vrot.lane.b32.xlu0 %v1588, 96
    %v1642 = vpop.permute.xlu0 %1641
    %1643 = vrot.lane.b32.xlu0 %v1589, 96
    %v1644 = vpop.permute.xlu0 %1643
    %1645 = vrot.lane.b32.xlu0 %v1590, 96
    %v1646 = vpop.permute.xlu0 %1645
    %vm1647 = vcmask 785408
    %v1648 = vsel %vm1647, %v1612, %v1614
    %v1649 = vsel %vm1647, %v1614, %v1616
    %v1650 = vsel %vm1647, %v1616, %v1618
    %v1651 = vsel %vm1647, %v1618, %v1620
    %v1652 = vsel %vm1647, %v1620, %v1622
    %v1653 = vsel %vm1647, %v1622, %v1624
    %v1654 = vsel %vm1647, %v1624, %v1626
    %v1655 = vsel %vm1647, %v1626, %v1628
    %v1656 = vsel %vm1647, %v1630, %v1632
    %v1657 = vsel %vm1647, %v1632, %v1634
    %v1658 = vsel %vm1647, %v1634, %v1636
    %v1659 = vsel %vm1647, %v1636, %v1638
    %v1660 = vsel %vm1647, %v1638, %v1640
    %v1661 = vsel %vm1647, %v1640, %v1642
    %v1662 = vsel %vm1647, %v1642, %v1644
    %v1663 = vsel %vm1647, %v1644, %v1646
    %v1681 = vsel %vm891, %v1592, 0
    %1683 = vmatpush.msra.mxu0 0.0
    %1684 = vmatpush.msra.mxu0 0.0
    %1685 = vmatpush.msra.mxu0 0.0
    %1686 = vmatpush.msra.mxu0 0.0
    %1687 = vmatpush.msra.mxu0 0.0
    %1688 = vmatpush.msra.mxu0 0.0
    %1689 = vmatpush.msra.mxu0 0.0
    %1690 = vmatpush.msra.mxu0 0.0
    %1691 = vmatpush.msra.mxu0 0.0
    %1692 = vmatpush.msra.mxu0 0.0
    %1693 = vmatpush.msra.mxu0 0.0
    %1694 = vmatpush.msra.mxu0 0.0
    %1695 = vmatpush.msra.mxu0 0.0
    %1696 = vmatpush.msra.mxu0 0.0
    %1697 = vmatpush.msra.mxu0 %v1656
    %1698 = vmatpush.msra.mxu0 %v1648
    %1699 = vmatmul.f32.gmra.mxu0 %v1681
    %v1700 = vpop.f32.mrf.mxu0
    %v1701 = vadd.f32 0.0, %v1700
    %1702 = vdwg.mxu0
    %1703 = vmatpush.msra.mxu0 0.0
    %1704 = vmatpush.msra.mxu0 0.0
    %1705 = vmatpush.msra.mxu0 0.0
    %1706 = vmatpush.msra.mxu0 0.0
    %1707 = vmatpush.msra.mxu0 0.0
    %1708 = vmatpush.msra.mxu0 0.0
    %1709 = vmatpush.msra.mxu0 0.0
    %1710 = vmatpush.msra.mxu0 0.0
    %1711 = vmatpush.msra.mxu0 0.0
    %1712 = vmatpush.msra.mxu0 0.0
    %1713 = vmatpush.msra.mxu0 0.0
    %1714 = vmatpush.msra.mxu0 0.0
    %1715 = vmatpush.msra.mxu0 0.0
    %1716 = vmatpush.msra.mxu0 0.0
    %1717 = vmatpush.msra.mxu0 %v1657
    %1718 = vmatpush.msra.mxu0 %v1649
    %1719 = vmatmul.f32.gmra.mxu0 %v1681
    %v1720 = vpop.f32.mrf.mxu0
    %v1721 = vadd.f32 0.0, %v1720
    %1722 = vdwg.mxu0
    %1723 = vmatpush.msra.mxu0 0.0
    %1724 = vmatpush.msra.mxu0 0.0
    %1725 = vmatpush.msra.mxu0 0.0
    %1726 = vmatpush.msra.mxu0 0.0
    %1727 = vmatpush.msra.mxu0 0.0
    %1728 = vmatpush.msra.mxu0 0.0
    %1729 = vmatpush.msra.mxu0 0.0
    %1730 = vmatpush.msra.mxu0 0.0
    %1731 = vmatpush.msra.mxu0 0.0
    %1732 = vmatpush.msra.mxu0 0.0
    %1733 = vmatpush.msra.mxu0 0.0
    %1734 = vmatpush.msra.mxu0 0.0
    %1735 = vmatpush.msra.mxu0 0.0
    %1736 = vmatpush.msra.mxu0 0.0
    %1737 = vmatpush.msra.mxu0 %v1658
    %1738 = vmatpush.msra.mxu0 %v1650
    %1739 = vmatmul.f32.gmra.mxu0 %v1681
    %v1740 = vpop.f32.mrf.mxu0
    %v1741 = vadd.f32 0.0, %v1740
    %1742 = vdwg.mxu0
    %1743 = vmatpush.msra.mxu0 0.0
    %1744 = vmatpush.msra.mxu0 0.0
    %1745 = vmatpush.msra.mxu0 0.0
    %1746 = vmatpush.msra.mxu0 0.0
    %1747 = vmatpush.msra.mxu0 0.0
    %1748 = vmatpush.msra.mxu0 0.0
    %1749 = vmatpush.msra.mxu0 0.0
    %1750 = vmatpush.msra.mxu0 0.0
    %1751 = vmatpush.msra.mxu0 0.0
    %1752 = vmatpush.msra.mxu0 0.0
    %1753 = vmatpush.msra.mxu0 0.0
    %1754 = vmatpush.msra.mxu0 0.0
    %1755 = vmatpush.msra.mxu0 0.0
    %1756 = vmatpush.msra.mxu0 0.0
    %1757 = vmatpush.msra.mxu0 %v1659
    %1758 = vmatpush.msra.mxu0 %v1651
    %1759 = vmatmul.f32.gmra.mxu0 %v1681
    %v1760 = vpop.f32.mrf.mxu0
    %v1761 = vadd.f32 0.0, %v1760
    %1762 = vdwg.mxu0
    %1763 = vmatpush.msra.mxu0 0.0
    %1764 = vmatpush.msra.mxu0 0.0
    %1765 = vmatpush.msra.mxu0 0.0
    %1766 = vmatpush.msra.mxu0 0.0
    %1767 = vmatpush.msra.mxu0 0.0
    %1768 = vmatpush.msra.mxu0 0.0
    %1769 = vmatpush.msra.mxu0 0.0
    %1770 = vmatpush.msra.mxu0 0.0
    %1771 = vmatpush.msra.mxu0 0.0
    %1772 = vmatpush.msra.mxu0 0.0
    %1773 = vmatpush.msra.mxu0 0.0
    %1774 = vmatpush.msra.mxu0 0.0
    %1775 = vmatpush.msra.mxu0 0.0
    %1776 = vmatpush.msra.mxu0 0.0
    %1777 = vmatpush.msra.mxu0 %v1660
    %1778 = vmatpush.msra.mxu0 %v1652
    %1779 = vmatmul.f32.gmra.mxu0 %v1681
    %v1780 = vpop.f32.mrf.mxu0
    %v1781 = vadd.f32 0.0, %v1780
    %1782 = vdwg.mxu0
    %1783 = vmatpush.msra.mxu0 0.0
    %1784 = vmatpush.msra.mxu0 0.0
    %1785 = vmatpush.msra.mxu0 0.0
    %1786 = vmatpush.msra.mxu0 0.0
    %1787 = vmatpush.msra.mxu0 0.0
    %1788 = vmatpush.msra.mxu0 0.0
    %1789 = vmatpush.msra.mxu0 0.0
    %1790 = vmatpush.msra.mxu0 0.0
    %1791 = vmatpush.msra.mxu0 0.0
    %1792 = vmatpush.msra.mxu0 0.0
    %1793 = vmatpush.msra.mxu0 0.0
    %1794 = vmatpush.msra.mxu0 0.0
    %1795 = vmatpush.msra.mxu0 0.0
    %1796 = vmatpush.msra.mxu0 0.0
    %1797 = vmatpush.msra.mxu0 %v1661
    %1798 = vmatpush.msra.mxu0 %v1653
    %1799 = vmatmul.f32.gmra.mxu0 %v1681
    %v1800 = vpop.f32.mrf.mxu0
    %v1801 = vadd.f32 0.0, %v1800
    %1802 = vdwg.mxu0
    %1803 = vmatpush.msra.mxu0 0.0
    %1804 = vmatpush.msra.mxu0 0.0
    %1805 = vmatpush.msra.mxu0 0.0
    %1806 = vmatpush.msra.mxu0 0.0
    %1807 = vmatpush.msra.mxu0 0.0
    %1808 = vmatpush.msra.mxu0 0.0
    %1809 = vmatpush.msra.mxu0 0.0
    %1810 = vmatpush.msra.mxu0 0.0
    %1811 = vmatpush.msra.mxu0 0.0
    %1812 = vmatpush.msra.mxu0 0.0
    %1813 = vmatpush.msra.mxu0 0.0
    %1814 = vmatpush.msra.mxu0 0.0
    %1815 = vmatpush.msra.mxu0 0.0
    %1816 = vmatpush.msra.mxu0 0.0
    %1817 = vmatpush.msra.mxu0 %v1662
    %1818 = vmatpush.msra.mxu0 %v1654
    %1819 = vmatmul.f32.gmra.mxu0 %v1681
    %v1820 = vpop.f32.mrf.mxu0
    %v1821 = vadd.f32 0.0, %v1820
    %1822 = vdwg.mxu0
    %1823 = vmatpush.msra.mxu0 0.0
    %1824 = vmatpush.msra.mxu0 0.0
    %1825 = vmatpush.msra.mxu0 0.0
    %1826 = vmatpush.msra.mxu0 0.0
    %1827 = vmatpush.msra.mxu0 0.0
    %1828 = vmatpush.msra.mxu0 0.0
    %1829 = vmatpush.msra.mxu0 0.0
    %1830 = vmatpush.msra.mxu0 0.0
    %1831 = vmatpush.msra.mxu0 0.0
    %1832 = vmatpush.msra.mxu0 0.0
    %1833 = vmatpush.msra.mxu0 0.0
    %1834 = vmatpush.msra.mxu0 0.0
    %1835 = vmatpush.msra.mxu0 0.0
    %1836 = vmatpush.msra.mxu0 0.0
    %1837 = vmatpush.msra.mxu0 %v1663
    %1838 = vmatpush.msra.mxu0 %v1655
    %1839 = vmatmul.f32.gmra.mxu0 %v1681
    %v1840 = vpop.f32.mrf.mxu0
    %v1841 = vadd.f32 0.0, %v1840
    %1842 = vdwg.mxu0
    %v1843 = vadd.f32 %v1532, %v1701
    %v1844 = vadd.f32 %v1533, %v1721
    %v1845 = vadd.f32 %v1534, %v1741
    %v1846 = vadd.f32 %v1535, %v1761
    %v1847 = vadd.f32 %v1536, %v1781
    %v1848 = vadd.f32 %v1537, %v1801
    %v1849 = vadd.f32 %v1538, %v1821
    %v1850 = vadd.f32 %v1539, %v1841
    %s1851 = scalar_lea.vmem %s4, 32
    %v1852 = vld [vmem:[%s1851] sm:$0xff]
    %1853 = vrot.lane.b32.xlu0 %v749, 95
    %v1854 = vpop.permute.xlu0 %1853
    %1855 = vrot.lane.b32.xlu0 %v750, 95
    %v1856 = vpop.permute.xlu0 %1855
    %1857 = vrot.lane.b32.xlu0 %v751, 95
    %v1858 = vpop.permute.xlu0 %1857
    %1859 = vrot.lane.b32.xlu0 %v752, 95
    %v1860 = vpop.permute.xlu0 %1859
    %1861 = vrot.lane.b32.xlu0 %v753, 95
    %v1862 = vpop.permute.xlu0 %1861
    %1863 = vrot.lane.b32.xlu0 %v754, 95
    %v1864 = vpop.permute.xlu0 %1863
    %1865 = vrot.lane.b32.xlu0 %v755, 95
    %v1866 = vpop.permute.xlu0 %1865
    %1867 = vrot.lane.b32.xlu0 %v756, 95
    %v1868 = vpop.permute.xlu0 %1867
    %1869 = vrot.lane.b32.xlu0 %v800, 95
    %v1870 = vpop.permute.xlu0 %1869
    %1871 = vrot.lane.b32.xlu0 %v757, 95
    %v1872 = vpop.permute.xlu0 %1871
    %1873 = vrot.lane.b32.xlu0 %v758, 95
    %v1874 = vpop.permute.xlu0 %1873
    %1875 = vrot.lane.b32.xlu0 %v759, 95
    %v1876 = vpop.permute.xlu0 %1875
    %1877 = vrot.lane.b32.xlu0 %v760, 95
    %v1878 = vpop.permute.xlu0 %1877
    %1879 = vrot.lane.b32.xlu0 %v761, 95
    %v1880 = vpop.permute.xlu0 %1879
    %1881 = vrot.lane.b32.xlu0 %v762, 95
    %v1882 = vpop.permute.xlu0 %1881
    %1883 = vrot.lane.b32.xlu0 %v763, 95
    %v1884 = vpop.permute.xlu0 %1883
    %1885 = vrot.lane.b32.xlu0 %v764, 95
    %v1886 = vpop.permute.xlu0 %1885
    %1887 = vrot.lane.b32.xlu0 %v801, 95
    %v1888 = vpop.permute.xlu0 %1887
    %vm1889 = vcmask 777216
    %v1890 = vsel %vm1889, %v1854, %v1856
    %v1891 = vsel %vm1889, %v1856, %v1858
    %v1892 = vsel %vm1889, %v1858, %v1860
    %v1893 = vsel %vm1889, %v1860, %v1862
    %v1894 = vsel %vm1889, %v1862, %v1864
    %v1895 = vsel %vm1889, %v1864, %v1866
    %v1896 = vsel %vm1889, %v1866, %v1868
    %v1897 = vsel %vm1889, %v1868, %v1870
    %v1898 = vsel %vm1889, %v1872, %v1874
    %v1899 = vsel %vm1889, %v1874, %v1876
    %v1900 = vsel %vm1889, %v1876, %v1878
    %v1901 = vsel %vm1889, %v1878, %v1880
    %v1902 = vsel %vm1889, %v1880, %v1882
    %v1903 = vsel %vm1889, %v1882, %v1884
    %v1904 = vsel %vm1889, %v1884, %v1886
    %v1905 = vsel %vm1889, %v1886, %v1888
    %v1923 = vsel %vm891, %v1852, 0
    %1925 = vmatpush.msra.mxu0 0.0
    %1926 = vmatpush.msra.mxu0 0.0
    %1927 = vmatpush.msra.mxu0 0.0
    %1928 = vmatpush.msra.mxu0 0.0
    %1929 = vmatpush.msra.mxu0 0.0
    %1930 = vmatpush.msra.mxu0 0.0
    %1931 = vmatpush.msra.mxu0 0.0
    %1932 = vmatpush.msra.mxu0 0.0
    %1933 = vmatpush.msra.mxu0 0.0
    %1934 = vmatpush.msra.mxu0 0.0
    %1935 = vmatpush.msra.mxu0 0.0
    %1936 = vmatpush.msra.mxu0 0.0
    %1937 = vmatpush.msra.mxu0 0.0
    %1938 = vmatpush.msra.mxu0 0.0
    %1939 = vmatpush.msra.mxu0 %v1898
    %1940 = vmatpush.msra.mxu0 %v1890
    %1941 = vmatmul.f32.gmra.mxu0 %v1923
    %v1942 = vpop.f32.mrf.mxu0
    %v1943 = vadd.f32 0.0, %v1942
    %1944 = vdwg.mxu0
    %1945 = vmatpush.msra.mxu0 0.0
    %1946 = vmatpush.msra.mxu0 0.0
    %1947 = vmatpush.msra.mxu0 0.0
    %1948 = vmatpush.msra.mxu0 0.0
    %1949 = vmatpush.msra.mxu0 0.0
    %1950 = vmatpush.msra.mxu0 0.0
    %1951 = vmatpush.msra.mxu0 0.0
    %1952 = vmatpush.msra.mxu0 0.0
    %1953 = vmatpush.msra.mxu0 0.0
    %1954 = vmatpush.msra.mxu0 0.0
    %1955 = vmatpush.msra.mxu0 0.0
    %1956 = vmatpush.msra.mxu0 0.0
    %1957 = vmatpush.msra.mxu0 0.0
    %1958 = vmatpush.msra.mxu0 0.0
    %1959 = vmatpush.msra.mxu0 %v1899
    %1960 = vmatpush.msra.mxu0 %v1891
    %1961 = vmatmul.f32.gmra.mxu0 %v1923
    %v1962 = vpop.f32.mrf.mxu0
    %v1963 = vadd.f32 0.0, %v1962
    %1964 = vdwg.mxu0
    %1965 = vmatpush.msra.mxu0 0.0
    %1966 = vmatpush.msra.mxu0 0.0
    %1967 = vmatpush.msra.mxu0 0.0
    %1968 = vmatpush.msra.mxu0 0.0
    %1969 = vmatpush.msra.mxu0 0.0
    %1970 = vmatpush.msra.mxu0 0.0
    %1971 = vmatpush.msra.mxu0 0.0
    %1972 = vmatpush.msra.mxu0 0.0
    %1973 = vmatpush.msra.mxu0 0.0
    %1974 = vmatpush.msra.mxu0 0.0
    %1975 = vmatpush.msra.mxu0 0.0
    %1976 = vmatpush.msra.mxu0 0.0
    %1977 = vmatpush.msra.mxu0 0.0
    %1978 = vmatpush.msra.mxu0 0.0
    %1979 = vmatpush.msra.mxu0 %v1900
    %1980 = vmatpush.msra.mxu0 %v1892
    %1981 = vmatmul.f32.gmra.mxu0 %v1923
    %v1982 = vpop.f32.mrf.mxu0
    %v1983 = vadd.f32 0.0, %v1982
    %1984 = vdwg.mxu0
    %1985 = vmatpush.msra.mxu0 0.0
    %1986 = vmatpush.msra.mxu0 0.0
    %1987 = vmatpush.msra.mxu0 0.0
    %1988 = vmatpush.msra.mxu0 0.0
    %1989 = vmatpush.msra.mxu0 0.0
    %1990 = vmatpush.msra.mxu0 0.0
    %1991 = vmatpush.msra.mxu0 0.0
    %1992 = vmatpush.msra.mxu0 0.0
    %1993 = vmatpush.msra.mxu0 0.0
    %1994 = vmatpush.msra.mxu0 0.0
    %1995 = vmatpush.msra.mxu0 0.0
    %1996 = vmatpush.msra.mxu0 0.0
    %1997 = vmatpush.msra.mxu0 0.0
    %1998 = vmatpush.msra.mxu0 0.0
    %1999 = vmatpush.msra.mxu0 %v1901
    %2000 = vmatpush.msra.mxu0 %v1893
    %2001 = vmatmul.f32.gmra.mxu0 %v1923
    %v2002 = vpop.f32.mrf.mxu0
    %v2003 = vadd.f32 0.0, %v2002
    %2004 = vdwg.mxu0
    %2005 = vmatpush.msra.mxu0 0.0
    %2006 = vmatpush.msra.mxu0 0.0
    %2007 = vmatpush.msra.mxu0 0.0
    %2008 = vmatpush.msra.mxu0 0.0
    %2009 = vmatpush.msra.mxu0 0.0
    %2010 = vmatpush.msra.mxu0 0.0
    %2011 = vmatpush.msra.mxu0 0.0
    %2012 = vmatpush.msra.mxu0 0.0
    %2013 = vmatpush.msra.mxu0 0.0
    %2014 = vmatpush.msra.mxu0 0.0
    %2015 = vmatpush.msra.mxu0 0.0
    %2016 = vmatpush.msra.mxu0 0.0
    %2017 = vmatpush.msra.mxu0 0.0
    %2018 = vmatpush.msra.mxu0 0.0
    %2019 = vmatpush.msra.mxu0 %v1902
    %2020 = vmatpush.msra.mxu0 %v1894
    %2021 = vmatmul.f32.gmra.mxu0 %v1923
    %v2022 = vpop.f32.mrf.mxu0
    %v2023 = vadd.f32 0.0, %v2022
    %2024 = vdwg.mxu0
    %2025 = vmatpush.msra.mxu0 0.0
    %2026 = vmatpush.msra.mxu0 0.0
    %2027 = vmatpush.msra.mxu0 0.0
    %2028 = vmatpush.msra.mxu0 0.0
    %2029 = vmatpush.msra.mxu0 0.0
    %2030 = vmatpush.msra.mxu0 0.0
    %2031 = vmatpush.msra.mxu0 0.0
    %2032 = vmatpush.msra.mxu0 0.0
    %2033 = vmatpush.msra.mxu0 0.0
    %2034 = vmatpush.msra.mxu0 0.0
    %2035 = vmatpush.msra.mxu0 0.0
    %2036 = vmatpush.msra.mxu0 0.0
    %2037 = vmatpush.msra.mxu0 0.0
    %2038 = vmatpush.msra.mxu0 0.0
    %2039 = vmatpush.msra.mxu0 %v1903
    %2040 = vmatpush.msra.mxu0 %v1895
    %2041 = vmatmul.f32.gmra.mxu0 %v1923
    %v2042 = vpop.f32.mrf.mxu0
    %v2043 = vadd.f32 0.0, %v2042
    %2044 = vdwg.mxu0
    %2045 = vmatpush.msra.mxu0 0.0
    %2046 = vmatpush.msra.mxu0 0.0
    %2047 = vmatpush.msra.mxu0 0.0
    %2048 = vmatpush.msra.mxu0 0.0
    %2049 = vmatpush.msra.mxu0 0.0
    %2050 = vmatpush.msra.mxu0 0.0
    %2051 = vmatpush.msra.mxu0 0.0
    %2052 = vmatpush.msra.mxu0 0.0
    %2053 = vmatpush.msra.mxu0 0.0
    %2054 = vmatpush.msra.mxu0 0.0
    %2055 = vmatpush.msra.mxu0 0.0
    %2056 = vmatpush.msra.mxu0 0.0
    %2057 = vmatpush.msra.mxu0 0.0
    %2058 = vmatpush.msra.mxu0 0.0
    %2059 = vmatpush.msra.mxu0 %v1904
    %2060 = vmatpush.msra.mxu0 %v1896
    %2061 = vmatmul.f32.gmra.mxu0 %v1923
    %v2062 = vpop.f32.mrf.mxu0
    %v2063 = vadd.f32 0.0, %v2062
    %2064 = vdwg.mxu0
    %2065 = vmatpush.msra.mxu0 0.0
    %2066 = vmatpush.msra.mxu0 0.0
    %2067 = vmatpush.msra.mxu0 0.0
    %2068 = vmatpush.msra.mxu0 0.0
    %2069 = vmatpush.msra.mxu0 0.0
    %2070 = vmatpush.msra.mxu0 0.0
    %2071 = vmatpush.msra.mxu0 0.0
    %2072 = vmatpush.msra.mxu0 0.0
    %2073 = vmatpush.msra.mxu0 0.0
    %2074 = vmatpush.msra.mxu0 0.0
    %2075 = vmatpush.msra.mxu0 0.0
    %2076 = vmatpush.msra.mxu0 0.0
    %2077 = vmatpush.msra.mxu0 0.0
    %2078 = vmatpush.msra.mxu0 0.0
    %2079 = vmatpush.msra.mxu0 %v1905
    %2080 = vmatpush.msra.mxu0 %v1897
    %2081 = vmatmul.f32.gmra.mxu0 %v1923
    %v2082 = vpop.f32.mrf.mxu0
    %v2083 = vadd.f32 0.0, %v2082
    %2084 = vdwg.mxu0
    %v2085 = vadd.f32 %v1843, %v1943
    %v2086 = vadd.f32 %v1844, %v1963
    %v2087 = vadd.f32 %v1845, %v1983
    %v2088 = vadd.f32 %v1846, %v2003
    %v2089 = vadd.f32 %v1847, %v2023
    %v2090 = vadd.f32 %v1848, %v2043
    %v2091 = vadd.f32 %v1849, %v2063
    %v2092 = vadd.f32 %v1850, %v2083
    %2093 = vrot.lane.b32.xlu0 %v1221, 34
    %v2094 = vpop.permute.xlu0 %2093
    %2095 = vrot.lane.b32.xlu0 %v1222, 34
    %v2096 = vpop.permute.xlu0 %2095
    %2097 = vrot.lane.b32.xlu0 %v1223, 34
    %v2098 = vpop.permute.xlu0 %2097
    %2099 = vrot.lane.b32.xlu0 %v1224, 34
    %v2100 = vpop.permute.xlu0 %2099
    %2101 = vrot.lane.b32.xlu0 %v1225, 34
    %v2102 = vpop.permute.xlu0 %2101
    %2103 = vrot.lane.b32.xlu0 %v1226, 34
    %v2104 = vpop.permute.xlu0 %2103
    %2105 = vrot.lane.b32.xlu0 %v1227, 34
    %v2106 = vpop.permute.xlu0 %2105
    %2107 = vrot.lane.b32.xlu0 %v1228, 34
    %v2108 = vpop.permute.xlu0 %2107
    %vm2109 = vcmask 277504
    %v2110 = vsel %vm2109, %v2094, %v2096
    %v2111 = vsel %vm2109, %v2096, %v2098
    %v2112 = vsel %vm2109, %v2098, %v2100
    %v2113 = vsel %vm2109, %v2100, %v2102
    %v2114 = vsel %vm2109, %v2102, %v2104
    %v2115 = vsel %vm2109, %v2104, %v2106
    %v2116 = vsel %vm2109, %v2106, %v2108
    %v2126 = vmul.f32 %v749, %v2094
    %v2127 = vmul.f32 %v750, %v2110
    %v2128 = vmul.f32 %v751, %v2111
    %v2129 = vmul.f32 %v752, %v2112
    %v2130 = vmul.f32 %v753, %v2113
    %v2131 = vmul.f32 %v754, %v2114
    %v2132 = vmul.f32 %v755, %v2115
    %v2133 = vmul.f32 %v756, %v2116
    %v2134 = vmul.f32 %v800, %v2108
    %v2135 = vmul.f32 %v757, %v2094
    %v2136 = vmul.f32 %v758, %v2110
    %v2137 = vmul.f32 %v759, %v2111
    %v2138 = vmul.f32 %v760, %v2112
    %v2139 = vmul.f32 %v761, %v2113
    %v2140 = vmul.f32 %v762, %v2114
    %v2141 = vmul.f32 %v763, %v2115
    %v2142 = vmul.f32 %v764, %v2116
    %v2143 = vmul.f32 %v801, %v2108
    %s2144 = scalar_lea.vmem %s4, 40
    %v2145 = vld [vmem:[%s2144] sm:$0xff]
    %2164 = vrot.lane.b32.xlu0 %v2126, 94
    %v2165 = vpop.permute.xlu0 %2164
    %2166 = vrot.lane.b32.xlu0 %v2127, 94
    %v2167 = vpop.permute.xlu0 %2166
    %2168 = vrot.lane.b32.xlu0 %v2128, 94
    %v2169 = vpop.permute.xlu0 %2168
    %2170 = vrot.lane.b32.xlu0 %v2129, 94
    %v2171 = vpop.permute.xlu0 %2170
    %2172 = vrot.lane.b32.xlu0 %v2130, 94
    %v2173 = vpop.permute.xlu0 %2172
    %2174 = vrot.lane.b32.xlu0 %v2131, 94
    %v2175 = vpop.permute.xlu0 %2174
    %2176 = vrot.lane.b32.xlu0 %v2132, 94
    %v2177 = vpop.permute.xlu0 %2176
    %2178 = vrot.lane.b32.xlu0 %v2133, 94
    %v2179 = vpop.permute.xlu0 %2178
    %2180 = vrot.lane.b32.xlu0 %v2134, 94
    %v2181 = vpop.permute.xlu0 %2180
    %2182 = vrot.lane.b32.xlu0 %v2135, 94
    %v2183 = vpop.permute.xlu0 %2182
    %2184 = vrot.lane.b32.xlu0 %v2136, 94
    %v2185 = vpop.permute.xlu0 %2184
    %2186 = vrot.lane.b32.xlu0 %v2137, 94
    %v2187 = vpop.permute.xlu0 %2186
    %2188 = vrot.lane.b32.xlu0 %v2138, 94
    %v2189 = vpop.permute.xlu0 %2188
    %2190 = vrot.lane.b32.xlu0 %v2139, 94
    %v2191 = vpop.permute.xlu0 %2190
    %2192 = vrot.lane.b32.xlu0 %v2140, 94
    %v2193 = vpop.permute.xlu0 %2192
    %2194 = vrot.lane.b32.xlu0 %v2141, 94
    %v2195 = vpop.permute.xlu0 %2194
    %2196 = vrot.lane.b32.xlu0 %v2142, 94
    %v2197 = vpop.permute.xlu0 %2196
    %2198 = vrot.lane.b32.xlu0 %v2143, 94
    %v2199 = vpop.permute.xlu0 %2198
    %vm2200 = vcmask 769024
    %v2201 = vsel %vm2200, %v2165, %v2167
    %v2202 = vsel %vm2200, %v2167, %v2169
    %v2203 = vsel %vm2200, %v2169, %v2171
    %v2204 = vsel %vm2200, %v2171, %v2173
    %v2205 = vsel %vm2200, %v2173, %v2175
    %v2206 = vsel %vm2200, %v2175, %v2177
    %v2207 = vsel %vm2200, %v2177, %v2179
    %v2208 = vsel %vm2200, %v2179, %v2181
    %v2209 = vsel %vm2200, %v2183, %v2185
    %v2210 = vsel %vm2200, %v2185, %v2187
    %v2211 = vsel %vm2200, %v2187, %v2189
    %v2212 = vsel %vm2200, %v2189, %v2191
    %v2213 = vsel %vm2200, %v2191, %v2193
    %v2214 = vsel %vm2200, %v2193, %v2195
    %v2215 = vsel %vm2200, %v2195, %v2197
    %v2216 = vsel %vm2200, %v2197, %v2199
    %v2234 = vsel %vm891, %v2145, 0
    %2236 = vmatpush.msra.mxu0 0.0
    %2237 = vmatpush.msra.mxu0 0.0
    %2238 = vmatpush.msra.mxu0 0.0
    %2239 = vmatpush.msra.mxu0 0.0
    %2240 = vmatpush.msra.mxu0 0.0
    %2241 = vmatpush.msra.mxu0 0.0
    %2242 = vmatpush.msra.mxu0 0.0
    %2243 = vmatpush.msra.mxu0 0.0
    %2244 = vmatpush.msra.mxu0 0.0
    %2245 = vmatpush.msra.mxu0 0.0
    %2246 = vmatpush.msra.mxu0 0.0
    %2247 = vmatpush.msra.mxu0 0.0
    %2248 = vmatpush.msra.mxu0 0.0
    %2249 = vmatpush.msra.mxu0 0.0
    %2250 = vmatpush.msra.mxu0 %v2209
    %2251 = vmatpush.msra.mxu0 %v2201
    %2252 = vmatmul.f32.gmra.mxu0 %v2234
    %v2253 = vpop.f32.mrf.mxu0
    %v2254 = vadd.f32 0.0, %v2253
    %2255 = vdwg.mxu0
    %2256 = vmatpush.msra.mxu0 0.0
    %2257 = vmatpush.msra.mxu0 0.0
    %2258 = vmatpush.msra.mxu0 0.0
    %2259 = vmatpush.msra.mxu0 0.0
    %2260 = vmatpush.msra.mxu0 0.0
    %2261 = vmatpush.msra.mxu0 0.0
    %2262 = vmatpush.msra.mxu0 0.0
    %2263 = vmatpush.msra.mxu0 0.0
    %2264 = vmatpush.msra.mxu0 0.0
    %2265 = vmatpush.msra.mxu0 0.0
    %2266 = vmatpush.msra.mxu0 0.0
    %2267 = vmatpush.msra.mxu0 0.0
    %2268 = vmatpush.msra.mxu0 0.0
    %2269 = vmatpush.msra.mxu0 0.0
    %2270 = vmatpush.msra.mxu0 %v2210
    %2271 = vmatpush.msra.mxu0 %v2202
    %2272 = vmatmul.f32.gmra.mxu0 %v2234
    %v2273 = vpop.f32.mrf.mxu0
    %v2274 = vadd.f32 0.0, %v2273
    %2275 = vdwg.mxu0
    %2276 = vmatpush.msra.mxu0 0.0
    %2277 = vmatpush.msra.mxu0 0.0
    %2278 = vmatpush.msra.mxu0 0.0
    %2279 = vmatpush.msra.mxu0 0.0
    %2280 = vmatpush.msra.mxu0 0.0
    %2281 = vmatpush.msra.mxu0 0.0
    %2282 = vmatpush.msra.mxu0 0.0
    %2283 = vmatpush.msra.mxu0 0.0
    %2284 = vmatpush.msra.mxu0 0.0
    %2285 = vmatpush.msra.mxu0 0.0
    %2286 = vmatpush.msra.mxu0 0.0
    %2287 = vmatpush.msra.mxu0 0.0
    %2288 = vmatpush.msra.mxu0 0.0
    %2289 = vmatpush.msra.mxu0 0.0
    %2290 = vmatpush.msra.mxu0 %v2211
    %2291 = vmatpush.msra.mxu0 %v2203
    %2292 = vmatmul.f32.gmra.mxu0 %v2234
    %v2293 = vpop.f32.mrf.mxu0
    %v2294 = vadd.f32 0.0, %v2293
    %2295 = vdwg.mxu0
    %2296 = vmatpush.msra.mxu0 0.0
    %2297 = vmatpush.msra.mxu0 0.0
    %2298 = vmatpush.msra.mxu0 0.0
    %2299 = vmatpush.msra.mxu0 0.0
    %2300 = vmatpush.msra.mxu0 0.0
    %2301 = vmatpush.msra.mxu0 0.0
    %2302 = vmatpush.msra.mxu0 0.0
    %2303 = vmatpush.msra.mxu0 0.0
    %2304 = vmatpush.msra.mxu0 0.0
    %2305 = vmatpush.msra.mxu0 0.0
    %2306 = vmatpush.msra.mxu0 0.0
    %2307 = vmatpush.msra.mxu0 0.0
    %2308 = vmatpush.msra.mxu0 0.0
    %2309 = vmatpush.msra.mxu0 0.0
    %2310 = vmatpush.msra.mxu0 %v2212
    %2311 = vmatpush.msra.mxu0 %v2204
    %2312 = vmatmul.f32.gmra.mxu0 %v2234
    %v2313 = vpop.f32.mrf.mxu0
    %v2314 = vadd.f32 0.0, %v2313
    %2315 = vdwg.mxu0
    %2316 = vmatpush.msra.mxu0 0.0
    %2317 = vmatpush.msra.mxu0 0.0
    %2318 = vmatpush.msra.mxu0 0.0
    %2319 = vmatpush.msra.mxu0 0.0
    %2320 = vmatpush.msra.mxu0 0.0
    %2321 = vmatpush.msra.mxu0 0.0
    %2322 = vmatpush.msra.mxu0 0.0
    %2323 = vmatpush.msra.mxu0 0.0
    %2324 = vmatpush.msra.mxu0 0.0
    %2325 = vmatpush.msra.mxu0 0.0
    %2326 = vmatpush.msra.mxu0 0.0
    %2327 = vmatpush.msra.mxu0 0.0
    %2328 = vmatpush.msra.mxu0 0.0
    %2329 = vmatpush.msra.mxu0 0.0
    %2330 = vmatpush.msra.mxu0 %v2213
    %2331 = vmatpush.msra.mxu0 %v2205
    %2332 = vmatmul.f32.gmra.mxu0 %v2234
    %v2333 = vpop.f32.mrf.mxu0
    %v2334 = vadd.f32 0.0, %v2333
    %2335 = vdwg.mxu0
    %2336 = vmatpush.msra.mxu0 0.0
    %2337 = vmatpush.msra.mxu0 0.0
    %2338 = vmatpush.msra.mxu0 0.0
    %2339 = vmatpush.msra.mxu0 0.0
    %2340 = vmatpush.msra.mxu0 0.0
    %2341 = vmatpush.msra.mxu0 0.0
    %2342 = vmatpush.msra.mxu0 0.0
    %2343 = vmatpush.msra.mxu0 0.0
    %2344 = vmatpush.msra.mxu0 0.0
    %2345 = vmatpush.msra.mxu0 0.0
    %2346 = vmatpush.msra.mxu0 0.0
    %2347 = vmatpush.msra.mxu0 0.0
    %2348 = vmatpush.msra.mxu0 0.0
    %2349 = vmatpush.msra.mxu0 0.0
    %2350 = vmatpush.msra.mxu0 %v2214
    %2351 = vmatpush.msra.mxu0 %v2206
    %2352 = vmatmul.f32.gmra.mxu0 %v2234
    %v2353 = vpop.f32.mrf.mxu0
    %v2354 = vadd.f32 0.0, %v2353
    %2355 = vdwg.mxu0
    %2356 = vmatpush.msra.mxu0 0.0
    %2357 = vmatpush.msra.mxu0 0.0
    %2358 = vmatpush.msra.mxu0 0.0
    %2359 = vmatpush.msra.mxu0 0.0
    %2360 = vmatpush.msra.mxu0 0.0
    %2361 = vmatpush.msra.mxu0 0.0
    %2362 = vmatpush.msra.mxu0 0.0
    %2363 = vmatpush.msra.mxu0 0.0
    %2364 = vmatpush.msra.mxu0 0.0
    %2365 = vmatpush.msra.mxu0 0.0
    %2366 = vmatpush.msra.mxu0 0.0
    %2367 = vmatpush.msra.mxu0 0.0
    %2368 = vmatpush.msra.mxu0 0.0
    %2369 = vmatpush.msra.mxu0 0.0
    %2370 = vmatpush.msra.mxu0 %v2215
    %2371 = vmatpush.msra.mxu0 %v2207
    %2372 = vmatmul.f32.gmra.mxu0 %v2234
    %v2373 = vpop.f32.mrf.mxu0
    %v2374 = vadd.f32 0.0, %v2373
    %2375 = vdwg.mxu0
    %2376 = vmatpush.msra.mxu0 0.0
    %2377 = vmatpush.msra.mxu0 0.0
    %2378 = vmatpush.msra.mxu0 0.0
    %2379 = vmatpush.msra.mxu0 0.0
    %2380 = vmatpush.msra.mxu0 0.0
    %2381 = vmatpush.msra.mxu0 0.0
    %2382 = vmatpush.msra.mxu0 0.0
    %2383 = vmatpush.msra.mxu0 0.0
    %2384 = vmatpush.msra.mxu0 0.0
    %2385 = vmatpush.msra.mxu0 0.0
    %2386 = vmatpush.msra.mxu0 0.0
    %2387 = vmatpush.msra.mxu0 0.0
    %2388 = vmatpush.msra.mxu0 0.0
    %2389 = vmatpush.msra.mxu0 0.0
    %2390 = vmatpush.msra.mxu0 %v2216
    %2391 = vmatpush.msra.mxu0 %v2208
    %2392 = vmatmul.f32.gmra.mxu0 %v2234
    %v2393 = vpop.f32.mrf.mxu0
    %v2394 = vadd.f32 0.0, %v2393
    %2395 = vdwg.mxu0
    %v2396 = vadd.f32 %v2085, %v2254
    %v2397 = vadd.f32 %v2086, %v2274
    %v2398 = vadd.f32 %v2087, %v2294
    %v2399 = vadd.f32 %v2088, %v2314
    %v2400 = vadd.f32 %v2089, %v2334
    %v2401 = vadd.f32 %v2090, %v2354
    %v2402 = vadd.f32 %v2091, %v2374
    %v2403 = vadd.f32 %v2092, %v2394
    %2404 = vrot.lane.b32.xlu0 %v767, 64
    %v2405 = vpop.permute.xlu0 %2404
    %2406 = vrot.lane.b32.xlu0 %v768, 64
    %v2407 = vpop.permute.xlu0 %2406
    %2408 = vrot.lane.b32.xlu0 %v769, 64
    %v2409 = vpop.permute.xlu0 %2408
    %2410 = vrot.lane.b32.xlu0 %v770, 64
    %v2411 = vpop.permute.xlu0 %2410
    %2412 = vrot.lane.b32.xlu0 %v771, 64
    %v2413 = vpop.permute.xlu0 %2412
    %2414 = vrot.lane.b32.xlu0 %v772, 64
    %v2415 = vpop.permute.xlu0 %2414
    %2416 = vrot.lane.b32.xlu0 %v773, 64
    %v2417 = vpop.permute.xlu0 %2416
    %2418 = vrot.lane.b32.xlu0 %v774, 64
    %v2419 = vpop.permute.xlu0 %2418
    %vm2420 = vcmask 523264
    %v2421 = vsel %vm2420, %v2405, %v2407
    %v2422 = vsel %vm2420, %v2407, %v2409
    %v2423 = vsel %vm2420, %v2409, %v2411
    %v2424 = vsel %vm2420, %v2411, %v2413
    %v2425 = vsel %vm2420, %v2413, %v2415
    %v2426 = vsel %vm2420, %v2415, %v2417
    %v2427 = vsel %vm2420, %v2417, %v2419
    %v2437 = vmul.f32 %v749, %v2405
    %v2438 = vmul.f32 %v750, %v2421
    %v2439 = vmul.f32 %v751, %v2422
    %v2440 = vmul.f32 %v752, %v2423
    %v2441 = vmul.f32 %v753, %v2424
    %v2442 = vmul.f32 %v754, %v2425
    %v2443 = vmul.f32 %v755, %v2426
    %v2444 = vmul.f32 %v756, %v2427
    %v2445 = vmul.f32 %v800, %v2419
    %v2446 = vmul.f32 %v757, %v2405
    %v2447 = vmul.f32 %v758, %v2421
    %v2448 = vmul.f32 %v759, %v2422
    %v2449 = vmul.f32 %v760, %v2423
    %v2450 = vmul.f32 %v761, %v2424
    %v2451 = vmul.f32 %v762, %v2425
    %v2452 = vmul.f32 %v763, %v2426
    %v2453 = vmul.f32 %v764, %v2427
    %v2454 = vmul.f32 %v801, %v2419
    %s2455 = scalar_lea.vmem %s4, 48
    %v2456 = vld [vmem:[%s2455] sm:$0xff]
    %2475 = vrot.lane.b32.xlu0 %v2437, 64
    %v2476 = vpop.permute.xlu0 %2475
    %2477 = vrot.lane.b32.xlu0 %v2438, 64
    %v2478 = vpop.permute.xlu0 %2477
    %2479 = vrot.lane.b32.xlu0 %v2439, 64
    %v2480 = vpop.permute.xlu0 %2479
    %2481 = vrot.lane.b32.xlu0 %v2440, 64
    %v2482 = vpop.permute.xlu0 %2481
    %2483 = vrot.lane.b32.xlu0 %v2441, 64
    %v2484 = vpop.permute.xlu0 %2483
    %2485 = vrot.lane.b32.xlu0 %v2442, 64
    %v2486 = vpop.permute.xlu0 %2485
    %2487 = vrot.lane.b32.xlu0 %v2443, 64
    %v2488 = vpop.permute.xlu0 %2487
    %2489 = vrot.lane.b32.xlu0 %v2444, 64
    %v2490 = vpop.permute.xlu0 %2489
    %2491 = vrot.lane.b32.xlu0 %v2445, 64
    %v2492 = vpop.permute.xlu0 %2491
    %2493 = vrot.lane.b32.xlu0 %v2446, 64
    %v2494 = vpop.permute.xlu0 %2493
    %2495 = vrot.lane.b32.xlu0 %v2447, 64
    %v2496 = vpop.permute.xlu0 %2495
    %2497 = vrot.lane.b32.xlu0 %v2448, 64
    %v2498 = vpop.permute.xlu0 %2497
    %2499 = vrot.lane.b32.xlu0 %v2449, 64
    %v2500 = vpop.permute.xlu0 %2499
    %2501 = vrot.lane.b32.xlu0 %v2450, 64
    %v2502 = vpop.permute.xlu0 %2501
    %2503 = vrot.lane.b32.xlu0 %v2451, 64
    %v2504 = vpop.permute.xlu0 %2503
    %2505 = vrot.lane.b32.xlu0 %v2452, 64
    %v2506 = vpop.permute.xlu0 %2505
    %2507 = vrot.lane.b32.xlu0 %v2453, 64
    %v2508 = vpop.permute.xlu0 %2507
    %2509 = vrot.lane.b32.xlu0 %v2454, 64
    %v2510 = vpop.permute.xlu0 %2509
    %v2511 = vsel %vm2420, %v2476, %v2478
    %v2512 = vsel %vm2420, %v2478, %v2480
    %v2513 = vsel %vm2420, %v2480, %v2482
    %v2514 = vsel %vm2420, %v2482, %v2484
    %v2515 = vsel %vm2420, %v2484, %v2486
    %v2516 = vsel %vm2420, %v2486, %v2488
    %v2517 = vsel %vm2420, %v2488, %v2490
    %v2518 = vsel %vm2420, %v2490, %v2492
    %v2519 = vsel %vm2420, %v2494, %v2496
    %v2520 = vsel %vm2420, %v2496, %v2498
    %v2521 = vsel %vm2420, %v2498, %v2500
    %v2522 = vsel %vm2420, %v2500, %v2502
    %v2523 = vsel %vm2420, %v2502, %v2504
    %v2524 = vsel %vm2420, %v2504, %v2506
    %v2525 = vsel %vm2420, %v2506, %v2508
    %v2526 = vsel %vm2420, %v2508, %v2510
    %v2544 = vsel %vm891, %v2456, 0
    %2546 = vmatpush.msra.mxu0 0.0
    %2547 = vmatpush.msra.mxu0 0.0
    %2548 = vmatpush.msra.mxu0 0.0
    %2549 = vmatpush.msra.mxu0 0.0
    %2550 = vmatpush.msra.mxu0 0.0
    %2551 = vmatpush.msra.mxu0 0.0
    %2552 = vmatpush.msra.mxu0 0.0
    %2553 = vmatpush.msra.mxu0 0.0
    %2554 = vmatpush.msra.mxu0 0.0
    %2555 = vmatpush.msra.mxu0 0.0
    %2556 = vmatpush.msra.mxu0 0.0
    %2557 = vmatpush.msra.mxu0 0.0
    %2558 = vmatpush.msra.mxu0 0.0
    %2559 = vmatpush.msra.mxu0 0.0
    %2560 = vmatpush.msra.mxu0 %v2519
    %2561 = vmatpush.msra.mxu0 %v2511
    %2562 = vmatmul.f32.gmra.mxu0 %v2544
    %v2563 = vpop.f32.mrf.mxu0
    %v2564 = vadd.f32 0.0, %v2563
    %2565 = vdwg.mxu0
    %2566 = vmatpush.msra.mxu0 0.0
    %2567 = vmatpush.msra.mxu0 0.0
    %2568 = vmatpush.msra.mxu0 0.0
    %2569 = vmatpush.msra.mxu0 0.0
    %2570 = vmatpush.msra.mxu0 0.0
    %2571 = vmatpush.msra.mxu0 0.0
    %2572 = vmatpush.msra.mxu0 0.0
    %2573 = vmatpush.msra.mxu0 0.0
    %2574 = vmatpush.msra.mxu0 0.0
    %2575 = vmatpush.msra.mxu0 0.0
    %2576 = vmatpush.msra.mxu0 0.0
    %2577 = vmatpush.msra.mxu0 0.0
    %2578 = vmatpush.msra.mxu0 0.0
    %2579 = vmatpush.msra.mxu0 0.0
    %2580 = vmatpush.msra.mxu0 %v2520
    %2581 = vmatpush.msra.mxu0 %v2512
    %2582 = vmatmul.f32.gmra.mxu0 %v2544
    %v2583 = vpop.f32.mrf.mxu0
    %v2584 = vadd.f32 0.0, %v2583
    %2585 = vdwg.mxu0
    %2586 = vmatpush.msra.mxu0 0.0
    %2587 = vmatpush.msra.mxu0 0.0
    %2588 = vmatpush.msra.mxu0 0.0
    %2589 = vmatpush.msra.mxu0 0.0
    %2590 = vmatpush.msra.mxu0 0.0
    %2591 = vmatpush.msra.mxu0 0.0
    %2592 = vmatpush.msra.mxu0 0.0
    %2593 = vmatpush.msra.mxu0 0.0
    %2594 = vmatpush.msra.mxu0 0.0
    %2595 = vmatpush.msra.mxu0 0.0
    %2596 = vmatpush.msra.mxu0 0.0
    %2597 = vmatpush.msra.mxu0 0.0
    %2598 = vmatpush.msra.mxu0 0.0
    %2599 = vmatpush.msra.mxu0 0.0
    %2600 = vmatpush.msra.mxu0 %v2521
    %2601 = vmatpush.msra.mxu0 %v2513
    %2602 = vmatmul.f32.gmra.mxu0 %v2544
    %v2603 = vpop.f32.mrf.mxu0
    %v2604 = vadd.f32 0.0, %v2603
    %2605 = vdwg.mxu0
    %2606 = vmatpush.msra.mxu0 0.0
    %2607 = vmatpush.msra.mxu0 0.0
    %2608 = vmatpush.msra.mxu0 0.0
    %2609 = vmatpush.msra.mxu0 0.0
    %2610 = vmatpush.msra.mxu0 0.0
    %2611 = vmatpush.msra.mxu0 0.0
    %2612 = vmatpush.msra.mxu0 0.0
    %2613 = vmatpush.msra.mxu0 0.0
    %2614 = vmatpush.msra.mxu0 0.0
    %2615 = vmatpush.msra.mxu0 0.0
    %2616 = vmatpush.msra.mxu0 0.0
    %2617 = vmatpush.msra.mxu0 0.0
    %2618 = vmatpush.msra.mxu0 0.0
    %2619 = vmatpush.msra.mxu0 0.0
    %2620 = vmatpush.msra.mxu0 %v2522
    %2621 = vmatpush.msra.mxu0 %v2514
    %2622 = vmatmul.f32.gmra.mxu0 %v2544
    %v2623 = vpop.f32.mrf.mxu0
    %v2624 = vadd.f32 0.0, %v2623
    %2625 = vdwg.mxu0
    %2626 = vmatpush.msra.mxu0 0.0
    %2627 = vmatpush.msra.mxu0 0.0
    %2628 = vmatpush.msra.mxu0 0.0
    %2629 = vmatpush.msra.mxu0 0.0
    %2630 = vmatpush.msra.mxu0 0.0
    %2631 = vmatpush.msra.mxu0 0.0
    %2632 = vmatpush.msra.mxu0 0.0
    %2633 = vmatpush.msra.mxu0 0.0
    %2634 = vmatpush.msra.mxu0 0.0
    %2635 = vmatpush.msra.mxu0 0.0
    %2636 = vmatpush.msra.mxu0 0.0
    %2637 = vmatpush.msra.mxu0 0.0
    %2638 = vmatpush.msra.mxu0 0.0
    %2639 = vmatpush.msra.mxu0 0.0
    %2640 = vmatpush.msra.mxu0 %v2523
    %2641 = vmatpush.msra.mxu0 %v2515
    %2642 = vmatmul.f32.gmra.mxu0 %v2544
    %v2643 = vpop.f32.mrf.mxu0
    %v2644 = vadd.f32 0.0, %v2643
    %2645 = vdwg.mxu0
    %2646 = vmatpush.msra.mxu0 0.0
    %2647 = vmatpush.msra.mxu0 0.0
    %2648 = vmatpush.msra.mxu0 0.0
    %2649 = vmatpush.msra.mxu0 0.0
    %2650 = vmatpush.msra.mxu0 0.0
    %2651 = vmatpush.msra.mxu0 0.0
    %2652 = vmatpush.msra.mxu0 0.0
    %2653 = vmatpush.msra.mxu0 0.0
    %2654 = vmatpush.msra.mxu0 0.0
    %2655 = vmatpush.msra.mxu0 0.0
    %2656 = vmatpush.msra.mxu0 0.0
    %2657 = vmatpush.msra.mxu0 0.0
    %2658 = vmatpush.msra.mxu0 0.0
    %2659 = vmatpush.msra.mxu0 0.0
    %2660 = vmatpush.msra.mxu0 %v2524
    %2661 = vmatpush.msra.mxu0 %v2516
    %2662 = vmatmul.f32.gmra.mxu0 %v2544
    %v2663 = vpop.f32.mrf.mxu0
    %v2664 = vadd.f32 0.0, %v2663
    %2665 = vdwg.mxu0
    %2666 = vmatpush.msra.mxu0 0.0
    %2667 = vmatpush.msra.mxu0 0.0
    %2668 = vmatpush.msra.mxu0 0.0
    %2669 = vmatpush.msra.mxu0 0.0
    %2670 = vmatpush.msra.mxu0 0.0
    %2671 = vmatpush.msra.mxu0 0.0
    %2672 = vmatpush.msra.mxu0 0.0
    %2673 = vmatpush.msra.mxu0 0.0
    %2674 = vmatpush.msra.mxu0 0.0
    %2675 = vmatpush.msra.mxu0 0.0
    %2676 = vmatpush.msra.mxu0 0.0
    %2677 = vmatpush.msra.mxu0 0.0
    %2678 = vmatpush.msra.mxu0 0.0
    %2679 = vmatpush.msra.mxu0 0.0
    %2680 = vmatpush.msra.mxu0 %v2525
    %2681 = vmatpush.msra.mxu0 %v2517
    %2682 = vmatmul.f32.gmra.mxu0 %v2544
    %v2683 = vpop.f32.mrf.mxu0
    %v2684 = vadd.f32 0.0, %v2683
    %2685 = vdwg.mxu0
    %2686 = vmatpush.msra.mxu0 0.0
    %2687 = vmatpush.msra.mxu0 0.0
    %2688 = vmatpush.msra.mxu0 0.0
    %2689 = vmatpush.msra.mxu0 0.0
    %2690 = vmatpush.msra.mxu0 0.0
    %2691 = vmatpush.msra.mxu0 0.0
    %2692 = vmatpush.msra.mxu0 0.0
    %2693 = vmatpush.msra.mxu0 0.0
    %2694 = vmatpush.msra.mxu0 0.0
    %2695 = vmatpush.msra.mxu0 0.0
    %2696 = vmatpush.msra.mxu0 0.0
    %2697 = vmatpush.msra.mxu0 0.0
    %2698 = vmatpush.msra.mxu0 0.0
    %2699 = vmatpush.msra.mxu0 0.0
    %2700 = vmatpush.msra.mxu0 %v2526
    %2701 = vmatpush.msra.mxu0 %v2518
    %2702 = vmatmul.f32.gmra.mxu0 %v2544
    %v2703 = vpop.f32.mrf.mxu0
    %v2704 = vadd.f32 0.0, %v2703
    %2705 = vdwg.mxu0
    %v2706 = vadd.f32 %v2396, %v2564
    %v2707 = vadd.f32 %v2397, %v2584
    %v2708 = vadd.f32 %v2398, %v2604
    %v2709 = vadd.f32 %v2399, %v2624
    %v2710 = vadd.f32 %v2400, %v2644
    %v2711 = vadd.f32 %v2401, %v2664
    %v2712 = vadd.f32 %v2402, %v2684
    %v2713 = vadd.f32 %v2403, %v2704
    %s2714 = scalar_lea.vmem %s4, 56
    %v2715 = vld [vmem:[%s2714] sm:$0xff]
    %2716 = vrot.lane.b32.xlu0 %v749, 63
    %v2717 = vpop.permute.xlu0 %2716
    %2718 = vrot.lane.b32.xlu0 %v750, 63
    %v2719 = vpop.permute.xlu0 %2718
    %2720 = vrot.lane.b32.xlu0 %v751, 63
    %v2721 = vpop.permute.xlu0 %2720
    %2722 = vrot.lane.b32.xlu0 %v752, 63
    %v2723 = vpop.permute.xlu0 %2722
    %2724 = vrot.lane.b32.xlu0 %v753, 63
    %v2725 = vpop.permute.xlu0 %2724
    %2726 = vrot.lane.b32.xlu0 %v754, 63
    %v2727 = vpop.permute.xlu0 %2726
    %2728 = vrot.lane.b32.xlu0 %v755, 63
    %v2729 = vpop.permute.xlu0 %2728
    %2730 = vrot.lane.b32.xlu0 %v756, 63
    %v2731 = vpop.permute.xlu0 %2730
    %2732 = vrot.lane.b32.xlu0 %v800, 63
    %v2733 = vpop.permute.xlu0 %2732
    %2734 = vrot.lane.b32.xlu0 %v757, 63
    %v2735 = vpop.permute.xlu0 %2734
    %2736 = vrot.lane.b32.xlu0 %v758, 63
    %v2737 = vpop.permute.xlu0 %2736
    %2738 = vrot.lane.b32.xlu0 %v759, 63
    %v2739 = vpop.permute.xlu0 %2738
    %2740 = vrot.lane.b32.xlu0 %v760, 63
    %v2741 = vpop.permute.xlu0 %2740
    %2742 = vrot.lane.b32.xlu0 %v761, 63
    %v2743 = vpop.permute.xlu0 %2742
    %2744 = vrot.lane.b32.xlu0 %v762, 63
    %v2745 = vpop.permute.xlu0 %2744
    %2746 = vrot.lane.b32.xlu0 %v763, 63
    %v2747 = vpop.permute.xlu0 %2746
    %2748 = vrot.lane.b32.xlu0 %v764, 63
    %v2749 = vpop.permute.xlu0 %2748
    %2750 = vrot.lane.b32.xlu0 %v801, 63
    %v2751 = vpop.permute.xlu0 %2750
    %vm2752 = vcmask 515072
    %v2753 = vsel %vm2752, %v2717, %v2719
    %v2754 = vsel %vm2752, %v2719, %v2721
    %v2755 = vsel %vm2752, %v2721, %v2723
    %v2756 = vsel %vm2752, %v2723, %v2725
    %v2757 = vsel %vm2752, %v2725, %v2727
    %v2758 = vsel %vm2752, %v2727, %v2729
    %v2759 = vsel %vm2752, %v2729, %v2731
    %v2760 = vsel %vm2752, %v2731, %v2733
    %v2761 = vsel %vm2752, %v2735, %v2737
    %v2762 = vsel %vm2752, %v2737, %v2739
    %v2763 = vsel %vm2752, %v2739, %v2741
    %v2764 = vsel %vm2752, %v2741, %v2743
    %v2765 = vsel %vm2752, %v2743, %v2745
    %v2766 = vsel %vm2752, %v2745, %v2747
    %v2767 = vsel %vm2752, %v2747, %v2749
    %v2768 = vsel %vm2752, %v2749, %v2751
    %v2786 = vsel %vm891, %v2715, 0
    %2788 = vmatpush.msra.mxu0 0.0
    %2789 = vmatpush.msra.mxu0 0.0
    %2790 = vmatpush.msra.mxu0 0.0
    %2791 = vmatpush.msra.mxu0 0.0
    %2792 = vmatpush.msra.mxu0 0.0
    %2793 = vmatpush.msra.mxu0 0.0
    %2794 = vmatpush.msra.mxu0 0.0
    %2795 = vmatpush.msra.mxu0 0.0
    %2796 = vmatpush.msra.mxu0 0.0
    %2797 = vmatpush.msra.mxu0 0.0
    %2798 = vmatpush.msra.mxu0 0.0
    %2799 = vmatpush.msra.mxu0 0.0
    %2800 = vmatpush.msra.mxu0 0.0
    %2801 = vmatpush.msra.mxu0 0.0
    %2802 = vmatpush.msra.mxu0 %v2761
    %2803 = vmatpush.msra.mxu0 %v2753
    %2804 = vmatmul.f32.gmra.mxu0 %v2786
    %v2805 = vpop.f32.mrf.mxu0
    %v2806 = vadd.f32 0.0, %v2805
    %2807 = vdwg.mxu0
    %2808 = vmatpush.msra.mxu0 0.0
    %2809 = vmatpush.msra.mxu0 0.0
    %2810 = vmatpush.msra.mxu0 0.0
    %2811 = vmatpush.msra.mxu0 0.0
    %2812 = vmatpush.msra.mxu0 0.0
    %2813 = vmatpush.msra.mxu0 0.0
    %2814 = vmatpush.msra.mxu0 0.0
    %2815 = vmatpush.msra.mxu0 0.0
    %2816 = vmatpush.msra.mxu0 0.0
    %2817 = vmatpush.msra.mxu0 0.0
    %2818 = vmatpush.msra.mxu0 0.0
    %2819 = vmatpush.msra.mxu0 0.0
    %2820 = vmatpush.msra.mxu0 0.0
    %2821 = vmatpush.msra.mxu0 0.0
    %2822 = vmatpush.msra.mxu0 %v2762
    %2823 = vmatpush.msra.mxu0 %v2754
    %2824 = vmatmul.f32.gmra.mxu0 %v2786
    %v2825 = vpop.f32.mrf.mxu0
    %v2826 = vadd.f32 0.0, %v2825
    %2827 = vdwg.mxu0
    %2828 = vmatpush.msra.mxu0 0.0
    %2829 = vmatpush.msra.mxu0 0.0
    %2830 = vmatpush.msra.mxu0 0.0
    %2831 = vmatpush.msra.mxu0 0.0
    %2832 = vmatpush.msra.mxu0 0.0
    %2833 = vmatpush.msra.mxu0 0.0
    %2834 = vmatpush.msra.mxu0 0.0
    %2835 = vmatpush.msra.mxu0 0.0
    %2836 = vmatpush.msra.mxu0 0.0
    %2837 = vmatpush.msra.mxu0 0.0
    %2838 = vmatpush.msra.mxu0 0.0
    %2839 = vmatpush.msra.mxu0 0.0
    %2840 = vmatpush.msra.mxu0 0.0
    %2841 = vmatpush.msra.mxu0 0.0
    %2842 = vmatpush.msra.mxu0 %v2763
    %2843 = vmatpush.msra.mxu0 %v2755
    %2844 = vmatmul.f32.gmra.mxu0 %v2786
    %v2845 = vpop.f32.mrf.mxu0
    %v2846 = vadd.f32 0.0, %v2845
    %2847 = vdwg.mxu0
    %2848 = vmatpush.msra.mxu0 0.0
    %2849 = vmatpush.msra.mxu0 0.0
    %2850 = vmatpush.msra.mxu0 0.0
    %2851 = vmatpush.msra.mxu0 0.0
    %2852 = vmatpush.msra.mxu0 0.0
    %2853 = vmatpush.msra.mxu0 0.0
    %2854 = vmatpush.msra.mxu0 0.0
    %2855 = vmatpush.msra.mxu0 0.0
    %2856 = vmatpush.msra.mxu0 0.0
    %2857 = vmatpush.msra.mxu0 0.0
    %2858 = vmatpush.msra.mxu0 0.0
    %2859 = vmatpush.msra.mxu0 0.0
    %2860 = vmatpush.msra.mxu0 0.0
    %2861 = vmatpush.msra.mxu0 0.0
    %2862 = vmatpush.msra.mxu0 %v2764
    %2863 = vmatpush.msra.mxu0 %v2756
    %2864 = vmatmul.f32.gmra.mxu0 %v2786
    %v2865 = vpop.f32.mrf.mxu0
    %v2866 = vadd.f32 0.0, %v2865
    %2867 = vdwg.mxu0
    %2868 = vmatpush.msra.mxu0 0.0
    %2869 = vmatpush.msra.mxu0 0.0
    %2870 = vmatpush.msra.mxu0 0.0
    %2871 = vmatpush.msra.mxu0 0.0
    %2872 = vmatpush.msra.mxu0 0.0
    %2873 = vmatpush.msra.mxu0 0.0
    %2874 = vmatpush.msra.mxu0 0.0
    %2875 = vmatpush.msra.mxu0 0.0
    %2876 = vmatpush.msra.mxu0 0.0
    %2877 = vmatpush.msra.mxu0 0.0
    %2878 = vmatpush.msra.mxu0 0.0
    %2879 = vmatpush.msra.mxu0 0.0
    %2880 = vmatpush.msra.mxu0 0.0
    %2881 = vmatpush.msra.mxu0 0.0
    %2882 = vmatpush.msra.mxu0 %v2765
    %2883 = vmatpush.msra.mxu0 %v2757
    %2884 = vmatmul.f32.gmra.mxu0 %v2786
    %v2885 = vpop.f32.mrf.mxu0
    %v2886 = vadd.f32 0.0, %v2885
    %2887 = vdwg.mxu0
    %2888 = vmatpush.msra.mxu0 0.0
    %2889 = vmatpush.msra.mxu0 0.0
    %2890 = vmatpush.msra.mxu0 0.0
    %2891 = vmatpush.msra.mxu0 0.0
    %2892 = vmatpush.msra.mxu0 0.0
    %2893 = vmatpush.msra.mxu0 0.0
    %2894 = vmatpush.msra.mxu0 0.0
    %2895 = vmatpush.msra.mxu0 0.0
    %2896 = vmatpush.msra.mxu0 0.0
    %2897 = vmatpush.msra.mxu0 0.0
    %2898 = vmatpush.msra.mxu0 0.0
    %2899 = vmatpush.msra.mxu0 0.0
    %2900 = vmatpush.msra.mxu0 0.0
    %2901 = vmatpush.msra.mxu0 0.0
    %2902 = vmatpush.msra.mxu0 %v2766
    %2903 = vmatpush.msra.mxu0 %v2758
    %2904 = vmatmul.f32.gmra.mxu0 %v2786
    %v2905 = vpop.f32.mrf.mxu0
    %v2906 = vadd.f32 0.0, %v2905
    %2907 = vdwg.mxu0
    %2908 = vmatpush.msra.mxu0 0.0
    %2909 = vmatpush.msra.mxu0 0.0
    %2910 = vmatpush.msra.mxu0 0.0
    %2911 = vmatpush.msra.mxu0 0.0
    %2912 = vmatpush.msra.mxu0 0.0
    %2913 = vmatpush.msra.mxu0 0.0
    %2914 = vmatpush.msra.mxu0 0.0
    %2915 = vmatpush.msra.mxu0 0.0
    %2916 = vmatpush.msra.mxu0 0.0
    %2917 = vmatpush.msra.mxu0 0.0
    %2918 = vmatpush.msra.mxu0 0.0
    %2919 = vmatpush.msra.mxu0 0.0
    %2920 = vmatpush.msra.mxu0 0.0
    %2921 = vmatpush.msra.mxu0 0.0
    %2922 = vmatpush.msra.mxu0 %v2767
    %2923 = vmatpush.msra.mxu0 %v2759
    %2924 = vmatmul.f32.gmra.mxu0 %v2786
    %v2925 = vpop.f32.mrf.mxu0
    %v2926 = vadd.f32 0.0, %v2925
    %2927 = vdwg.mxu0
    %2928 = vmatpush.msra.mxu0 0.0
    %2929 = vmatpush.msra.mxu0 0.0
    %2930 = vmatpush.msra.mxu0 0.0
    %2931 = vmatpush.msra.mxu0 0.0
    %2932 = vmatpush.msra.mxu0 0.0
    %2933 = vmatpush.msra.mxu0 0.0
    %2934 = vmatpush.msra.mxu0 0.0
    %2935 = vmatpush.msra.mxu0 0.0
    %2936 = vmatpush.msra.mxu0 0.0
    %2937 = vmatpush.msra.mxu0 0.0
    %2938 = vmatpush.msra.mxu0 0.0
    %2939 = vmatpush.msra.mxu0 0.0
    %2940 = vmatpush.msra.mxu0 0.0
    %2941 = vmatpush.msra.mxu0 0.0
    %2942 = vmatpush.msra.mxu0 %v2768
    %2943 = vmatpush.msra.mxu0 %v2760
    %2944 = vmatmul.f32.gmra.mxu0 %v2786
    %v2945 = vpop.f32.mrf.mxu0
    %v2946 = vadd.f32 0.0, %v2945
    %2947 = vdwg.mxu0
    %v2948 = vadd.f32 %v2706, %v2806
    %v2949 = vadd.f32 %v2707, %v2826
    %v2950 = vadd.f32 %v2708, %v2846
    %v2951 = vadd.f32 %v2709, %v2866
    %v2952 = vadd.f32 %v2710, %v2886
    %v2953 = vadd.f32 %v2711, %v2906
    %v2954 = vadd.f32 %v2712, %v2926
    %v2955 = vadd.f32 %v2713, %v2946
    %2956 = vrot.lane.b32.xlu0 %v1221, 66
    %v2957 = vpop.permute.xlu0 %2956
    %2958 = vrot.lane.b32.xlu0 %v1222, 66
    %v2959 = vpop.permute.xlu0 %2958
    %2960 = vrot.lane.b32.xlu0 %v1223, 66
    %v2961 = vpop.permute.xlu0 %2960
    %2962 = vrot.lane.b32.xlu0 %v1224, 66
    %v2963 = vpop.permute.xlu0 %2962
    %2964 = vrot.lane.b32.xlu0 %v1225, 66
    %v2965 = vpop.permute.xlu0 %2964
    %2966 = vrot.lane.b32.xlu0 %v1226, 66
    %v2967 = vpop.permute.xlu0 %2966
    %2968 = vrot.lane.b32.xlu0 %v1227, 66
    %v2969 = vpop.permute.xlu0 %2968
    %2970 = vrot.lane.b32.xlu0 %v1228, 66
    %v2971 = vpop.permute.xlu0 %2970
    %vm2972 = vcmask 539648
    %v2973 = vsel %vm2972, %v2957, %v2959
    %v2974 = vsel %vm2972, %v2959, %v2961
    %v2975 = vsel %vm2972, %v2961, %v2963
    %v2976 = vsel %vm2972, %v2963, %v2965
    %v2977 = vsel %vm2972, %v2965, %v2967
    %v2978 = vsel %vm2972, %v2967, %v2969
    %v2979 = vsel %vm2972, %v2969, %v2971
    %v2989 = vmul.f32 %v749, %v2957
    %v2990 = vmul.f32 %v750, %v2973
    %v2991 = vmul.f32 %v751, %v2974
    %v2992 = vmul.f32 %v752, %v2975
    %v2993 = vmul.f32 %v753, %v2976
    %v2994 = vmul.f32 %v754, %v2977
    %v2995 = vmul.f32 %v755, %v2978
    %v2996 = vmul.f32 %v756, %v2979
    %v2997 = vmul.f32 %v800, %v2971
    %v2998 = vmul.f32 %v757, %v2957
    %v2999 = vmul.f32 %v758, %v2973
    %v3000 = vmul.f32 %v759, %v2974
    %v3001 = vmul.f32 %v760, %v2975
    %v3002 = vmul.f32 %v761, %v2976
    %v3003 = vmul.f32 %v762, %v2977
    %v3004 = vmul.f32 %v763, %v2978
    %v3005 = vmul.f32 %v764, %v2979
    %v3006 = vmul.f32 %v801, %v2971
    %s3007 = scalar_lea.vmem %s4, 64
    %v3008 = vld [vmem:[%s3007] sm:$0xff]
    %3027 = vrot.lane.b32.xlu0 %v2989, 62
    %v3028 = vpop.permute.xlu0 %3027
    %3029 = vrot.lane.b32.xlu0 %v2990, 62
    %v3030 = vpop.permute.xlu0 %3029
    %3031 = vrot.lane.b32.xlu0 %v2991, 62
    %v3032 = vpop.permute.xlu0 %3031
    %3033 = vrot.lane.b32.xlu0 %v2992, 62
    %v3034 = vpop.permute.xlu0 %3033
    %3035 = vrot.lane.b32.xlu0 %v2993, 62
    %v3036 = vpop.permute.xlu0 %3035
    %3037 = vrot.lane.b32.xlu0 %v2994, 62
    %v3038 = vpop.permute.xlu0 %3037
    %3039 = vrot.lane.b32.xlu0 %v2995, 62
    %v3040 = vpop.permute.xlu0 %3039
    %3041 = vrot.lane.b32.xlu0 %v2996, 62
    %v3042 = vpop.permute.xlu0 %3041
    %3043 = vrot.lane.b32.xlu0 %v2997, 62
    %v3044 = vpop.permute.xlu0 %3043
    %3045 = vrot.lane.b32.xlu0 %v2998, 62
    %v3046 = vpop.permute.xlu0 %3045
    %3047 = vrot.lane.b32.xlu0 %v2999, 62
    %v3048 = vpop.permute.xlu0 %3047
    %3049 = vrot.lane.b32.xlu0 %v3000, 62
    %v3050 = vpop.permute.xlu0 %3049
    %3051 = vrot.lane.b32.xlu0 %v3001, 62
    %v3052 = vpop.permute.xlu0 %3051
    %3053 = vrot.lane.b32.xlu0 %v3002, 62
    %v3054 = vpop.permute.xlu0 %3053
    %3055 = vrot.lane.b32.xlu0 %v3003, 62
    %v3056 = vpop.permute.xlu0 %3055
    %3057 = vrot.lane.b32.xlu0 %v3004, 62
    %v3058 = vpop.permute.xlu0 %3057
    %3059 = vrot.lane.b32.xlu0 %v3005, 62
    %v3060 = vpop.permute.xlu0 %3059
    %3061 = vrot.lane.b32.xlu0 %v3006, 62
    %v3062 = vpop.permute.xlu0 %3061
    %vm3063 = vcmask 506880
    %v3064 = vsel %vm3063, %v3028, %v3030
    %v3065 = vsel %vm3063, %v3030, %v3032
    %v3066 = vsel %vm3063, %v3032, %v3034
    %v3067 = vsel %vm3063, %v3034, %v3036
    %v3068 = vsel %vm3063, %v3036, %v3038
    %v3069 = vsel %vm3063, %v3038, %v3040
    %v3070 = vsel %vm3063, %v3040, %v3042
    %v3071 = vsel %vm3063, %v3042, %v3044
    %v3072 = vsel %vm3063, %v3046, %v3048
    %v3073 = vsel %vm3063, %v3048, %v3050
    %v3074 = vsel %vm3063, %v3050, %v3052
    %v3075 = vsel %vm3063, %v3052, %v3054
    %v3076 = vsel %vm3063, %v3054, %v3056
    %v3077 = vsel %vm3063, %v3056, %v3058
    %v3078 = vsel %vm3063, %v3058, %v3060
    %v3079 = vsel %vm3063, %v3060, %v3062
    %v3097 = vsel %vm891, %v3008, 0
    %3099 = vmatpush.msra.mxu0 0.0
    %3100 = vmatpush.msra.mxu0 0.0
    %3101 = vmatpush.msra.mxu0 0.0
    %3102 = vmatpush.msra.mxu0 0.0
    %3103 = vmatpush.msra.mxu0 0.0
    %3104 = vmatpush.msra.mxu0 0.0
    %3105 = vmatpush.msra.mxu0 0.0
    %3106 = vmatpush.msra.mxu0 0.0
    %3107 = vmatpush.msra.mxu0 0.0
    %3108 = vmatpush.msra.mxu0 0.0
    %3109 = vmatpush.msra.mxu0 0.0
    %3110 = vmatpush.msra.mxu0 0.0
    %3111 = vmatpush.msra.mxu0 0.0
    %3112 = vmatpush.msra.mxu0 0.0
    %3113 = vmatpush.msra.mxu0 %v3072
    %3114 = vmatpush.msra.mxu0 %v3064
    %3115 = vmatmul.f32.gmra.mxu0 %v3097
    %v3116 = vpop.f32.mrf.mxu0
    %v3117 = vadd.f32 0.0, %v3116
    %3118 = vdwg.mxu0
    %3119 = vmatpush.msra.mxu0 0.0
    %3120 = vmatpush.msra.mxu0 0.0
    %3121 = vmatpush.msra.mxu0 0.0
    %3122 = vmatpush.msra.mxu0 0.0
    %3123 = vmatpush.msra.mxu0 0.0
    %3124 = vmatpush.msra.mxu0 0.0
    %3125 = vmatpush.msra.mxu0 0.0
    %3126 = vmatpush.msra.mxu0 0.0
    %3127 = vmatpush.msra.mxu0 0.0
    %3128 = vmatpush.msra.mxu0 0.0
    %3129 = vmatpush.msra.mxu0 0.0
    %3130 = vmatpush.msra.mxu0 0.0
    %3131 = vmatpush.msra.mxu0 0.0
    %3132 = vmatpush.msra.mxu0 0.0
    %3133 = vmatpush.msra.mxu0 %v3073
    %3134 = vmatpush.msra.mxu0 %v3065
    %3135 = vmatmul.f32.gmra.mxu0 %v3097
    %v3136 = vpop.f32.mrf.mxu0
    %v3137 = vadd.f32 0.0, %v3136
    %3138 = vdwg.mxu0
    %3139 = vmatpush.msra.mxu0 0.0
    %3140 = vmatpush.msra.mxu0 0.0
    %3141 = vmatpush.msra.mxu0 0.0
    %3142 = vmatpush.msra.mxu0 0.0
    %3143 = vmatpush.msra.mxu0 0.0
    %3144 = vmatpush.msra.mxu0 0.0
    %3145 = vmatpush.msra.mxu0 0.0
    %3146 = vmatpush.msra.mxu0 0.0
    %3147 = vmatpush.msra.mxu0 0.0
    %3148 = vmatpush.msra.mxu0 0.0
    %3149 = vmatpush.msra.mxu0 0.0
    %3150 = vmatpush.msra.mxu0 0.0
    %3151 = vmatpush.msra.mxu0 0.0
    %3152 = vmatpush.msra.mxu0 0.0
    %3153 = vmatpush.msra.mxu0 %v3074
    %3154 = vmatpush.msra.mxu0 %v3066
    %3155 = vmatmul.f32.gmra.mxu0 %v3097
    %v3156 = vpop.f32.mrf.mxu0
    %v3157 = vadd.f32 0.0, %v3156
    %3158 = vdwg.mxu0
    %3159 = vmatpush.msra.mxu0 0.0
    %3160 = vmatpush.msra.mxu0 0.0
    %3161 = vmatpush.msra.mxu0 0.0
    %3162 = vmatpush.msra.mxu0 0.0
    %3163 = vmatpush.msra.mxu0 0.0
    %3164 = vmatpush.msra.mxu0 0.0
    %3165 = vmatpush.msra.mxu0 0.0
    %3166 = vmatpush.msra.mxu0 0.0
    %3167 = vmatpush.msra.mxu0 0.0
    %3168 = vmatpush.msra.mxu0 0.0
    %3169 = vmatpush.msra.mxu0 0.0
    %3170 = vmatpush.msra.mxu0 0.0
    %3171 = vmatpush.msra.mxu0 0.0
    %3172 = vmatpush.msra.mxu0 0.0
    %3173 = vmatpush.msra.mxu0 %v3075
    %3174 = vmatpush.msra.mxu0 %v3067
    %3175 = vmatmul.f32.gmra.mxu0 %v3097
    %v3176 = vpop.f32.mrf.mxu0
    %v3177 = vadd.f32 0.0, %v3176
    %3178 = vdwg.mxu0
    %3179 = vmatpush.msra.mxu0 0.0
    %3180 = vmatpush.msra.mxu0 0.0
    %3181 = vmatpush.msra.mxu0 0.0
    %3182 = vmatpush.msra.mxu0 0.0
    %3183 = vmatpush.msra.mxu0 0.0
    %3184 = vmatpush.msra.mxu0 0.0
    %3185 = vmatpush.msra.mxu0 0.0
    %3186 = vmatpush.msra.mxu0 0.0
    %3187 = vmatpush.msra.mxu0 0.0
    %3188 = vmatpush.msra.mxu0 0.0
    %3189 = vmatpush.msra.mxu0 0.0
    %3190 = vmatpush.msra.mxu0 0.0
    %3191 = vmatpush.msra.mxu0 0.0
    %3192 = vmatpush.msra.mxu0 0.0
    %3193 = vmatpush.msra.mxu0 %v3076
    %3194 = vmatpush.msra.mxu0 %v3068
    %3195 = vmatmul.f32.gmra.mxu0 %v3097
    %v3196 = vpop.f32.mrf.mxu0
    %v3197 = vadd.f32 0.0, %v3196
    %3198 = vdwg.mxu0
    %3199 = vmatpush.msra.mxu0 0.0
    %3200 = vmatpush.msra.mxu0 0.0
    %3201 = vmatpush.msra.mxu0 0.0
    %3202 = vmatpush.msra.mxu0 0.0
    %3203 = vmatpush.msra.mxu0 0.0
    %3204 = vmatpush.msra.mxu0 0.0
    %3205 = vmatpush.msra.mxu0 0.0
    %3206 = vmatpush.msra.mxu0 0.0
    %3207 = vmatpush.msra.mxu0 0.0
    %3208 = vmatpush.msra.mxu0 0.0
    %3209 = vmatpush.msra.mxu0 0.0
    %3210 = vmatpush.msra.mxu0 0.0
    %3211 = vmatpush.msra.mxu0 0.0
    %3212 = vmatpush.msra.mxu0 0.0
    %3213 = vmatpush.msra.mxu0 %v3077
    %3214 = vmatpush.msra.mxu0 %v3069
    %3215 = vmatmul.f32.gmra.mxu0 %v3097
    %v3216 = vpop.f32.mrf.mxu0
    %v3217 = vadd.f32 0.0, %v3216
    %3218 = vdwg.mxu0
    %3219 = vmatpush.msra.mxu0 0.0
    %3220 = vmatpush.msra.mxu0 0.0
    %3221 = vmatpush.msra.mxu0 0.0
    %3222 = vmatpush.msra.mxu0 0.0
    %3223 = vmatpush.msra.mxu0 0.0
    %3224 = vmatpush.msra.mxu0 0.0
    %3225 = vmatpush.msra.mxu0 0.0
    %3226 = vmatpush.msra.mxu0 0.0
    %3227 = vmatpush.msra.mxu0 0.0
    %3228 = vmatpush.msra.mxu0 0.0
    %3229 = vmatpush.msra.mxu0 0.0
    %3230 = vmatpush.msra.mxu0 0.0
    %3231 = vmatpush.msra.mxu0 0.0
    %3232 = vmatpush.msra.mxu0 0.0
    %3233 = vmatpush.msra.mxu0 %v3078
    %3234 = vmatpush.msra.mxu0 %v3070
    %3235 = vmatmul.f32.gmra.mxu0 %v3097
    %v3236 = vpop.f32.mrf.mxu0
    %v3237 = vadd.f32 0.0, %v3236
    %3238 = vdwg.mxu0
    %3239 = vmatpush.msra.mxu0 0.0
    %3240 = vmatpush.msra.mxu0 0.0
    %3241 = vmatpush.msra.mxu0 0.0
    %3242 = vmatpush.msra.mxu0 0.0
    %3243 = vmatpush.msra.mxu0 0.0
    %3244 = vmatpush.msra.mxu0 0.0
    %3245 = vmatpush.msra.mxu0 0.0
    %3246 = vmatpush.msra.mxu0 0.0
    %3247 = vmatpush.msra.mxu0 0.0
    %3248 = vmatpush.msra.mxu0 0.0
    %3249 = vmatpush.msra.mxu0 0.0
    %3250 = vmatpush.msra.mxu0 0.0
    %3251 = vmatpush.msra.mxu0 0.0
    %3252 = vmatpush.msra.mxu0 0.0
    %3253 = vmatpush.msra.mxu0 %v3079
    %3254 = vmatpush.msra.mxu0 %v3071
    %3255 = vmatmul.f32.gmra.mxu0 %v3097
    %v3256 = vpop.f32.mrf.mxu0
    %v3257 = vadd.f32 0.0, %v3256
    %3258 = vdwg.mxu0
    %v3259 = vadd.f32 %v2948, %v3117
    %v3260 = vadd.f32 %v2949, %v3137
    %v3261 = vadd.f32 %v2950, %v3157
    %v3262 = vadd.f32 %v2951, %v3177
    %v3263 = vadd.f32 %v2952, %v3197
    %v3264 = vadd.f32 %v2953, %v3217
    %v3265 = vadd.f32 %v2954, %v3237
    %v3266 = vadd.f32 %v2955, %v3257
    %3268 = vset.pattern.permute.xlu0 0
    %3269 = vperm.xlu0 %3268, %v748
    %v3270 = vpop.permute.xlu0 %3269
    %v3272 = vadd.f32 %v3259, %v3270
    %v3273 = vadd.f32 %v3260, %v3270
    %v3274 = vadd.f32 %v3261, %v3270
    %v3275 = vadd.f32 %v3262, %v3270
    %v3276 = vadd.f32 %v3263, %v3270
    %v3277 = vadd.f32 %v3264, %v3270
    %v3278 = vadd.f32 %v3265, %v3270
    %v3279 = vadd.f32 %v3266, %v3270
    %v3280 = vmax.f32 %v3272, 0.0
    %v3281 = vmax.f32 %v3273, 0.0
    %v3282 = vmax.f32 %v3274, 0.0
    %v3283 = vmax.f32 %v3275, 0.0
    %v3284 = vmax.f32 %v3276, 0.0
    %v3285 = vmax.f32 %v3277, 0.0
    %v3286 = vmax.f32 %v3278, 0.0
    %v3287 = vmax.f32 %v3279, 0.0
    %3296 = vrot.lane.b32.xlu0 %v3280, 33
    %v3297 = vpop.permute.xlu0 %3296
    %3298 = vrot.lane.b32.xlu0 %v3281, 33
    %v3299 = vpop.permute.xlu0 %3298
    %3300 = vrot.lane.b32.xlu0 %v3282, 33
    %v3301 = vpop.permute.xlu0 %3300
    %3302 = vrot.lane.b32.xlu0 %v3283, 33
    %v3303 = vpop.permute.xlu0 %3302
    %3304 = vrot.lane.b32.xlu0 %v3284, 33
    %v3305 = vpop.permute.xlu0 %3304
    %3306 = vrot.lane.b32.xlu0 %v3285, 33
    %v3307 = vpop.permute.xlu0 %3306
    %3308 = vrot.lane.b32.xlu0 %v3286, 33
    %v3309 = vpop.permute.xlu0 %3308
    %3310 = vrot.lane.b32.xlu0 %v3287, 33
    %v3311 = vpop.permute.xlu0 %3310
    %v3312 = vsel %vm57, %v3297, %v3299
    %v3313 = vsel %vm57, %v3299, %v3301
    %v3314 = vsel %vm57, %v3301, %v3303
    %v3315 = vsel %vm57, %v3303, %v3305
    %v3316 = vsel %vm57, %v3305, %v3307
    %v3317 = vsel %vm57, %v3307, %v3309
    %v3318 = vsel %vm57, %v3309, %v3311
    %3328 = vst.msk [vmem:[#allocation2] sm:$0xff] %vm681, %v3297
    %3329 = vst [vmem:[#allocation2 + $0x8] sm:$0xff] %v3312
    %3330 = vst [vmem:[#allocation2 + $0x10] sm:$0xff] %v3313
    %3331 = vst [vmem:[#allocation2 + $0x18] sm:$0xff] %v3314
    %3332 = vst [vmem:[#allocation2 + $0x20] sm:$0xff] %v3315
    %3333 = vst [vmem:[#allocation2 + $0x28] sm:$0xff] %v3316
    %3334 = vst [vmem:[#allocation2 + $0x30] sm:$0xff] %v3317
    %3335 = vst [vmem:[#allocation2 + $0x38] sm:$0xff] %v3318
    %3336 = vst.msk [vmem:[#allocation2 + $0x40] sm:$0xff] %vm57, %v3311
    %s3337 = scalar_lea.vmem %s6, 8
    %v3338 = vld [vmem:[%s3337] sm:$0xff]
    %v3339 = vld [vmem:[#allocation2] sm:$0xff]
    %v3340 = vld [vmem:[#allocation2 + $0x8] sm:$0xff]
    %v3341 = vld [vmem:[#allocation2 + $0x10] sm:$0xff]
    %v3342 = vld [vmem:[#allocation2 + $0x18] sm:$0xff]
    %v3343 = vld [vmem:[#allocation2 + $0x20] sm:$0xff]
    %v3344 = vld [vmem:[#allocation2 + $0x28] sm:$0xff]
    %v3345 = vld [vmem:[#allocation2 + $0x30] sm:$0xff]
    %v3346 = vld [vmem:[#allocation2 + $0x38] sm:$0xff]
    %v3347 = vld [vmem:[#allocation6] ss:$2 sm:$0xff]
    %v3349 = vperm.slane %v3347, 0
    %v3350 = vperm.slane %v3347, 1
    %v3351 = vperm.slane %v3347, 2
    %v3352 = vperm.slane %v3347, 3
    %v3353 = vperm.slane %v3347, 4
    %v3354 = vperm.slane %v3347, 5
    %v3355 = vperm.slane %v3347, 6
    %v3356 = vperm.slane %v3347, 7
    %v3365 = vmul.f32 %v3339, %v3349
    %v3366 = vmul.f32 %v3340, %v3350
    %v3367 = vmul.f32 %v3341, %v3351
    %v3368 = vmul.f32 %v3342, %v3352
    %v3369 = vmul.f32 %v3343, %v3353
    %v3370 = vmul.f32 %v3344, %v3354
    %v3371 = vmul.f32 %v3345, %v3355
    %v3372 = vmul.f32 %v3346, %v3356
    %v3373 = vld [vmem:[%s5] sm:$0xff]
    %v3374 = vld [vmem:[#allocation2 + $0x40] sm:$0xff]
    %s3375 = scalar_lea.vmem %s5, 8
    %v3376 = vld [vmem:[%s3375] sm:$0xff]
    %3386 = vrot.lane.b32.xlu0 %v3339, 127
    %v3387 = vpop.permute.xlu0 %3386
    %3388 = vrot.lane.b32.xlu0 %v3340, 127
    %v3389 = vpop.permute.xlu0 %3388
    %3390 = vrot.lane.b32.xlu0 %v3341, 127
    %v3391 = vpop.permute.xlu0 %3390
    %3392 = vrot.lane.b32.xlu0 %v3342, 127
    %v3393 = vpop.permute.xlu0 %3392
    %3394 = vrot.lane.b32.xlu0 %v3343, 127
    %v3395 = vpop.permute.xlu0 %3394
    %3396 = vrot.lane.b32.xlu0 %v3344, 127
    %v3397 = vpop.permute.xlu0 %3396
    %3398 = vrot.lane.b32.xlu0 %v3345, 127
    %v3399 = vpop.permute.xlu0 %3398
    %3400 = vrot.lane.b32.xlu0 %v3346, 127
    %v3401 = vpop.permute.xlu0 %3400
    %3402 = vrot.lane.b32.xlu0 %v3374, 127
    %v3403 = vpop.permute.xlu0 %3402
    %v3404 = vsel %vm858, %v3387, %v3389
    %v3405 = vsel %vm858, %v3389, %v3391
    %v3406 = vsel %vm858, %v3391, %v3393
    %v3407 = vsel %vm858, %v3393, %v3395
    %v3408 = vsel %vm858, %v3395, %v3397
    %v3409 = vsel %vm858, %v3397, %v3399
    %v3410 = vsel %vm858, %v3399, %v3401
    %v3411 = vsel %vm858, %v3401, %v3403
    %vm3420 = vcmask 64512
    %v3422 = vsel %vm3420, %v3376, 0
    %3424 = vmatpush.msra.mxu0 0.0
    %3425 = vmatpush.msra.mxu0 0.0
    %3426 = vmatpush.msra.mxu0 0.0
    %3427 = vmatpush.msra.mxu0 0.0
    %3428 = vmatpush.msra.mxu0 0.0
    %3429 = vmatpush.msra.mxu0 0.0
    %3430 = vmatpush.msra.mxu0 0.0
    %3431 = vmatpush.msra.mxu0 0.0
    %3432 = vmatpush.msra.mxu0 0.0
    %3433 = vmatpush.msra.mxu0 0.0
    %3434 = vmatpush.msra.mxu0 0.0
    %3435 = vmatpush.msra.mxu0 0.0
    %3436 = vmatpush.msra.mxu0 0.0
    %3437 = vmatpush.msra.mxu0 0.0
    %3438 = vmatpush.msra.mxu0 0.0
    %3439 = vmatpush.msra.mxu0 %v3404
    %3440 = vmatmul.f32.gmra.mxu0 %v3422
    %v3441 = vpop.f32.mrf.mxu0
    %v3442 = vadd.f32 0.0, %v3441
    %3443 = vdwg.mxu0
    %3444 = vmatpush.msra.mxu0 0.0
    %3445 = vmatpush.msra.mxu0 0.0
    %3446 = vmatpush.msra.mxu0 0.0
    %3447 = vmatpush.msra.mxu0 0.0
    %3448 = vmatpush.msra.mxu0 0.0
    %3449 = vmatpush.msra.mxu0 0.0
    %3450 = vmatpush.msra.mxu0 0.0
    %3451 = vmatpush.msra.mxu0 0.0
    %3452 = vmatpush.msra.mxu0 0.0
    %3453 = vmatpush.msra.mxu0 0.0
    %3454 = vmatpush.msra.mxu0 0.0
    %3455 = vmatpush.msra.mxu0 0.0
    %3456 = vmatpush.msra.mxu0 0.0
    %3457 = vmatpush.msra.mxu0 0.0
    %3458 = vmatpush.msra.mxu0 0.0
    %3459 = vmatpush.msra.mxu0 %v3405
    %3460 = vmatmul.f32.gmra.mxu0 %v3422
    %v3461 = vpop.f32.mrf.mxu0
    %v3462 = vadd.f32 0.0, %v3461
    %3463 = vdwg.mxu0
    %3464 = vmatpush.msra.mxu0 0.0
    %3465 = vmatpush.msra.mxu0 0.0
    %3466 = vmatpush.msra.mxu0 0.0
    %3467 = vmatpush.msra.mxu0 0.0
    %3468 = vmatpush.msra.mxu0 0.0
    %3469 = vmatpush.msra.mxu0 0.0
    %3470 = vmatpush.msra.mxu0 0.0
    %3471 = vmatpush.msra.mxu0 0.0
    %3472 = vmatpush.msra.mxu0 0.0
    %3473 = vmatpush.msra.mxu0 0.0
    %3474 = vmatpush.msra.mxu0 0.0
    %3475 = vmatpush.msra.mxu0 0.0
    %3476 = vmatpush.msra.mxu0 0.0
    %3477 = vmatpush.msra.mxu0 0.0
    %3478 = vmatpush.msra.mxu0 0.0
    %3479 = vmatpush.msra.mxu0 %v3406
    %3480 = vmatmul.f32.gmra.mxu0 %v3422
    %v3481 = vpop.f32.mrf.mxu0
    %v3482 = vadd.f32 0.0, %v3481
    %3483 = vdwg.mxu0
    %3484 = vmatpush.msra.mxu0 0.0
    %3485 = vmatpush.msra.mxu0 0.0
    %3486 = vmatpush.msra.mxu0 0.0
    %3487 = vmatpush.msra.mxu0 0.0
    %3488 = vmatpush.msra.mxu0 0.0
    %3489 = vmatpush.msra.mxu0 0.0
    %3490 = vmatpush.msra.mxu0 0.0
    %3491 = vmatpush.msra.mxu0 0.0
    %3492 = vmatpush.msra.mxu0 0.0
    %3493 = vmatpush.msra.mxu0 0.0
    %3494 = vmatpush.msra.mxu0 0.0
    %3495 = vmatpush.msra.mxu0 0.0
    %3496 = vmatpush.msra.mxu0 0.0
    %3497 = vmatpush.msra.mxu0 0.0
    %3498 = vmatpush.msra.mxu0 0.0
    %3499 = vmatpush.msra.mxu0 %v3407
    %3500 = vmatmul.f32.gmra.mxu0 %v3422
    %v3501 = vpop.f32.mrf.mxu0
    %v3502 = vadd.f32 0.0, %v3501
    %3503 = vdwg.mxu0
    %3504 = vmatpush.msra.mxu0 0.0
    %3505 = vmatpush.msra.mxu0 0.0
    %3506 = vmatpush.msra.mxu0 0.0
    %3507 = vmatpush.msra.mxu0 0.0
    %3508 = vmatpush.msra.mxu0 0.0
    %3509 = vmatpush.msra.mxu0 0.0
    %3510 = vmatpush.msra.mxu0 0.0
    %3511 = vmatpush.msra.mxu0 0.0
    %3512 = vmatpush.msra.mxu0 0.0
    %3513 = vmatpush.msra.mxu0 0.0
    %3514 = vmatpush.msra.mxu0 0.0
    %3515 = vmatpush.msra.mxu0 0.0
    %3516 = vmatpush.msra.mxu0 0.0
    %3517 = vmatpush.msra.mxu0 0.0
    %3518 = vmatpush.msra.mxu0 0.0
    %3519 = vmatpush.msra.mxu0 %v3408
    %3520 = vmatmul.f32.gmra.mxu0 %v3422
    %v3521 = vpop.f32.mrf.mxu0
    %v3522 = vadd.f32 0.0, %v3521
    %3523 = vdwg.mxu0
    %3524 = vmatpush.msra.mxu0 0.0
    %3525 = vmatpush.msra.mxu0 0.0
    %3526 = vmatpush.msra.mxu0 0.0
    %3527 = vmatpush.msra.mxu0 0.0
    %3528 = vmatpush.msra.mxu0 0.0
    %3529 = vmatpush.msra.mxu0 0.0
    %3530 = vmatpush.msra.mxu0 0.0
    %3531 = vmatpush.msra.mxu0 0.0
    %3532 = vmatpush.msra.mxu0 0.0
    %3533 = vmatpush.msra.mxu0 0.0
    %3534 = vmatpush.msra.mxu0 0.0
    %3535 = vmatpush.msra.mxu0 0.0
    %3536 = vmatpush.msra.mxu0 0.0
    %3537 = vmatpush.msra.mxu0 0.0
    %3538 = vmatpush.msra.mxu0 0.0
    %3539 = vmatpush.msra.mxu0 %v3409
    %3540 = vmatmul.f32.gmra.mxu0 %v3422
    %v3541 = vpop.f32.mrf.mxu0
    %v3542 = vadd.f32 0.0, %v3541
    %3543 = vdwg.mxu0
    %3544 = vmatpush.msra.mxu0 0.0
    %3545 = vmatpush.msra.mxu0 0.0
    %3546 = vmatpush.msra.mxu0 0.0
    %3547 = vmatpush.msra.mxu0 0.0
    %3548 = vmatpush.msra.mxu0 0.0
    %3549 = vmatpush.msra.mxu0 0.0
    %3550 = vmatpush.msra.mxu0 0.0
    %3551 = vmatpush.msra.mxu0 0.0
    %3552 = vmatpush.msra.mxu0 0.0
    %3553 = vmatpush.msra.mxu0 0.0
    %3554 = vmatpush.msra.mxu0 0.0
    %3555 = vmatpush.msra.mxu0 0.0
    %3556 = vmatpush.msra.mxu0 0.0
    %3557 = vmatpush.msra.mxu0 0.0
    %3558 = vmatpush.msra.mxu0 0.0
    %3559 = vmatpush.msra.mxu0 %v3410
    %3560 = vmatmul.f32.gmra.mxu0 %v3422
    %v3561 = vpop.f32.mrf.mxu0
    %v3562 = vadd.f32 0.0, %v3561
    %3563 = vdwg.mxu0
    %3564 = vmatpush.msra.mxu0 0.0
    %3565 = vmatpush.msra.mxu0 0.0
    %3566 = vmatpush.msra.mxu0 0.0
    %3567 = vmatpush.msra.mxu0 0.0
    %3568 = vmatpush.msra.mxu0 0.0
    %3569 = vmatpush.msra.mxu0 0.0
    %3570 = vmatpush.msra.mxu0 0.0
    %3571 = vmatpush.msra.mxu0 0.0
    %3572 = vmatpush.msra.mxu0 0.0
    %3573 = vmatpush.msra.mxu0 0.0
    %3574 = vmatpush.msra.mxu0 0.0
    %3575 = vmatpush.msra.mxu0 0.0
    %3576 = vmatpush.msra.mxu0 0.0
    %3577 = vmatpush.msra.mxu0 0.0
    %3578 = vmatpush.msra.mxu0 0.0
    %3579 = vmatpush.msra.mxu0 %v3411
    %3580 = vmatmul.f32.gmra.mxu0 %v3422
    %v3581 = vpop.f32.mrf.mxu0
    %v3582 = vadd.f32 0.0, %v3581
    %3583 = vdwg.mxu0
    %v3585 = vsel %vm3420, %v3373, 0
    %3587 = vmatpush.msra.mxu0 0.0
    %3588 = vmatpush.msra.mxu0 0.0
    %3589 = vmatpush.msra.mxu0 0.0
    %3590 = vmatpush.msra.mxu0 0.0
    %3591 = vmatpush.msra.mxu0 0.0
    %3592 = vmatpush.msra.mxu0 0.0
    %3593 = vmatpush.msra.mxu0 0.0
    %3594 = vmatpush.msra.mxu0 0.0
    %3595 = vmatpush.msra.mxu0 0.0
    %3596 = vmatpush.msra.mxu0 0.0
    %3597 = vmatpush.msra.mxu0 0.0
    %3598 = vmatpush.msra.mxu0 0.0
    %3599 = vmatpush.msra.mxu0 0.0
    %3600 = vmatpush.msra.mxu0 0.0
    %3601 = vmatpush.msra.mxu0 0.0
    %3602 = vmatpush.msra.mxu0 %v3365
    %3603 = vmatmul.f32.gmra.mxu0 %v3585
    %v3604 = vpop.f32.mrf.mxu0
    %v3605 = vadd.f32 %v3442, %v3604
    %3606 = vdwg.mxu0
    %3607 = vmatpush.msra.mxu0 0.0
    %3608 = vmatpush.msra.mxu0 0.0
    %3609 = vmatpush.msra.mxu0 0.0
    %3610 = vmatpush.msra.mxu0 0.0
    %3611 = vmatpush.msra.mxu0 0.0
    %3612 = vmatpush.msra.mxu0 0.0
    %3613 = vmatpush.msra.mxu0 0.0
    %3614 = vmatpush.msra.mxu0 0.0
    %3615 = vmatpush.msra.mxu0 0.0
    %3616 = vmatpush.msra.mxu0 0.0
    %3617 = vmatpush.msra.mxu0 0.0
    %3618 = vmatpush.msra.mxu0 0.0
    %3619 = vmatpush.msra.mxu0 0.0
    %3620 = vmatpush.msra.mxu0 0.0
    %3621 = vmatpush.msra.mxu0 0.0
    %3622 = vmatpush.msra.mxu0 %v3366
    %3623 = vmatmul.f32.gmra.mxu0 %v3585
    %v3624 = vpop.f32.mrf.mxu0
    %v3625 = vadd.f32 %v3462, %v3624
    %3626 = vdwg.mxu0
    %3627 = vmatpush.msra.mxu0 0.0
    %3628 = vmatpush.msra.mxu0 0.0
    %3629 = vmatpush.msra.mxu0 0.0
    %3630 = vmatpush.msra.mxu0 0.0
    %3631 = vmatpush.msra.mxu0 0.0
    %3632 = vmatpush.msra.mxu0 0.0
    %3633 = vmatpush.msra.mxu0 0.0
    %3634 = vmatpush.msra.mxu0 0.0
    %3635 = vmatpush.msra.mxu0 0.0
    %3636 = vmatpush.msra.mxu0 0.0
    %3637 = vmatpush.msra.mxu0 0.0
    %3638 = vmatpush.msra.mxu0 0.0
    %3639 = vmatpush.msra.mxu0 0.0
    %3640 = vmatpush.msra.mxu0 0.0
    %3641 = vmatpush.msra.mxu0 0.0
    %3642 = vmatpush.msra.mxu0 %v3367
    %3643 = vmatmul.f32.gmra.mxu0 %v3585
    %v3644 = vpop.f32.mrf.mxu0
    %v3645 = vadd.f32 %v3482, %v3644
    %3646 = vdwg.mxu0
    %3647 = vmatpush.msra.mxu0 0.0
    %3648 = vmatpush.msra.mxu0 0.0
    %3649 = vmatpush.msra.mxu0 0.0
    %3650 = vmatpush.msra.mxu0 0.0
    %3651 = vmatpush.msra.mxu0 0.0
    %3652 = vmatpush.msra.mxu0 0.0
    %3653 = vmatpush.msra.mxu0 0.0
    %3654 = vmatpush.msra.mxu0 0.0
    %3655 = vmatpush.msra.mxu0 0.0
    %3656 = vmatpush.msra.mxu0 0.0
    %3657 = vmatpush.msra.mxu0 0.0
    %3658 = vmatpush.msra.mxu0 0.0
    %3659 = vmatpush.msra.mxu0 0.0
    %3660 = vmatpush.msra.mxu0 0.0
    %3661 = vmatpush.msra.mxu0 0.0
    %3662 = vmatpush.msra.mxu0 %v3368
    %3663 = vmatmul.f32.gmra.mxu0 %v3585
    %v3664 = vpop.f32.mrf.mxu0
    %v3665 = vadd.f32 %v3502, %v3664
    %3666 = vdwg.mxu0
    %3667 = vmatpush.msra.mxu0 0.0
    %3668 = vmatpush.msra.mxu0 0.0
    %3669 = vmatpush.msra.mxu0 0.0
    %3670 = vmatpush.msra.mxu0 0.0
    %3671 = vmatpush.msra.mxu0 0.0
    %3672 = vmatpush.msra.mxu0 0.0
    %3673 = vmatpush.msra.mxu0 0.0
    %3674 = vmatpush.msra.mxu0 0.0
    %3675 = vmatpush.msra.mxu0 0.0
    %3676 = vmatpush.msra.mxu0 0.0
    %3677 = vmatpush.msra.mxu0 0.0
    %3678 = vmatpush.msra.mxu0 0.0
    %3679 = vmatpush.msra.mxu0 0.0
    %3680 = vmatpush.msra.mxu0 0.0
    %3681 = vmatpush.msra.mxu0 0.0
    %3682 = vmatpush.msra.mxu0 %v3369
    %3683 = vmatmul.f32.gmra.mxu0 %v3585
    %v3684 = vpop.f32.mrf.mxu0
    %v3685 = vadd.f32 %v3522, %v3684
    %3686 = vdwg.mxu0
    %3687 = vmatpush.msra.mxu0 0.0
    %3688 = vmatpush.msra.mxu0 0.0
    %3689 = vmatpush.msra.mxu0 0.0
    %3690 = vmatpush.msra.mxu0 0.0
    %3691 = vmatpush.msra.mxu0 0.0
    %3692 = vmatpush.msra.mxu0 0.0
    %3693 = vmatpush.msra.mxu0 0.0
    %3694 = vmatpush.msra.mxu0 0.0
    %3695 = vmatpush.msra.mxu0 0.0
    %3696 = vmatpush.msra.mxu0 0.0
    %3697 = vmatpush.msra.mxu0 0.0
    %3698 = vmatpush.msra.mxu0 0.0
    %3699 = vmatpush.msra.mxu0 0.0
    %3700 = vmatpush.msra.mxu0 0.0
    %3701 = vmatpush.msra.mxu0 0.0
    %3702 = vmatpush.msra.mxu0 %v3370
    %3703 = vmatmul.f32.gmra.mxu0 %v3585
    %v3704 = vpop.f32.mrf.mxu0
    %v3705 = vadd.f32 %v3542, %v3704
    %3706 = vdwg.mxu0
    %3707 = vmatpush.msra.mxu0 0.0
    %3708 = vmatpush.msra.mxu0 0.0
    %3709 = vmatpush.msra.mxu0 0.0
    %3710 = vmatpush.msra.mxu0 0.0
    %3711 = vmatpush.msra.mxu0 0.0
    %3712 = vmatpush.msra.mxu0 0.0
    %3713 = vmatpush.msra.mxu0 0.0
    %3714 = vmatpush.msra.mxu0 0.0
    %3715 = vmatpush.msra.mxu0 0.0
    %3716 = vmatpush.msra.mxu0 0.0
    %3717 = vmatpush.msra.mxu0 0.0
    %3718 = vmatpush.msra.mxu0 0.0
    %3719 = vmatpush.msra.mxu0 0.0
    %3720 = vmatpush.msra.mxu0 0.0
    %3721 = vmatpush.msra.mxu0 0.0
    %3722 = vmatpush.msra.mxu0 %v3371
    %3723 = vmatmul.f32.gmra.mxu0 %v3585
    %v3724 = vpop.f32.mrf.mxu0
    %v3725 = vadd.f32 %v3562, %v3724
    %3726 = vdwg.mxu0
    %3727 = vmatpush.msra.mxu0 0.0
    %3728 = vmatpush.msra.mxu0 0.0
    %3729 = vmatpush.msra.mxu0 0.0
    %3730 = vmatpush.msra.mxu0 0.0
    %3731 = vmatpush.msra.mxu0 0.0
    %3732 = vmatpush.msra.mxu0 0.0
    %3733 = vmatpush.msra.mxu0 0.0
    %3734 = vmatpush.msra.mxu0 0.0
    %3735 = vmatpush.msra.mxu0 0.0
    %3736 = vmatpush.msra.mxu0 0.0
    %3737 = vmatpush.msra.mxu0 0.0
    %3738 = vmatpush.msra.mxu0 0.0
    %3739 = vmatpush.msra.mxu0 0.0
    %3740 = vmatpush.msra.mxu0 0.0
    %3741 = vmatpush.msra.mxu0 0.0
    %3742 = vmatpush.msra.mxu0 %v3372
    %3743 = vmatmul.f32.gmra.mxu0 %v3585
    %v3744 = vpop.f32.mrf.mxu0
    %v3745 = vadd.f32 %v3582, %v3744
    %3746 = vdwg.mxu0
    %v3747 = vld [vmem:[%s1218] ss:$2 sm:$0xff]
    %v3749 = vperm.slane %v3747, 0
    %v3750 = vperm.slane %v3747, 1
    %v3751 = vperm.slane %v3747, 2
    %v3752 = vperm.slane %v3747, 3
    %v3753 = vperm.slane %v3747, 4
    %v3754 = vperm.slane %v3747, 5
    %v3755 = vperm.slane %v3747, 6
    %v3756 = vperm.slane %v3747, 7
    %3757 = vrot.lane.b32.xlu0 %v3749, 2
    %v3758 = vpop.permute.xlu0 %3757
    %3759 = vrot.lane.b32.xlu0 %v3750, 2
    %v3760 = vpop.permute.xlu0 %3759
    %3761 = vrot.lane.b32.xlu0 %v3751, 2
    %v3762 = vpop.permute.xlu0 %3761
    %3763 = vrot.lane.b32.xlu0 %v3752, 2
    %v3764 = vpop.permute.xlu0 %3763
    %3765 = vrot.lane.b32.xlu0 %v3753, 2
    %v3766 = vpop.permute.xlu0 %3765
    %3767 = vrot.lane.b32.xlu0 %v3754, 2
    %v3768 = vpop.permute.xlu0 %3767
    %3769 = vrot.lane.b32.xlu0 %v3755, 2
    %v3770 = vpop.permute.xlu0 %3769
    %3771 = vrot.lane.b32.xlu0 %v3756, 2
    %v3772 = vpop.permute.xlu0 %3771
    %v3773 = vsel %vm1245, %v3758, %v3760
    %v3774 = vsel %vm1245, %v3760, %v3762
    %v3775 = vsel %vm1245, %v3762, %v3764
    %v3776 = vsel %vm1245, %v3764, %v3766
    %v3777 = vsel %vm1245, %v3766, %v3768
    %v3778 = vsel %vm1245, %v3768, %v3770
    %v3779 = vsel %vm1245, %v3770, %v3772
    %v3789 = vmul.f32 %v3339, %v3758
    %v3790 = vmul.f32 %v3340, %v3773
    %v3791 = vmul.f32 %v3341, %v3774
    %v3792 = vmul.f32 %v3342, %v3775
    %v3793 = vmul.f32 %v3343, %v3776
    %v3794 = vmul.f32 %v3344, %v3777
    %v3795 = vmul.f32 %v3345, %v3778
    %v3796 = vmul.f32 %v3346, %v3779
    %v3797 = vmul.f32 %v3374, %v3772
    %s3798 = scalar_lea.vmem %s5, 16
    %v3799 = vld [vmem:[%s3798] sm:$0xff]
    %3809 = vrot.lane.b32.xlu0 %v3789, 126
    %v3810 = vpop.permute.xlu0 %3809
    %3811 = vrot.lane.b32.xlu0 %v3790, 126
    %v3812 = vpop.permute.xlu0 %3811
    %3813 = vrot.lane.b32.xlu0 %v3791, 126
    %v3814 = vpop.permute.xlu0 %3813
    %3815 = vrot.lane.b32.xlu0 %v3792, 126
    %v3816 = vpop.permute.xlu0 %3815
    %3817 = vrot.lane.b32.xlu0 %v3793, 126
    %v3818 = vpop.permute.xlu0 %3817
    %3819 = vrot.lane.b32.xlu0 %v3794, 126
    %v3820 = vpop.permute.xlu0 %3819
    %3821 = vrot.lane.b32.xlu0 %v3795, 126
    %v3822 = vpop.permute.xlu0 %3821
    %3823 = vrot.lane.b32.xlu0 %v3796, 126
    %v3824 = vpop.permute.xlu0 %3823
    %3825 = vrot.lane.b32.xlu0 %v3797, 126
    %v3826 = vpop.permute.xlu0 %3825
    %v3827 = vsel %vm1336, %v3810, %v3812
    %v3828 = vsel %vm1336, %v3812, %v3814
    %v3829 = vsel %vm1336, %v3814, %v3816
    %v3830 = vsel %vm1336, %v3816, %v3818
    %v3831 = vsel %vm1336, %v3818, %v3820
    %v3832 = vsel %vm1336, %v3820, %v3822
    %v3833 = vsel %vm1336, %v3822, %v3824
    %v3834 = vsel %vm1336, %v3824, %v3826
    %v3844 = vsel %vm3420, %v3799, 0
    %3846 = vmatpush.msra.mxu0 0.0
    %3847 = vmatpush.msra.mxu0 0.0
    %3848 = vmatpush.msra.mxu0 0.0
    %3849 = vmatpush.msra.mxu0 0.0
    %3850 = vmatpush.msra.mxu0 0.0
    %3851 = vmatpush.msra.mxu0 0.0
    %3852 = vmatpush.msra.mxu0 0.0
    %3853 = vmatpush.msra.mxu0 0.0
    %3854 = vmatpush.msra.mxu0 0.0
    %3855 = vmatpush.msra.mxu0 0.0
    %3856 = vmatpush.msra.mxu0 0.0
    %3857 = vmatpush.msra.mxu0 0.0
    %3858 = vmatpush.msra.mxu0 0.0
    %3859 = vmatpush.msra.mxu0 0.0
    %3860 = vmatpush.msra.mxu0 0.0
    %3861 = vmatpush.msra.mxu0 %v3827
    %3862 = vmatmul.f32.gmra.mxu0 %v3844
    %v3863 = vpop.f32.mrf.mxu0
    %v3864 = vadd.f32 0.0, %v3863
    %3865 = vdwg.mxu0
    %3866 = vmatpush.msra.mxu0 0.0
    %3867 = vmatpush.msra.mxu0 0.0
    %3868 = vmatpush.msra.mxu0 0.0
    %3869 = vmatpush.msra.mxu0 0.0
    %3870 = vmatpush.msra.mxu0 0.0
    %3871 = vmatpush.msra.mxu0 0.0
    %3872 = vmatpush.msra.mxu0 0.0
    %3873 = vmatpush.msra.mxu0 0.0
    %3874 = vmatpush.msra.mxu0 0.0
    %3875 = vmatpush.msra.mxu0 0.0
    %3876 = vmatpush.msra.mxu0 0.0
    %3877 = vmatpush.msra.mxu0 0.0
    %3878 = vmatpush.msra.mxu0 0.0
    %3879 = vmatpush.msra.mxu0 0.0
    %3880 = vmatpush.msra.mxu0 0.0
    %3881 = vmatpush.msra.mxu0 %v3828
    %3882 = vmatmul.f32.gmra.mxu0 %v3844
    %v3883 = vpop.f32.mrf.mxu0
    %v3884 = vadd.f32 0.0, %v3883
    %3885 = vdwg.mxu0
    %3886 = vmatpush.msra.mxu0 0.0
    %3887 = vmatpush.msra.mxu0 0.0
    %3888 = vmatpush.msra.mxu0 0.0
    %3889 = vmatpush.msra.mxu0 0.0
    %3890 = vmatpush.msra.mxu0 0.0
    %3891 = vmatpush.msra.mxu0 0.0
    %3892 = vmatpush.msra.mxu0 0.0
    %3893 = vmatpush.msra.mxu0 0.0
    %3894 = vmatpush.msra.mxu0 0.0
    %3895 = vmatpush.msra.mxu0 0.0
    %3896 = vmatpush.msra.mxu0 0.0
    %3897 = vmatpush.msra.mxu0 0.0
    %3898 = vmatpush.msra.mxu0 0.0
    %3899 = vmatpush.msra.mxu0 0.0
    %3900 = vmatpush.msra.mxu0 0.0
    %3901 = vmatpush.msra.mxu0 %v3829
    %3902 = vmatmul.f32.gmra.mxu0 %v3844
    %v3903 = vpop.f32.mrf.mxu0
    %v3904 = vadd.f32 0.0, %v3903
    %3905 = vdwg.mxu0
    %3906 = vmatpush.msra.mxu0 0.0
    %3907 = vmatpush.msra.mxu0 0.0
    %3908 = vmatpush.msra.mxu0 0.0
    %3909 = vmatpush.msra.mxu0 0.0
    %3910 = vmatpush.msra.mxu0 0.0
    %3911 = vmatpush.msra.mxu0 0.0
    %3912 = vmatpush.msra.mxu0 0.0
    %3913 = vmatpush.msra.mxu0 0.0
    %3914 = vmatpush.msra.mxu0 0.0
    %3915 = vmatpush.msra.mxu0 0.0
    %3916 = vmatpush.msra.mxu0 0.0
    %3917 = vmatpush.msra.mxu0 0.0
    %3918 = vmatpush.msra.mxu0 0.0
    %3919 = vmatpush.msra.mxu0 0.0
    %3920 = vmatpush.msra.mxu0 0.0
    %3921 = vmatpush.msra.mxu0 %v3830
    %3922 = vmatmul.f32.gmra.mxu0 %v3844
    %v3923 = vpop.f32.mrf.mxu0
    %v3924 = vadd.f32 0.0, %v3923
    %3925 = vdwg.mxu0
    %3926 = vmatpush.msra.mxu0 0.0
    %3927 = vmatpush.msra.mxu0 0.0
    %3928 = vmatpush.msra.mxu0 0.0
    %3929 = vmatpush.msra.mxu0 0.0
    %3930 = vmatpush.msra.mxu0 0.0
    %3931 = vmatpush.msra.mxu0 0.0
    %3932 = vmatpush.msra.mxu0 0.0
    %3933 = vmatpush.msra.mxu0 0.0
    %3934 = vmatpush.msra.mxu0 0.0
    %3935 = vmatpush.msra.mxu0 0.0
    %3936 = vmatpush.msra.mxu0 0.0
    %3937 = vmatpush.msra.mxu0 0.0
    %3938 = vmatpush.msra.mxu0 0.0
    %3939 = vmatpush.msra.mxu0 0.0
    %3940 = vmatpush.msra.mxu0 0.0
    %3941 = vmatpush.msra.mxu0 %v3831
    %3942 = vmatmul.f32.gmra.mxu0 %v3844
    %v3943 = vpop.f32.mrf.mxu0
    %v3944 = vadd.f32 0.0, %v3943
    %3945 = vdwg.mxu0
    %3946 = vmatpush.msra.mxu0 0.0
    %3947 = vmatpush.msra.mxu0 0.0
    %3948 = vmatpush.msra.mxu0 0.0
    %3949 = vmatpush.msra.mxu0 0.0
    %3950 = vmatpush.msra.mxu0 0.0
    %3951 = vmatpush.msra.mxu0 0.0
    %3952 = vmatpush.msra.mxu0 0.0
    %3953 = vmatpush.msra.mxu0 0.0
    %3954 = vmatpush.msra.mxu0 0.0
    %3955 = vmatpush.msra.mxu0 0.0
    %3956 = vmatpush.msra.mxu0 0.0
    %3957 = vmatpush.msra.mxu0 0.0
    %3958 = vmatpush.msra.mxu0 0.0
    %3959 = vmatpush.msra.mxu0 0.0
    %3960 = vmatpush.msra.mxu0 0.0
    %3961 = vmatpush.msra.mxu0 %v3832
    %3962 = vmatmul.f32.gmra.mxu0 %v3844
    %v3963 = vpop.f32.mrf.mxu0
    %v3964 = vadd.f32 0.0, %v3963
    %3965 = vdwg.mxu0
    %3966 = vmatpush.msra.mxu0 0.0
    %3967 = vmatpush.msra.mxu0 0.0
    %3968 = vmatpush.msra.mxu0 0.0
    %3969 = vmatpush.msra.mxu0 0.0
    %3970 = vmatpush.msra.mxu0 0.0
    %3971 = vmatpush.msra.mxu0 0.0
    %3972 = vmatpush.msra.mxu0 0.0
    %3973 = vmatpush.msra.mxu0 0.0
    %3974 = vmatpush.msra.mxu0 0.0
    %3975 = vmatpush.msra.mxu0 0.0
    %3976 = vmatpush.msra.mxu0 0.0
    %3977 = vmatpush.msra.mxu0 0.0
    %3978 = vmatpush.msra.mxu0 0.0
    %3979 = vmatpush.msra.mxu0 0.0
    %3980 = vmatpush.msra.mxu0 0.0
    %3981 = vmatpush.msra.mxu0 %v3833
    %3982 = vmatmul.f32.gmra.mxu0 %v3844
    %v3983 = vpop.f32.mrf.mxu0
    %v3984 = vadd.f32 0.0, %v3983
    %3985 = vdwg.mxu0
    %3986 = vmatpush.msra.mxu0 0.0
    %3987 = vmatpush.msra.mxu0 0.0
    %3988 = vmatpush.msra.mxu0 0.0
    %3989 = vmatpush.msra.mxu0 0.0
    %3990 = vmatpush.msra.mxu0 0.0
    %3991 = vmatpush.msra.mxu0 0.0
    %3992 = vmatpush.msra.mxu0 0.0
    %3993 = vmatpush.msra.mxu0 0.0
    %3994 = vmatpush.msra.mxu0 0.0
    %3995 = vmatpush.msra.mxu0 0.0
    %3996 = vmatpush.msra.mxu0 0.0
    %3997 = vmatpush.msra.mxu0 0.0
    %3998 = vmatpush.msra.mxu0 0.0
    %3999 = vmatpush.msra.mxu0 0.0
    %4000 = vmatpush.msra.mxu0 0.0
    %4001 = vmatpush.msra.mxu0 %v3834
    %4002 = vmatmul.f32.gmra.mxu0 %v3844
    %v4003 = vpop.f32.mrf.mxu0
    %v4004 = vadd.f32 0.0, %v4003
    %4005 = vdwg.mxu0
    %v4006 = vadd.f32 %v3605, %v3864
    %v4007 = vadd.f32 %v3625, %v3884
    %v4008 = vadd.f32 %v3645, %v3904
    %v4009 = vadd.f32 %v3665, %v3924
    %v4010 = vadd.f32 %v3685, %v3944
    %v4011 = vadd.f32 %v3705, %v3964
    %v4012 = vadd.f32 %v3725, %v3984
    %v4013 = vadd.f32 %v3745, %v4004
    %4014 = vrot.lane.b32.xlu0 %v3349, 32
    %v4015 = vpop.permute.xlu0 %4014
    %4016 = vrot.lane.b32.xlu0 %v3350, 32
    %v4017 = vpop.permute.xlu0 %4016
    %4018 = vrot.lane.b32.xlu0 %v3351, 32
    %v4019 = vpop.permute.xlu0 %4018
    %4020 = vrot.lane.b32.xlu0 %v3352, 32
    %v4021 = vpop.permute.xlu0 %4020
    %4022 = vrot.lane.b32.xlu0 %v3353, 32
    %v4023 = vpop.permute.xlu0 %4022
    %4024 = vrot.lane.b32.xlu0 %v3354, 32
    %v4025 = vpop.permute.xlu0 %4024
    %4026 = vrot.lane.b32.xlu0 %v3355, 32
    %v4027 = vpop.permute.xlu0 %4026
    %4028 = vrot.lane.b32.xlu0 %v3356, 32
    %v4029 = vpop.permute.xlu0 %4028
    %v4030 = vsel %vm1556, %v4015, %v4017
    %v4031 = vsel %vm1556, %v4017, %v4019
    %v4032 = vsel %vm1556, %v4019, %v4021
    %v4033 = vsel %vm1556, %v4021, %v4023
    %v4034 = vsel %vm1556, %v4023, %v4025
    %v4035 = vsel %vm1556, %v4025, %v4027
    %v4036 = vsel %vm1556, %v4027, %v4029
    %v4046 = vmul.f32 %v3339, %v4015
    %v4047 = vmul.f32 %v3340, %v4030
    %v4048 = vmul.f32 %v3341, %v4031
    %v4049 = vmul.f32 %v3342, %v4032
    %v4050 = vmul.f32 %v3343, %v4033
    %v4051 = vmul.f32 %v3344, %v4034
    %v4052 = vmul.f32 %v3345, %v4035
    %v4053 = vmul.f32 %v3346, %v4036
    %v4054 = vmul.f32 %v3374, %v4029
    %s4055 = scalar_lea.vmem %s5, 24
    %v4056 = vld [vmem:[%s4055] sm:$0xff]
    %4066 = vrot.lane.b32.xlu0 %v4046, 96
    %v4067 = vpop.permute.xlu0 %4066
    %4068 = vrot.lane.b32.xlu0 %v4047, 96
    %v4069 = vpop.permute.xlu0 %4068
    %4070 = vrot.lane.b32.xlu0 %v4048, 96
    %v4071 = vpop.permute.xlu0 %4070
    %4072 = vrot.lane.b32.xlu0 %v4049, 96
    %v4073 = vpop.permute.xlu0 %4072
    %4074 = vrot.lane.b32.xlu0 %v4050, 96
    %v4075 = vpop.permute.xlu0 %4074
    %4076 = vrot.lane.b32.xlu0 %v4051, 96
    %v4077 = vpop.permute.xlu0 %4076
    %4078 = vrot.lane.b32.xlu0 %v4052, 96
    %v4079 = vpop.permute.xlu0 %4078
    %4080 = vrot.lane.b32.xlu0 %v4053, 96
    %v4081 = vpop.permute.xlu0 %4080
    %4082 = vrot.lane.b32.xlu0 %v4054, 96
    %v4083 = vpop.permute.xlu0 %4082
    %v4084 = vsel %vm1647, %v4067, %v4069
    %v4085 = vsel %vm1647, %v4069, %v4071
    %v4086 = vsel %vm1647, %v4071, %v4073
    %v4087 = vsel %vm1647, %v4073, %v4075
    %v4088 = vsel %vm1647, %v4075, %v4077
    %v4089 = vsel %vm1647, %v4077, %v4079
    %v4090 = vsel %vm1647, %v4079, %v4081
    %v4091 = vsel %vm1647, %v4081, %v4083
    %v4101 = vsel %vm3420, %v4056, 0
    %4103 = vmatpush.msra.mxu0 0.0
    %4104 = vmatpush.msra.mxu0 0.0
    %4105 = vmatpush.msra.mxu0 0.0
    %4106 = vmatpush.msra.mxu0 0.0
    %4107 = vmatpush.msra.mxu0 0.0
    %4108 = vmatpush.msra.mxu0 0.0
    %4109 = vmatpush.msra.mxu0 0.0
    %4110 = vmatpush.msra.mxu0 0.0
    %4111 = vmatpush.msra.mxu0 0.0
    %4112 = vmatpush.msra.mxu0 0.0
    %4113 = vmatpush.msra.mxu0 0.0
    %4114 = vmatpush.msra.mxu0 0.0
    %4115 = vmatpush.msra.mxu0 0.0
    %4116 = vmatpush.msra.mxu0 0.0
    %4117 = vmatpush.msra.mxu0 0.0
    %4118 = vmatpush.msra.mxu0 %v4084
    %4119 = vmatmul.f32.gmra.mxu0 %v4101
    %v4120 = vpop.f32.mrf.mxu0
    %v4121 = vadd.f32 0.0, %v4120
    %4122 = vdwg.mxu0
    %4123 = vmatpush.msra.mxu0 0.0
    %4124 = vmatpush.msra.mxu0 0.0
    %4125 = vmatpush.msra.mxu0 0.0
    %4126 = vmatpush.msra.mxu0 0.0
    %4127 = vmatpush.msra.mxu0 0.0
    %4128 = vmatpush.msra.mxu0 0.0
    %4129 = vmatpush.msra.mxu0 0.0
    %4130 = vmatpush.msra.mxu0 0.0
    %4131 = vmatpush.msra.mxu0 0.0
    %4132 = vmatpush.msra.mxu0 0.0
    %4133 = vmatpush.msra.mxu0 0.0
    %4134 = vmatpush.msra.mxu0 0.0
    %4135 = vmatpush.msra.mxu0 0.0
    %4136 = vmatpush.msra.mxu0 0.0
    %4137 = vmatpush.msra.mxu0 0.0
    %4138 = vmatpush.msra.mxu0 %v4085
    %4139 = vmatmul.f32.gmra.mxu0 %v4101
    %v4140 = vpop.f32.mrf.mxu0
    %v4141 = vadd.f32 0.0, %v4140
    %4142 = vdwg.mxu0
    %4143 = vmatpush.msra.mxu0 0.0
    %4144 = vmatpush.msra.mxu0 0.0
    %4145 = vmatpush.msra.mxu0 0.0
    %4146 = vmatpush.msra.mxu0 0.0
    %4147 = vmatpush.msra.mxu0 0.0
    %4148 = vmatpush.msra.mxu0 0.0
    %4149 = vmatpush.msra.mxu0 0.0
    %4150 = vmatpush.msra.mxu0 0.0
    %4151 = vmatpush.msra.mxu0 0.0
    %4152 = vmatpush.msra.mxu0 0.0
    %4153 = vmatpush.msra.mxu0 0.0
    %4154 = vmatpush.msra.mxu0 0.0
    %4155 = vmatpush.msra.mxu0 0.0
    %4156 = vmatpush.msra.mxu0 0.0
    %4157 = vmatpush.msra.mxu0 0.0
    %4158 = vmatpush.msra.mxu0 %v4086
    %4159 = vmatmul.f32.gmra.mxu0 %v4101
    %v4160 = vpop.f32.mrf.mxu0
    %v4161 = vadd.f32 0.0, %v4160
    %4162 = vdwg.mxu0
    %4163 = vmatpush.msra.mxu0 0.0
    %4164 = vmatpush.msra.mxu0 0.0
    %4165 = vmatpush.msra.mxu0 0.0
    %4166 = vmatpush.msra.mxu0 0.0
    %4167 = vmatpush.msra.mxu0 0.0
    %4168 = vmatpush.msra.mxu0 0.0
    %4169 = vmatpush.msra.mxu0 0.0
    %4170 = vmatpush.msra.mxu0 0.0
    %4171 = vmatpush.msra.mxu0 0.0
    %4172 = vmatpush.msra.mxu0 0.0
    %4173 = vmatpush.msra.mxu0 0.0
    %4174 = vmatpush.msra.mxu0 0.0
    %4175 = vmatpush.msra.mxu0 0.0
    %4176 = vmatpush.msra.mxu0 0.0
    %4177 = vmatpush.msra.mxu0 0.0
    %4178 = vmatpush.msra.mxu0 %v4087
    %4179 = vmatmul.f32.gmra.mxu0 %v4101
    %v4180 = vpop.f32.mrf.mxu0
    %v4181 = vadd.f32 0.0, %v4180
    %4182 = vdwg.mxu0
    %4183 = vmatpush.msra.mxu0 0.0
    %4184 = vmatpush.msra.mxu0 0.0
    %4185 = vmatpush.msra.mxu0 0.0
    %4186 = vmatpush.msra.mxu0 0.0
    %4187 = vmatpush.msra.mxu0 0.0
    %4188 = vmatpush.msra.mxu0 0.0
    %4189 = vmatpush.msra.mxu0 0.0
    %4190 = vmatpush.msra.mxu0 0.0
    %4191 = vmatpush.msra.mxu0 0.0
    %4192 = vmatpush.msra.mxu0 0.0
    %4193 = vmatpush.msra.mxu0 0.0
    %4194 = vmatpush.msra.mxu0 0.0
    %4195 = vmatpush.msra.mxu0 0.0
    %4196 = vmatpush.msra.mxu0 0.0
    %4197 = vmatpush.msra.mxu0 0.0
    %4198 = vmatpush.msra.mxu0 %v4088
    %4199 = vmatmul.f32.gmra.mxu0 %v4101
    %v4200 = vpop.f32.mrf.mxu0
    %v4201 = vadd.f32 0.0, %v4200
    %4202 = vdwg.mxu0
    %4203 = vmatpush.msra.mxu0 0.0
    %4204 = vmatpush.msra.mxu0 0.0
    %4205 = vmatpush.msra.mxu0 0.0
    %4206 = vmatpush.msra.mxu0 0.0
    %4207 = vmatpush.msra.mxu0 0.0
    %4208 = vmatpush.msra.mxu0 0.0
    %4209 = vmatpush.msra.mxu0 0.0
    %4210 = vmatpush.msra.mxu0 0.0
    %4211 = vmatpush.msra.mxu0 0.0
    %4212 = vmatpush.msra.mxu0 0.0
    %4213 = vmatpush.msra.mxu0 0.0
    %4214 = vmatpush.msra.mxu0 0.0
    %4215 = vmatpush.msra.mxu0 0.0
    %4216 = vmatpush.msra.mxu0 0.0
    %4217 = vmatpush.msra.mxu0 0.0
    %4218 = vmatpush.msra.mxu0 %v4089
    %4219 = vmatmul.f32.gmra.mxu0 %v4101
    %v4220 = vpop.f32.mrf.mxu0
    %v4221 = vadd.f32 0.0, %v4220
    %4222 = vdwg.mxu0
    %4223 = vmatpush.msra.mxu0 0.0
    %4224 = vmatpush.msra.mxu0 0.0
    %4225 = vmatpush.msra.mxu0 0.0
    %4226 = vmatpush.msra.mxu0 0.0
    %4227 = vmatpush.msra.mxu0 0.0
    %4228 = vmatpush.msra.mxu0 0.0
    %4229 = vmatpush.msra.mxu0 0.0
    %4230 = vmatpush.msra.mxu0 0.0
    %4231 = vmatpush.msra.mxu0 0.0
    %4232 = vmatpush.msra.mxu0 0.0
    %4233 = vmatpush.msra.mxu0 0.0
    %4234 = vmatpush.msra.mxu0 0.0
    %4235 = vmatpush.msra.mxu0 0.0
    %4236 = vmatpush.msra.mxu0 0.0
    %4237 = vmatpush.msra.mxu0 0.0
    %4238 = vmatpush.msra.mxu0 %v4090
    %4239 = vmatmul.f32.gmra.mxu0 %v4101
    %v4240 = vpop.f32.mrf.mxu0
    %v4241 = vadd.f32 0.0, %v4240
    %4242 = vdwg.mxu0
    %4243 = vmatpush.msra.mxu0 0.0
    %4244 = vmatpush.msra.mxu0 0.0
    %4245 = vmatpush.msra.mxu0 0.0
    %4246 = vmatpush.msra.mxu0 0.0
    %4247 = vmatpush.msra.mxu0 0.0
    %4248 = vmatpush.msra.mxu0 0.0
    %4249 = vmatpush.msra.mxu0 0.0
    %4250 = vmatpush.msra.mxu0 0.0
    %4251 = vmatpush.msra.mxu0 0.0
    %4252 = vmatpush.msra.mxu0 0.0
    %4253 = vmatpush.msra.mxu0 0.0
    %4254 = vmatpush.msra.mxu0 0.0
    %4255 = vmatpush.msra.mxu0 0.0
    %4256 = vmatpush.msra.mxu0 0.0
    %4257 = vmatpush.msra.mxu0 0.0
    %4258 = vmatpush.msra.mxu0 %v4091
    %4259 = vmatmul.f32.gmra.mxu0 %v4101
    %v4260 = vpop.f32.mrf.mxu0
    %v4261 = vadd.f32 0.0, %v4260
    %4262 = vdwg.mxu0
    %v4263 = vadd.f32 %v4006, %v4121
    %v4264 = vadd.f32 %v4007, %v4141
    %v4265 = vadd.f32 %v4008, %v4161
    %v4266 = vadd.f32 %v4009, %v4181
    %v4267 = vadd.f32 %v4010, %v4201
    %v4268 = vadd.f32 %v4011, %v4221
    %v4269 = vadd.f32 %v4012, %v4241
    %v4270 = vadd.f32 %v4013, %v4261
    %s4271 = scalar_lea.vmem %s5, 32
    %v4272 = vld [vmem:[%s4271] sm:$0xff]
    %4273 = vrot.lane.b32.xlu0 %v3339, 95
    %v4274 = vpop.permute.xlu0 %4273
    %4275 = vrot.lane.b32.xlu0 %v3340, 95
    %v4276 = vpop.permute.xlu0 %4275
    %4277 = vrot.lane.b32.xlu0 %v3341, 95
    %v4278 = vpop.permute.xlu0 %4277
    %4279 = vrot.lane.b32.xlu0 %v3342, 95
    %v4280 = vpop.permute.xlu0 %4279
    %4281 = vrot.lane.b32.xlu0 %v3343, 95
    %v4282 = vpop.permute.xlu0 %4281
    %4283 = vrot.lane.b32.xlu0 %v3344, 95
    %v4284 = vpop.permute.xlu0 %4283
    %4285 = vrot.lane.b32.xlu0 %v3345, 95
    %v4286 = vpop.permute.xlu0 %4285
    %4287 = vrot.lane.b32.xlu0 %v3346, 95
    %v4288 = vpop.permute.xlu0 %4287
    %4289 = vrot.lane.b32.xlu0 %v3374, 95
    %v4290 = vpop.permute.xlu0 %4289
    %v4291 = vsel %vm1889, %v4274, %v4276
    %v4292 = vsel %vm1889, %v4276, %v4278
    %v4293 = vsel %vm1889, %v4278, %v4280
    %v4294 = vsel %vm1889, %v4280, %v4282
    %v4295 = vsel %vm1889, %v4282, %v4284
    %v4296 = vsel %vm1889, %v4284, %v4286
    %v4297 = vsel %vm1889, %v4286, %v4288
    %v4298 = vsel %vm1889, %v4288, %v4290
    %v4308 = vsel %vm3420, %v4272, 0
    %4310 = vmatpush.msra.mxu0 0.0
    %4311 = vmatpush.msra.mxu0 0.0
    %4312 = vmatpush.msra.mxu0 0.0
    %4313 = vmatpush.msra.mxu0 0.0
    %4314 = vmatpush.msra.mxu0 0.0
    %4315 = vmatpush.msra.mxu0 0.0
    %4316 = vmatpush.msra.mxu0 0.0
    %4317 = vmatpush.msra.mxu0 0.0
    %4318 = vmatpush.msra.mxu0 0.0
    %4319 = vmatpush.msra.mxu0 0.0
    %4320 = vmatpush.msra.mxu0 0.0
    %4321 = vmatpush.msra.mxu0 0.0
    %4322 = vmatpush.msra.mxu0 0.0
    %4323 = vmatpush.msra.mxu0 0.0
    %4324 = vmatpush.msra.mxu0 0.0
    %4325 = vmatpush.msra.mxu0 %v4291
    %4326 = vmatmul.f32.gmra.mxu0 %v4308
    %v4327 = vpop.f32.mrf.mxu0
    %v4328 = vadd.f32 0.0, %v4327
    %4329 = vdwg.mxu0
    %4330 = vmatpush.msra.mxu0 0.0
    %4331 = vmatpush.msra.mxu0 0.0
    %4332 = vmatpush.msra.mxu0 0.0
    %4333 = vmatpush.msra.mxu0 0.0
    %4334 = vmatpush.msra.mxu0 0.0
    %4335 = vmatpush.msra.mxu0 0.0
    %4336 = vmatpush.msra.mxu0 0.0
    %4337 = vmatpush.msra.mxu0 0.0
    %4338 = vmatpush.msra.mxu0 0.0
    %4339 = vmatpush.msra.mxu0 0.0
    %4340 = vmatpush.msra.mxu0 0.0
    %4341 = vmatpush.msra.mxu0 0.0
    %4342 = vmatpush.msra.mxu0 0.0
    %4343 = vmatpush.msra.mxu0 0.0
    %4344 = vmatpush.msra.mxu0 0.0
    %4345 = vmatpush.msra.mxu0 %v4292
    %4346 = vmatmul.f32.gmra.mxu0 %v4308
    %v4347 = vpop.f32.mrf.mxu0
    %v4348 = vadd.f32 0.0, %v4347
    %4349 = vdwg.mxu0
    %4350 = vmatpush.msra.mxu0 0.0
    %4351 = vmatpush.msra.mxu0 0.0
    %4352 = vmatpush.msra.mxu0 0.0
    %4353 = vmatpush.msra.mxu0 0.0
    %4354 = vmatpush.msra.mxu0 0.0
    %4355 = vmatpush.msra.mxu0 0.0
    %4356 = vmatpush.msra.mxu0 0.0
    %4357 = vmatpush.msra.mxu0 0.0
    %4358 = vmatpush.msra.mxu0 0.0
    %4359 = vmatpush.msra.mxu0 0.0
    %4360 = vmatpush.msra.mxu0 0.0
    %4361 = vmatpush.msra.mxu0 0.0
    %4362 = vmatpush.msra.mxu0 0.0
    %4363 = vmatpush.msra.mxu0 0.0
    %4364 = vmatpush.msra.mxu0 0.0
    %4365 = vmatpush.msra.mxu0 %v4293
    %4366 = vmatmul.f32.gmra.mxu0 %v4308
    %v4367 = vpop.f32.mrf.mxu0
    %v4368 = vadd.f32 0.0, %v4367
    %4369 = vdwg.mxu0
    %4370 = vmatpush.msra.mxu0 0.0
    %4371 = vmatpush.msra.mxu0 0.0
    %4372 = vmatpush.msra.mxu0 0.0
    %4373 = vmatpush.msra.mxu0 0.0
    %4374 = vmatpush.msra.mxu0 0.0
    %4375 = vmatpush.msra.mxu0 0.0
    %4376 = vmatpush.msra.mxu0 0.0
    %4377 = vmatpush.msra.mxu0 0.0
    %4378 = vmatpush.msra.mxu0 0.0
    %4379 = vmatpush.msra.mxu0 0.0
    %4380 = vmatpush.msra.mxu0 0.0
    %4381 = vmatpush.msra.mxu0 0.0
    %4382 = vmatpush.msra.mxu0 0.0
    %4383 = vmatpush.msra.mxu0 0.0
    %4384 = vmatpush.msra.mxu0 0.0
    %4385 = vmatpush.msra.mxu0 %v4294
    %4386 = vmatmul.f32.gmra.mxu0 %v4308
    %v4387 = vpop.f32.mrf.mxu0
    %v4388 = vadd.f32 0.0, %v4387
    %4389 = vdwg.mxu0
    %4390 = vmatpush.msra.mxu0 0.0
    %4391 = vmatpush.msra.mxu0 0.0
    %4392 = vmatpush.msra.mxu0 0.0
    %4393 = vmatpush.msra.mxu0 0.0
    %4394 = vmatpush.msra.mxu0 0.0
    %4395 = vmatpush.msra.mxu0 0.0
    %4396 = vmatpush.msra.mxu0 0.0
    %4397 = vmatpush.msra.mxu0 0.0
    %4398 = vmatpush.msra.mxu0 0.0
    %4399 = vmatpush.msra.mxu0 0.0
    %4400 = vmatpush.msra.mxu0 0.0
    %4401 = vmatpush.msra.mxu0 0.0
    %4402 = vmatpush.msra.mxu0 0.0
    %4403 = vmatpush.msra.mxu0 0.0
    %4404 = vmatpush.msra.mxu0 0.0
    %4405 = vmatpush.msra.mxu0 %v4295
    %4406 = vmatmul.f32.gmra.mxu0 %v4308
    %v4407 = vpop.f32.mrf.mxu0
    %v4408 = vadd.f32 0.0, %v4407
    %4409 = vdwg.mxu0
    %4410 = vmatpush.msra.mxu0 0.0
    %4411 = vmatpush.msra.mxu0 0.0
    %4412 = vmatpush.msra.mxu0 0.0
    %4413 = vmatpush.msra.mxu0 0.0
    %4414 = vmatpush.msra.mxu0 0.0
    %4415 = vmatpush.msra.mxu0 0.0
    %4416 = vmatpush.msra.mxu0 0.0
    %4417 = vmatpush.msra.mxu0 0.0
    %4418 = vmatpush.msra.mxu0 0.0
    %4419 = vmatpush.msra.mxu0 0.0
    %4420 = vmatpush.msra.mxu0 0.0
    %4421 = vmatpush.msra.mxu0 0.0
    %4422 = vmatpush.msra.mxu0 0.0
    %4423 = vmatpush.msra.mxu0 0.0
    %4424 = vmatpush.msra.mxu0 0.0
    %4425 = vmatpush.msra.mxu0 %v4296
    %4426 = vmatmul.f32.gmra.mxu0 %v4308
    %v4427 = vpop.f32.mrf.mxu0
    %v4428 = vadd.f32 0.0, %v4427
    %4429 = vdwg.mxu0
    %4430 = vmatpush.msra.mxu0 0.0
    %4431 = vmatpush.msra.mxu0 0.0
    %4432 = vmatpush.msra.mxu0 0.0
    %4433 = vmatpush.msra.mxu0 0.0
    %4434 = vmatpush.msra.mxu0 0.0
    %4435 = vmatpush.msra.mxu0 0.0
    %4436 = vmatpush.msra.mxu0 0.0
    %4437 = vmatpush.msra.mxu0 0.0
    %4438 = vmatpush.msra.mxu0 0.0
    %4439 = vmatpush.msra.mxu0 0.0
    %4440 = vmatpush.msra.mxu0 0.0
    %4441 = vmatpush.msra.mxu0 0.0
    %4442 = vmatpush.msra.mxu0 0.0
    %4443 = vmatpush.msra.mxu0 0.0
    %4444 = vmatpush.msra.mxu0 0.0
    %4445 = vmatpush.msra.mxu0 %v4297
    %4446 = vmatmul.f32.gmra.mxu0 %v4308
    %v4447 = vpop.f32.mrf.mxu0
    %v4448 = vadd.f32 0.0, %v4447
    %4449 = vdwg.mxu0
    %4450 = vmatpush.msra.mxu0 0.0
    %4451 = vmatpush.msra.mxu0 0.0
    %4452 = vmatpush.msra.mxu0 0.0
    %4453 = vmatpush.msra.mxu0 0.0
    %4454 = vmatpush.msra.mxu0 0.0
    %4455 = vmatpush.msra.mxu0 0.0
    %4456 = vmatpush.msra.mxu0 0.0
    %4457 = vmatpush.msra.mxu0 0.0
    %4458 = vmatpush.msra.mxu0 0.0
    %4459 = vmatpush.msra.mxu0 0.0
    %4460 = vmatpush.msra.mxu0 0.0
    %4461 = vmatpush.msra.mxu0 0.0
    %4462 = vmatpush.msra.mxu0 0.0
    %4463 = vmatpush.msra.mxu0 0.0
    %4464 = vmatpush.msra.mxu0 0.0
    %4465 = vmatpush.msra.mxu0 %v4298
    %4466 = vmatmul.f32.gmra.mxu0 %v4308
    %v4467 = vpop.f32.mrf.mxu0
    %v4468 = vadd.f32 0.0, %v4467
    %4469 = vdwg.mxu0
    %v4470 = vadd.f32 %v4263, %v4328
    %v4471 = vadd.f32 %v4264, %v4348
    %v4472 = vadd.f32 %v4265, %v4368
    %v4473 = vadd.f32 %v4266, %v4388
    %v4474 = vadd.f32 %v4267, %v4408
    %v4475 = vadd.f32 %v4268, %v4428
    %v4476 = vadd.f32 %v4269, %v4448
    %v4477 = vadd.f32 %v4270, %v4468
    %4478 = vrot.lane.b32.xlu0 %v3749, 34
    %v4479 = vpop.permute.xlu0 %4478
    %4480 = vrot.lane.b32.xlu0 %v3750, 34
    %v4481 = vpop.permute.xlu0 %4480
    %4482 = vrot.lane.b32.xlu0 %v3751, 34
    %v4483 = vpop.permute.xlu0 %4482
    %4484 = vrot.lane.b32.xlu0 %v3752, 34
    %v4485 = vpop.permute.xlu0 %4484
    %4486 = vrot.lane.b32.xlu0 %v3753, 34
    %v4487 = vpop.permute.xlu0 %4486
    %4488 = vrot.lane.b32.xlu0 %v3754, 34
    %v4489 = vpop.permute.xlu0 %4488
    %4490 = vrot.lane.b32.xlu0 %v3755, 34
    %v4491 = vpop.permute.xlu0 %4490
    %4492 = vrot.lane.b32.xlu0 %v3756, 34
    %v4493 = vpop.permute.xlu0 %4492
    %v4494 = vsel %vm2109, %v4479, %v4481
    %v4495 = vsel %vm2109, %v4481, %v4483
    %v4496 = vsel %vm2109, %v4483, %v4485
    %v4497 = vsel %vm2109, %v4485, %v4487
    %v4498 = vsel %vm2109, %v4487, %v4489
    %v4499 = vsel %vm2109, %v4489, %v4491
    %v4500 = vsel %vm2109, %v4491, %v4493
    %v4510 = vmul.f32 %v3339, %v4479
    %v4511 = vmul.f32 %v3340, %v4494
    %v4512 = vmul.f32 %v3341, %v4495
    %v4513 = vmul.f32 %v3342, %v4496
    %v4514 = vmul.f32 %v3343, %v4497
    %v4515 = vmul.f32 %v3344, %v4498
    %v4516 = vmul.f32 %v3345, %v4499
    %v4517 = vmul.f32 %v3346, %v4500
    %v4518 = vmul.f32 %v3374, %v4493
    %s4519 = scalar_lea.vmem %s5, 40
    %v4520 = vld [vmem:[%s4519] sm:$0xff]
    %4530 = vrot.lane.b32.xlu0 %v4510, 94
    %v4531 = vpop.permute.xlu0 %4530
    %4532 = vrot.lane.b32.xlu0 %v4511, 94
    %v4533 = vpop.permute.xlu0 %4532
    %4534 = vrot.lane.b32.xlu0 %v4512, 94
    %v4535 = vpop.permute.xlu0 %4534
    %4536 = vrot.lane.b32.xlu0 %v4513, 94
    %v4537 = vpop.permute.xlu0 %4536
    %4538 = vrot.lane.b32.xlu0 %v4514, 94
    %v4539 = vpop.permute.xlu0 %4538
    %4540 = vrot.lane.b32.xlu0 %v4515, 94
    %v4541 = vpop.permute.xlu0 %4540
    %4542 = vrot.lane.b32.xlu0 %v4516, 94
    %v4543 = vpop.permute.xlu0 %4542
    %4544 = vrot.lane.b32.xlu0 %v4517, 94
    %v4545 = vpop.permute.xlu0 %4544
    %4546 = vrot.lane.b32.xlu0 %v4518, 94
    %v4547 = vpop.permute.xlu0 %4546
    %v4548 = vsel %vm2200, %v4531, %v4533
    %v4549 = vsel %vm2200, %v4533, %v4535
    %v4550 = vsel %vm2200, %v4535, %v4537
    %v4551 = vsel %vm2200, %v4537, %v4539
    %v4552 = vsel %vm2200, %v4539, %v4541
    %v4553 = vsel %vm2200, %v4541, %v4543
    %v4554 = vsel %vm2200, %v4543, %v4545
    %v4555 = vsel %vm2200, %v4545, %v4547
    %v4565 = vsel %vm3420, %v4520, 0
    %4567 = vmatpush.msra.mxu0 0.0
    %4568 = vmatpush.msra.mxu0 0.0
    %4569 = vmatpush.msra.mxu0 0.0
    %4570 = vmatpush.msra.mxu0 0.0
    %4571 = vmatpush.msra.mxu0 0.0
    %4572 = vmatpush.msra.mxu0 0.0
    %4573 = vmatpush.msra.mxu0 0.0
    %4574 = vmatpush.msra.mxu0 0.0
    %4575 = vmatpush.msra.mxu0 0.0
    %4576 = vmatpush.msra.mxu0 0.0
    %4577 = vmatpush.msra.mxu0 0.0
    %4578 = vmatpush.msra.mxu0 0.0
    %4579 = vmatpush.msra.mxu0 0.0
    %4580 = vmatpush.msra.mxu0 0.0
    %4581 = vmatpush.msra.mxu0 0.0
    %4582 = vmatpush.msra.mxu0 %v4548
    %4583 = vmatmul.f32.gmra.mxu0 %v4565
    %v4584 = vpop.f32.mrf.mxu0
    %v4585 = vadd.f32 0.0, %v4584
    %4586 = vdwg.mxu0
    %4587 = vmatpush.msra.mxu0 0.0
    %4588 = vmatpush.msra.mxu0 0.0
    %4589 = vmatpush.msra.mxu0 0.0
    %4590 = vmatpush.msra.mxu0 0.0
    %4591 = vmatpush.msra.mxu0 0.0
    %4592 = vmatpush.msra.mxu0 0.0
    %4593 = vmatpush.msra.mxu0 0.0
    %4594 = vmatpush.msra.mxu0 0.0
    %4595 = vmatpush.msra.mxu0 0.0
    %4596 = vmatpush.msra.mxu0 0.0
    %4597 = vmatpush.msra.mxu0 0.0
    %4598 = vmatpush.msra.mxu0 0.0
    %4599 = vmatpush.msra.mxu0 0.0
    %4600 = vmatpush.msra.mxu0 0.0
    %4601 = vmatpush.msra.mxu0 0.0
    %4602 = vmatpush.msra.mxu0 %v4549
    %4603 = vmatmul.f32.gmra.mxu0 %v4565
    %v4604 = vpop.f32.mrf.mxu0
    %v4605 = vadd.f32 0.0, %v4604
    %4606 = vdwg.mxu0
    %4607 = vmatpush.msra.mxu0 0.0
    %4608 = vmatpush.msra.mxu0 0.0
    %4609 = vmatpush.msra.mxu0 0.0
    %4610 = vmatpush.msra.mxu0 0.0
    %4611 = vmatpush.msra.mxu0 0.0
    %4612 = vmatpush.msra.mxu0 0.0
    %4613 = vmatpush.msra.mxu0 0.0
    %4614 = vmatpush.msra.mxu0 0.0
    %4615 = vmatpush.msra.mxu0 0.0
    %4616 = vmatpush.msra.mxu0 0.0
    %4617 = vmatpush.msra.mxu0 0.0
    %4618 = vmatpush.msra.mxu0 0.0
    %4619 = vmatpush.msra.mxu0 0.0
    %4620 = vmatpush.msra.mxu0 0.0
    %4621 = vmatpush.msra.mxu0 0.0
    %4622 = vmatpush.msra.mxu0 %v4550
    %4623 = vmatmul.f32.gmra.mxu0 %v4565
    %v4624 = vpop.f32.mrf.mxu0
    %v4625 = vadd.f32 0.0, %v4624
    %4626 = vdwg.mxu0
    %4627 = vmatpush.msra.mxu0 0.0
    %4628 = vmatpush.msra.mxu0 0.0
    %4629 = vmatpush.msra.mxu0 0.0
    %4630 = vmatpush.msra.mxu0 0.0
    %4631 = vmatpush.msra.mxu0 0.0
    %4632 = vmatpush.msra.mxu0 0.0
    %4633 = vmatpush.msra.mxu0 0.0
    %4634 = vmatpush.msra.mxu0 0.0
    %4635 = vmatpush.msra.mxu0 0.0
    %4636 = vmatpush.msra.mxu0 0.0
    %4637 = vmatpush.msra.mxu0 0.0
    %4638 = vmatpush.msra.mxu0 0.0
    %4639 = vmatpush.msra.mxu0 0.0
    %4640 = vmatpush.msra.mxu0 0.0
    %4641 = vmatpush.msra.mxu0 0.0
    %4642 = vmatpush.msra.mxu0 %v4551
    %4643 = vmatmul.f32.gmra.mxu0 %v4565
    %v4644 = vpop.f32.mrf.mxu0
    %v4645 = vadd.f32 0.0, %v4644
    %4646 = vdwg.mxu0
    %4647 = vmatpush.msra.mxu0 0.0
    %4648 = vmatpush.msra.mxu0 0.0
    %4649 = vmatpush.msra.mxu0 0.0
    %4650 = vmatpush.msra.mxu0 0.0
    %4651 = vmatpush.msra.mxu0 0.0
    %4652 = vmatpush.msra.mxu0 0.0
    %4653 = vmatpush.msra.mxu0 0.0
    %4654 = vmatpush.msra.mxu0 0.0
    %4655 = vmatpush.msra.mxu0 0.0
    %4656 = vmatpush.msra.mxu0 0.0
    %4657 = vmatpush.msra.mxu0 0.0
    %4658 = vmatpush.msra.mxu0 0.0
    %4659 = vmatpush.msra.mxu0 0.0
    %4660 = vmatpush.msra.mxu0 0.0
    %4661 = vmatpush.msra.mxu0 0.0
    %4662 = vmatpush.msra.mxu0 %v4552
    %4663 = vmatmul.f32.gmra.mxu0 %v4565
    %v4664 = vpop.f32.mrf.mxu0
    %v4665 = vadd.f32 0.0, %v4664
    %4666 = vdwg.mxu0
    %4667 = vmatpush.msra.mxu0 0.0
    %4668 = vmatpush.msra.mxu0 0.0
    %4669 = vmatpush.msra.mxu0 0.0
    %4670 = vmatpush.msra.mxu0 0.0
    %4671 = vmatpush.msra.mxu0 0.0
    %4672 = vmatpush.msra.mxu0 0.0
    %4673 = vmatpush.msra.mxu0 0.0
    %4674 = vmatpush.msra.mxu0 0.0
    %4675 = vmatpush.msra.mxu0 0.0
    %4676 = vmatpush.msra.mxu0 0.0
    %4677 = vmatpush.msra.mxu0 0.0
    %4678 = vmatpush.msra.mxu0 0.0
    %4679 = vmatpush.msra.mxu0 0.0
    %4680 = vmatpush.msra.mxu0 0.0
    %4681 = vmatpush.msra.mxu0 0.0
    %4682 = vmatpush.msra.mxu0 %v4553
    %4683 = vmatmul.f32.gmra.mxu0 %v4565
    %v4684 = vpop.f32.mrf.mxu0
    %v4685 = vadd.f32 0.0, %v4684
    %4686 = vdwg.mxu0
    %4687 = vmatpush.msra.mxu0 0.0
    %4688 = vmatpush.msra.mxu0 0.0
    %4689 = vmatpush.msra.mxu0 0.0
    %4690 = vmatpush.msra.mxu0 0.0
    %4691 = vmatpush.msra.mxu0 0.0
    %4692 = vmatpush.msra.mxu0 0.0
    %4693 = vmatpush.msra.mxu0 0.0
    %4694 = vmatpush.msra.mxu0 0.0
    %4695 = vmatpush.msra.mxu0 0.0
    %4696 = vmatpush.msra.mxu0 0.0
    %4697 = vmatpush.msra.mxu0 0.0
    %4698 = vmatpush.msra.mxu0 0.0
    %4699 = vmatpush.msra.mxu0 0.0
    %4700 = vmatpush.msra.mxu0 0.0
    %4701 = vmatpush.msra.mxu0 0.0
    %4702 = vmatpush.msra.mxu0 %v4554
    %4703 = vmatmul.f32.gmra.mxu0 %v4565
    %v4704 = vpop.f32.mrf.mxu0
    %v4705 = vadd.f32 0.0, %v4704
    %4706 = vdwg.mxu0
    %4707 = vmatpush.msra.mxu0 0.0
    %4708 = vmatpush.msra.mxu0 0.0
    %4709 = vmatpush.msra.mxu0 0.0
    %4710 = vmatpush.msra.mxu0 0.0
    %4711 = vmatpush.msra.mxu0 0.0
    %4712 = vmatpush.msra.mxu0 0.0
    %4713 = vmatpush.msra.mxu0 0.0
    %4714 = vmatpush.msra.mxu0 0.0
    %4715 = vmatpush.msra.mxu0 0.0
    %4716 = vmatpush.msra.mxu0 0.0
    %4717 = vmatpush.msra.mxu0 0.0
    %4718 = vmatpush.msra.mxu0 0.0
    %4719 = vmatpush.msra.mxu0 0.0
    %4720 = vmatpush.msra.mxu0 0.0
    %4721 = vmatpush.msra.mxu0 0.0
    %4722 = vmatpush.msra.mxu0 %v4555
    %4723 = vmatmul.f32.gmra.mxu0 %v4565
    %v4724 = vpop.f32.mrf.mxu0
    %v4725 = vadd.f32 0.0, %v4724
    %4726 = vdwg.mxu0
    %v4727 = vadd.f32 %v4470, %v4585
    %v4728 = vadd.f32 %v4471, %v4605
    %v4729 = vadd.f32 %v4472, %v4625
    %v4730 = vadd.f32 %v4473, %v4645
    %v4731 = vadd.f32 %v4474, %v4665
    %v4732 = vadd.f32 %v4475, %v4685
    %v4733 = vadd.f32 %v4476, %v4705
    %v4734 = vadd.f32 %v4477, %v4725
    %4735 = vrot.lane.b32.xlu0 %v3349, 64
    %v4736 = vpop.permute.xlu0 %4735
    %4737 = vrot.lane.b32.xlu0 %v3350, 64
    %v4738 = vpop.permute.xlu0 %4737
    %4739 = vrot.lane.b32.xlu0 %v3351, 64
    %v4740 = vpop.permute.xlu0 %4739
    %4741 = vrot.lane.b32.xlu0 %v3352, 64
    %v4742 = vpop.permute.xlu0 %4741
    %4743 = vrot.lane.b32.xlu0 %v3353, 64
    %v4744 = vpop.permute.xlu0 %4743
    %4745 = vrot.lane.b32.xlu0 %v3354, 64
    %v4746 = vpop.permute.xlu0 %4745
    %4747 = vrot.lane.b32.xlu0 %v3355, 64
    %v4748 = vpop.permute.xlu0 %4747
    %4749 = vrot.lane.b32.xlu0 %v3356, 64
    %v4750 = vpop.permute.xlu0 %4749
    %v4751 = vsel %vm2420, %v4736, %v4738
    %v4752 = vsel %vm2420, %v4738, %v4740
    %v4753 = vsel %vm2420, %v4740, %v4742
    %v4754 = vsel %vm2420, %v4742, %v4744
    %v4755 = vsel %vm2420, %v4744, %v4746
    %v4756 = vsel %vm2420, %v4746, %v4748
    %v4757 = vsel %vm2420, %v4748, %v4750
    %v4767 = vmul.f32 %v3339, %v4736
    %v4768 = vmul.f32 %v3340, %v4751
    %v4769 = vmul.f32 %v3341, %v4752
    %v4770 = vmul.f32 %v3342, %v4753
    %v4771 = vmul.f32 %v3343, %v4754
    %v4772 = vmul.f32 %v3344, %v4755
    %v4773 = vmul.f32 %v3345, %v4756
    %v4774 = vmul.f32 %v3346, %v4757
    %v4775 = vmul.f32 %v3374, %v4750
    %s4776 = scalar_lea.vmem %s5, 48
    %v4777 = vld [vmem:[%s4776] sm:$0xff]
    %4787 = vrot.lane.b32.xlu0 %v4767, 64
    %v4788 = vpop.permute.xlu0 %4787
    %4789 = vrot.lane.b32.xlu0 %v4768, 64
    %v4790 = vpop.permute.xlu0 %4789
    %4791 = vrot.lane.b32.xlu0 %v4769, 64
    %v4792 = vpop.permute.xlu0 %4791
    %4793 = vrot.lane.b32.xlu0 %v4770, 64
    %v4794 = vpop.permute.xlu0 %4793
    %4795 = vrot.lane.b32.xlu0 %v4771, 64
    %v4796 = vpop.permute.xlu0 %4795
    %4797 = vrot.lane.b32.xlu0 %v4772, 64
    %v4798 = vpop.permute.xlu0 %4797
    %4799 = vrot.lane.b32.xlu0 %v4773, 64
    %v4800 = vpop.permute.xlu0 %4799
    %4801 = vrot.lane.b32.xlu0 %v4774, 64
    %v4802 = vpop.permute.xlu0 %4801
    %4803 = vrot.lane.b32.xlu0 %v4775, 64
    %v4804 = vpop.permute.xlu0 %4803
    %v4805 = vsel %vm2420, %v4788, %v4790
    %v4806 = vsel %vm2420, %v4790, %v4792
    %v4807 = vsel %vm2420, %v4792, %v4794
    %v4808 = vsel %vm2420, %v4794, %v4796
    %v4809 = vsel %vm2420, %v4796, %v4798
    %v4810 = vsel %vm2420, %v4798, %v4800
    %v4811 = vsel %vm2420, %v4800, %v4802
    %v4812 = vsel %vm2420, %v4802, %v4804
    %v4822 = vsel %vm3420, %v4777, 0
    %4824 = vmatpush.msra.mxu0 0.0
    %4825 = vmatpush.msra.mxu0 0.0
    %4826 = vmatpush.msra.mxu0 0.0
    %4827 = vmatpush.msra.mxu0 0.0
    %4828 = vmatpush.msra.mxu0 0.0
    %4829 = vmatpush.msra.mxu0 0.0
    %4830 = vmatpush.msra.mxu0 0.0
    %4831 = vmatpush.msra.mxu0 0.0
    %4832 = vmatpush.msra.mxu0 0.0
    %4833 = vmatpush.msra.mxu0 0.0
    %4834 = vmatpush.msra.mxu0 0.0
    %4835 = vmatpush.msra.mxu0 0.0
    %4836 = vmatpush.msra.mxu0 0.0
    %4837 = vmatpush.msra.mxu0 0.0
    %4838 = vmatpush.msra.mxu0 0.0
    %4839 = vmatpush.msra.mxu0 %v4805
    %4840 = vmatmul.f32.gmra.mxu0 %v4822
    %v4841 = vpop.f32.mrf.mxu0
    %v4842 = vadd.f32 0.0, %v4841
    %4843 = vdwg.mxu0
    %4844 = vmatpush.msra.mxu0 0.0
    %4845 = vmatpush.msra.mxu0 0.0
    %4846 = vmatpush.msra.mxu0 0.0
    %4847 = vmatpush.msra.mxu0 0.0
    %4848 = vmatpush.msra.mxu0 0.0
    %4849 = vmatpush.msra.mxu0 0.0
    %4850 = vmatpush.msra.mxu0 0.0
    %4851 = vmatpush.msra.mxu0 0.0
    %4852 = vmatpush.msra.mxu0 0.0
    %4853 = vmatpush.msra.mxu0 0.0
    %4854 = vmatpush.msra.mxu0 0.0
    %4855 = vmatpush.msra.mxu0 0.0
    %4856 = vmatpush.msra.mxu0 0.0
    %4857 = vmatpush.msra.mxu0 0.0
    %4858 = vmatpush.msra.mxu0 0.0
    %4859 = vmatpush.msra.mxu0 %v4806
    %4860 = vmatmul.f32.gmra.mxu0 %v4822
    %v4861 = vpop.f32.mrf.mxu0
    %v4862 = vadd.f32 0.0, %v4861
    %4863 = vdwg.mxu0
    %4864 = vmatpush.msra.mxu0 0.0
    %4865 = vmatpush.msra.mxu0 0.0
    %4866 = vmatpush.msra.mxu0 0.0
    %4867 = vmatpush.msra.mxu0 0.0
    %4868 = vmatpush.msra.mxu0 0.0
    %4869 = vmatpush.msra.mxu0 0.0
    %4870 = vmatpush.msra.mxu0 0.0
    %4871 = vmatpush.msra.mxu0 0.0
    %4872 = vmatpush.msra.mxu0 0.0
    %4873 = vmatpush.msra.mxu0 0.0
    %4874 = vmatpush.msra.mxu0 0.0
    %4875 = vmatpush.msra.mxu0 0.0
    %4876 = vmatpush.msra.mxu0 0.0
    %4877 = vmatpush.msra.mxu0 0.0
    %4878 = vmatpush.msra.mxu0 0.0
    %4879 = vmatpush.msra.mxu0 %v4807
    %4880 = vmatmul.f32.gmra.mxu0 %v4822
    %v4881 = vpop.f32.mrf.mxu0
    %v4882 = vadd.f32 0.0, %v4881
    %4883 = vdwg.mxu0
    %4884 = vmatpush.msra.mxu0 0.0
    %4885 = vmatpush.msra.mxu0 0.0
    %4886 = vmatpush.msra.mxu0 0.0
    %4887 = vmatpush.msra.mxu0 0.0
    %4888 = vmatpush.msra.mxu0 0.0
    %4889 = vmatpush.msra.mxu0 0.0
    %4890 = vmatpush.msra.mxu0 0.0
    %4891 = vmatpush.msra.mxu0 0.0
    %4892 = vmatpush.msra.mxu0 0.0
    %4893 = vmatpush.msra.mxu0 0.0
    %4894 = vmatpush.msra.mxu0 0.0
    %4895 = vmatpush.msra.mxu0 0.0
    %4896 = vmatpush.msra.mxu0 0.0
    %4897 = vmatpush.msra.mxu0 0.0
    %4898 = vmatpush.msra.mxu0 0.0
    %4899 = vmatpush.msra.mxu0 %v4808
    %4900 = vmatmul.f32.gmra.mxu0 %v4822
    %v4901 = vpop.f32.mrf.mxu0
    %v4902 = vadd.f32 0.0, %v4901
    %4903 = vdwg.mxu0
    %4904 = vmatpush.msra.mxu0 0.0
    %4905 = vmatpush.msra.mxu0 0.0
    %4906 = vmatpush.msra.mxu0 0.0
    %4907 = vmatpush.msra.mxu0 0.0
    %4908 = vmatpush.msra.mxu0 0.0
    %4909 = vmatpush.msra.mxu0 0.0
    %4910 = vmatpush.msra.mxu0 0.0
    %4911 = vmatpush.msra.mxu0 0.0
    %4912 = vmatpush.msra.mxu0 0.0
    %4913 = vmatpush.msra.mxu0 0.0
    %4914 = vmatpush.msra.mxu0 0.0
    %4915 = vmatpush.msra.mxu0 0.0
    %4916 = vmatpush.msra.mxu0 0.0
    %4917 = vmatpush.msra.mxu0 0.0
    %4918 = vmatpush.msra.mxu0 0.0
    %4919 = vmatpush.msra.mxu0 %v4809
    %4920 = vmatmul.f32.gmra.mxu0 %v4822
    %v4921 = vpop.f32.mrf.mxu0
    %v4922 = vadd.f32 0.0, %v4921
    %4923 = vdwg.mxu0
    %4924 = vmatpush.msra.mxu0 0.0
    %4925 = vmatpush.msra.mxu0 0.0
    %4926 = vmatpush.msra.mxu0 0.0
    %4927 = vmatpush.msra.mxu0 0.0
    %4928 = vmatpush.msra.mxu0 0.0
    %4929 = vmatpush.msra.mxu0 0.0
    %4930 = vmatpush.msra.mxu0 0.0
    %4931 = vmatpush.msra.mxu0 0.0
    %4932 = vmatpush.msra.mxu0 0.0
    %4933 = vmatpush.msra.mxu0 0.0
    %4934 = vmatpush.msra.mxu0 0.0
    %4935 = vmatpush.msra.mxu0 0.0
    %4936 = vmatpush.msra.mxu0 0.0
    %4937 = vmatpush.msra.mxu0 0.0
    %4938 = vmatpush.msra.mxu0 0.0
    %4939 = vmatpush.msra.mxu0 %v4810
    %4940 = vmatmul.f32.gmra.mxu0 %v4822
    %v4941 = vpop.f32.mrf.mxu0
    %v4942 = vadd.f32 0.0, %v4941
    %4943 = vdwg.mxu0
    %4944 = vmatpush.msra.mxu0 0.0
    %4945 = vmatpush.msra.mxu0 0.0
    %4946 = vmatpush.msra.mxu0 0.0
    %4947 = vmatpush.msra.mxu0 0.0
    %4948 = vmatpush.msra.mxu0 0.0
    %4949 = vmatpush.msra.mxu0 0.0
    %4950 = vmatpush.msra.mxu0 0.0
    %4951 = vmatpush.msra.mxu0 0.0
    %4952 = vmatpush.msra.mxu0 0.0
    %4953 = vmatpush.msra.mxu0 0.0
    %4954 = vmatpush.msra.mxu0 0.0
    %4955 = vmatpush.msra.mxu0 0.0
    %4956 = vmatpush.msra.mxu0 0.0
    %4957 = vmatpush.msra.mxu0 0.0
    %4958 = vmatpush.msra.mxu0 0.0
    %4959 = vmatpush.msra.mxu0 %v4811
    %4960 = vmatmul.f32.gmra.mxu0 %v4822
    %v4961 = vpop.f32.mrf.mxu0
    %v4962 = vadd.f32 0.0, %v4961
    %4963 = vdwg.mxu0
    %4964 = vmatpush.msra.mxu0 0.0
    %4965 = vmatpush.msra.mxu0 0.0
    %4966 = vmatpush.msra.mxu0 0.0
    %4967 = vmatpush.msra.mxu0 0.0
    %4968 = vmatpush.msra.mxu0 0.0
    %4969 = vmatpush.msra.mxu0 0.0
    %4970 = vmatpush.msra.mxu0 0.0
    %4971 = vmatpush.msra.mxu0 0.0
    %4972 = vmatpush.msra.mxu0 0.0
    %4973 = vmatpush.msra.mxu0 0.0
    %4974 = vmatpush.msra.mxu0 0.0
    %4975 = vmatpush.msra.mxu0 0.0
    %4976 = vmatpush.msra.mxu0 0.0
    %4977 = vmatpush.msra.mxu0 0.0
    %4978 = vmatpush.msra.mxu0 0.0
    %4979 = vmatpush.msra.mxu0 %v4812
    %4980 = vmatmul.f32.gmra.mxu0 %v4822
    %v4981 = vpop.f32.mrf.mxu0
    %v4982 = vadd.f32 0.0, %v4981
    %4983 = vdwg.mxu0
    %v4984 = vadd.f32 %v4727, %v4842
    %v4985 = vadd.f32 %v4728, %v4862
    %v4986 = vadd.f32 %v4729, %v4882
    %v4987 = vadd.f32 %v4730, %v4902
    %v4988 = vadd.f32 %v4731, %v4922
    %v4989 = vadd.f32 %v4732, %v4942
    %v4990 = vadd.f32 %v4733, %v4962
    %v4991 = vadd.f32 %v4734, %v4982
    %s4992 = scalar_lea.vmem %s5, 56
    %v4993 = vld [vmem:[%s4992] sm:$0xff]
    %4994 = vrot.lane.b32.xlu0 %v3339, 63
    %v4995 = vpop.permute.xlu0 %4994
    %4996 = vrot.lane.b32.xlu0 %v3340, 63
    %v4997 = vpop.permute.xlu0 %4996
    %4998 = vrot.lane.b32.xlu0 %v3341, 63
    %v4999 = vpop.permute.xlu0 %4998
    %5000 = vrot.lane.b32.xlu0 %v3342, 63
    %v5001 = vpop.permute.xlu0 %5000
    %5002 = vrot.lane.b32.xlu0 %v3343, 63
    %v5003 = vpop.permute.xlu0 %5002
    %5004 = vrot.lane.b32.xlu0 %v3344, 63
    %v5005 = vpop.permute.xlu0 %5004
    %5006 = vrot.lane.b32.xlu0 %v3345, 63
    %v5007 = vpop.permute.xlu0 %5006
    %5008 = vrot.lane.b32.xlu0 %v3346, 63
    %v5009 = vpop.permute.xlu0 %5008
    %5010 = vrot.lane.b32.xlu0 %v3374, 63
    %v5011 = vpop.permute.xlu0 %5010
    %v5012 = vsel %vm2752, %v4995, %v4997
    %v5013 = vsel %vm2752, %v4997, %v4999
    %v5014 = vsel %vm2752, %v4999, %v5001
    %v5015 = vsel %vm2752, %v5001, %v5003
    %v5016 = vsel %vm2752, %v5003, %v5005
    %v5017 = vsel %vm2752, %v5005, %v5007
    %v5018 = vsel %vm2752, %v5007, %v5009
    %v5019 = vsel %vm2752, %v5009, %v5011
    %v5029 = vsel %vm3420, %v4993, 0
    %5031 = vmatpush.msra.mxu0 0.0
    %5032 = vmatpush.msra.mxu0 0.0
    %5033 = vmatpush.msra.mxu0 0.0
    %5034 = vmatpush.msra.mxu0 0.0
    %5035 = vmatpush.msra.mxu0 0.0
    %5036 = vmatpush.msra.mxu0 0.0
    %5037 = vmatpush.msra.mxu0 0.0
    %5038 = vmatpush.msra.mxu0 0.0
    %5039 = vmatpush.msra.mxu0 0.0
    %5040 = vmatpush.msra.mxu0 0.0
    %5041 = vmatpush.msra.mxu0 0.0
    %5042 = vmatpush.msra.mxu0 0.0
    %5043 = vmatpush.msra.mxu0 0.0
    %5044 = vmatpush.msra.mxu0 0.0
    %5045 = vmatpush.msra.mxu0 0.0
    %5046 = vmatpush.msra.mxu0 %v5012
    %5047 = vmatmul.f32.gmra.mxu0 %v5029
    %v5048 = vpop.f32.mrf.mxu0
    %v5049 = vadd.f32 0.0, %v5048
    %5050 = vdwg.mxu0
    %5051 = vmatpush.msra.mxu0 0.0
    %5052 = vmatpush.msra.mxu0 0.0
    %5053 = vmatpush.msra.mxu0 0.0
    %5054 = vmatpush.msra.mxu0 0.0
    %5055 = vmatpush.msra.mxu0 0.0
    %5056 = vmatpush.msra.mxu0 0.0
    %5057 = vmatpush.msra.mxu0 0.0
    %5058 = vmatpush.msra.mxu0 0.0
    %5059 = vmatpush.msra.mxu0 0.0
    %5060 = vmatpush.msra.mxu0 0.0
    %5061 = vmatpush.msra.mxu0 0.0
    %5062 = vmatpush.msra.mxu0 0.0
    %5063 = vmatpush.msra.mxu0 0.0
    %5064 = vmatpush.msra.mxu0 0.0
    %5065 = vmatpush.msra.mxu0 0.0
    %5066 = vmatpush.msra.mxu0 %v5013
    %5067 = vmatmul.f32.gmra.mxu0 %v5029
    %v5068 = vpop.f32.mrf.mxu0
    %v5069 = vadd.f32 0.0, %v5068
    %5070 = vdwg.mxu0
    %5071 = vmatpush.msra.mxu0 0.0
    %5072 = vmatpush.msra.mxu0 0.0
    %5073 = vmatpush.msra.mxu0 0.0
    %5074 = vmatpush.msra.mxu0 0.0
    %5075 = vmatpush.msra.mxu0 0.0
    %5076 = vmatpush.msra.mxu0 0.0
    %5077 = vmatpush.msra.mxu0 0.0
    %5078 = vmatpush.msra.mxu0 0.0
    %5079 = vmatpush.msra.mxu0 0.0
    %5080 = vmatpush.msra.mxu0 0.0
    %5081 = vmatpush.msra.mxu0 0.0
    %5082 = vmatpush.msra.mxu0 0.0
    %5083 = vmatpush.msra.mxu0 0.0
    %5084 = vmatpush.msra.mxu0 0.0
    %5085 = vmatpush.msra.mxu0 0.0
    %5086 = vmatpush.msra.mxu0 %v5014
    %5087 = vmatmul.f32.gmra.mxu0 %v5029
    %v5088 = vpop.f32.mrf.mxu0
    %v5089 = vadd.f32 0.0, %v5088
    %5090 = vdwg.mxu0
    %5091 = vmatpush.msra.mxu0 0.0
    %5092 = vmatpush.msra.mxu0 0.0
    %5093 = vmatpush.msra.mxu0 0.0
    %5094 = vmatpush.msra.mxu0 0.0
    %5095 = vmatpush.msra.mxu0 0.0
    %5096 = vmatpush.msra.mxu0 0.0
    %5097 = vmatpush.msra.mxu0 0.0
    %5098 = vmatpush.msra.mxu0 0.0
    %5099 = vmatpush.msra.mxu0 0.0
    %5100 = vmatpush.msra.mxu0 0.0
    %5101 = vmatpush.msra.mxu0 0.0
    %5102 = vmatpush.msra.mxu0 0.0
    %5103 = vmatpush.msra.mxu0 0.0
    %5104 = vmatpush.msra.mxu0 0.0
    %5105 = vmatpush.msra.mxu0 0.0
    %5106 = vmatpush.msra.mxu0 %v5015
    %5107 = vmatmul.f32.gmra.mxu0 %v5029
    %v5108 = vpop.f32.mrf.mxu0
    %v5109 = vadd.f32 0.0, %v5108
    %5110 = vdwg.mxu0
    %5111 = vmatpush.msra.mxu0 0.0
    %5112 = vmatpush.msra.mxu0 0.0
    %5113 = vmatpush.msra.mxu0 0.0
    %5114 = vmatpush.msra.mxu0 0.0
    %5115 = vmatpush.msra.mxu0 0.0
    %5116 = vmatpush.msra.mxu0 0.0
    %5117 = vmatpush.msra.mxu0 0.0
    %5118 = vmatpush.msra.mxu0 0.0
    %5119 = vmatpush.msra.mxu0 0.0
    %5120 = vmatpush.msra.mxu0 0.0
    %5121 = vmatpush.msra.mxu0 0.0
    %5122 = vmatpush.msra.mxu0 0.0
    %5123 = vmatpush.msra.mxu0 0.0
    %5124 = vmatpush.msra.mxu0 0.0
    %5125 = vmatpush.msra.mxu0 0.0
    %5126 = vmatpush.msra.mxu0 %v5016
    %5127 = vmatmul.f32.gmra.mxu0 %v5029
    %v5128 = vpop.f32.mrf.mxu0
    %v5129 = vadd.f32 0.0, %v5128
    %5130 = vdwg.mxu0
    %5131 = vmatpush.msra.mxu0 0.0
    %5132 = vmatpush.msra.mxu0 0.0
    %5133 = vmatpush.msra.mxu0 0.0
    %5134 = vmatpush.msra.mxu0 0.0
    %5135 = vmatpush.msra.mxu0 0.0
    %5136 = vmatpush.msra.mxu0 0.0
    %5137 = vmatpush.msra.mxu0 0.0
    %5138 = vmatpush.msra.mxu0 0.0
    %5139 = vmatpush.msra.mxu0 0.0
    %5140 = vmatpush.msra.mxu0 0.0
    %5141 = vmatpush.msra.mxu0 0.0
    %5142 = vmatpush.msra.mxu0 0.0
    %5143 = vmatpush.msra.mxu0 0.0
    %5144 = vmatpush.msra.mxu0 0.0
    %5145 = vmatpush.msra.mxu0 0.0
    %5146 = vmatpush.msra.mxu0 %v5017
    %5147 = vmatmul.f32.gmra.mxu0 %v5029
    %v5148 = vpop.f32.mrf.mxu0
    %v5149 = vadd.f32 0.0, %v5148
    %5150 = vdwg.mxu0
    %5151 = vmatpush.msra.mxu0 0.0
    %5152 = vmatpush.msra.mxu0 0.0
    %5153 = vmatpush.msra.mxu0 0.0
    %5154 = vmatpush.msra.mxu0 0.0
    %5155 = vmatpush.msra.mxu0 0.0
    %5156 = vmatpush.msra.mxu0 0.0
    %5157 = vmatpush.msra.mxu0 0.0
    %5158 = vmatpush.msra.mxu0 0.0
    %5159 = vmatpush.msra.mxu0 0.0
    %5160 = vmatpush.msra.mxu0 0.0
    %5161 = vmatpush.msra.mxu0 0.0
    %5162 = vmatpush.msra.mxu0 0.0
    %5163 = vmatpush.msra.mxu0 0.0
    %5164 = vmatpush.msra.mxu0 0.0
    %5165 = vmatpush.msra.mxu0 0.0
    %5166 = vmatpush.msra.mxu0 %v5018
    %5167 = vmatmul.f32.gmra.mxu0 %v5029
    %v5168 = vpop.f32.mrf.mxu0
    %v5169 = vadd.f32 0.0, %v5168
    %5170 = vdwg.mxu0
    %5171 = vmatpush.msra.mxu0 0.0
    %5172 = vmatpush.msra.mxu0 0.0
    %5173 = vmatpush.msra.mxu0 0.0
    %5174 = vmatpush.msra.mxu0 0.0
    %5175 = vmatpush.msra.mxu0 0.0
    %5176 = vmatpush.msra.mxu0 0.0
    %5177 = vmatpush.msra.mxu0 0.0
    %5178 = vmatpush.msra.mxu0 0.0
    %5179 = vmatpush.msra.mxu0 0.0
    %5180 = vmatpush.msra.mxu0 0.0
    %5181 = vmatpush.msra.mxu0 0.0
    %5182 = vmatpush.msra.mxu0 0.0
    %5183 = vmatpush.msra.mxu0 0.0
    %5184 = vmatpush.msra.mxu0 0.0
    %5185 = vmatpush.msra.mxu0 0.0
    %5186 = vmatpush.msra.mxu0 %v5019
    %5187 = vmatmul.f32.gmra.mxu0 %v5029
    %v5188 = vpop.f32.mrf.mxu0
    %v5189 = vadd.f32 0.0, %v5188
    %5190 = vdwg.mxu0
    %v5191 = vadd.f32 %v4984, %v5049
    %v5192 = vadd.f32 %v4985, %v5069
    %v5193 = vadd.f32 %v4986, %v5089
    %v5194 = vadd.f32 %v4987, %v5109
    %v5195 = vadd.f32 %v4988, %v5129
    %v5196 = vadd.f32 %v4989, %v5149
    %v5197 = vadd.f32 %v4990, %v5169
    %v5198 = vadd.f32 %v4991, %v5189
    %5199 = vrot.lane.b32.xlu0 %v3749, 66
    %v5200 = vpop.permute.xlu0 %5199
    %5201 = vrot.lane.b32.xlu0 %v3750, 66
    %v5202 = vpop.permute.xlu0 %5201
    %5203 = vrot.lane.b32.xlu0 %v3751, 66
    %v5204 = vpop.permute.xlu0 %5203
    %5205 = vrot.lane.b32.xlu0 %v3752, 66
    %v5206 = vpop.permute.xlu0 %5205
    %5207 = vrot.lane.b32.xlu0 %v3753, 66
    %v5208 = vpop.permute.xlu0 %5207
    %5209 = vrot.lane.b32.xlu0 %v3754, 66
    %v5210 = vpop.permute.xlu0 %5209
    %5211 = vrot.lane.b32.xlu0 %v3755, 66
    %v5212 = vpop.permute.xlu0 %5211
    %5213 = vrot.lane.b32.xlu0 %v3756, 66
    %v5214 = vpop.permute.xlu0 %5213
    %v5215 = vsel %vm2972, %v5200, %v5202
    %v5216 = vsel %vm2972, %v5202, %v5204
    %v5217 = vsel %vm2972, %v5204, %v5206
    %v5218 = vsel %vm2972, %v5206, %v5208
    %v5219 = vsel %vm2972, %v5208, %v5210
    %v5220 = vsel %vm2972, %v5210, %v5212
    %v5221 = vsel %vm2972, %v5212, %v5214
    %v5231 = vmul.f32 %v3339, %v5200
    %v5232 = vmul.f32 %v3340, %v5215
    %v5233 = vmul.f32 %v3341, %v5216
    %v5234 = vmul.f32 %v3342, %v5217
    %v5235 = vmul.f32 %v3343, %v5218
    %v5236 = vmul.f32 %v3344, %v5219
    %v5237 = vmul.f32 %v3345, %v5220
    %v5238 = vmul.f32 %v3346, %v5221
    %v5239 = vmul.f32 %v3374, %v5214
    %s5240 = scalar_lea.vmem %s5, 64
    %v5241 = vld [vmem:[%s5240] sm:$0xff]
    %5251 = vrot.lane.b32.xlu0 %v5231, 62
    %v5252 = vpop.permute.xlu0 %5251
    %5253 = vrot.lane.b32.xlu0 %v5232, 62
    %v5254 = vpop.permute.xlu0 %5253
    %5255 = vrot.lane.b32.xlu0 %v5233, 62
    %v5256 = vpop.permute.xlu0 %5255
    %5257 = vrot.lane.b32.xlu0 %v5234, 62
    %v5258 = vpop.permute.xlu0 %5257
    %5259 = vrot.lane.b32.xlu0 %v5235, 62
    %v5260 = vpop.permute.xlu0 %5259
    %5261 = vrot.lane.b32.xlu0 %v5236, 62
    %v5262 = vpop.permute.xlu0 %5261
    %5263 = vrot.lane.b32.xlu0 %v5237, 62
    %v5264 = vpop.permute.xlu0 %5263
    %5265 = vrot.lane.b32.xlu0 %v5238, 62
    %v5266 = vpop.permute.xlu0 %5265
    %5267 = vrot.lane.b32.xlu0 %v5239, 62
    %v5268 = vpop.permute.xlu0 %5267
    %v5269 = vsel %vm3063, %v5252, %v5254
    %v5270 = vsel %vm3063, %v5254, %v5256
    %v5271 = vsel %vm3063, %v5256, %v5258
    %v5272 = vsel %vm3063, %v5258, %v5260
    %v5273 = vsel %vm3063, %v5260, %v5262
    %v5274 = vsel %vm3063, %v5262, %v5264
    %v5275 = vsel %vm3063, %v5264, %v5266
    %v5276 = vsel %vm3063, %v5266, %v5268
    %v5286 = vsel %vm3420, %v5241, 0
    %5288 = vmatpush.msra.mxu0 0.0
    %5289 = vmatpush.msra.mxu0 0.0
    %5290 = vmatpush.msra.mxu0 0.0
    %5291 = vmatpush.msra.mxu0 0.0
    %5292 = vmatpush.msra.mxu0 0.0
    %5293 = vmatpush.msra.mxu0 0.0
    %5294 = vmatpush.msra.mxu0 0.0
    %5295 = vmatpush.msra.mxu0 0.0
    %5296 = vmatpush.msra.mxu0 0.0
    %5297 = vmatpush.msra.mxu0 0.0
    %5298 = vmatpush.msra.mxu0 0.0
    %5299 = vmatpush.msra.mxu0 0.0
    %5300 = vmatpush.msra.mxu0 0.0
    %5301 = vmatpush.msra.mxu0 0.0
    %5302 = vmatpush.msra.mxu0 0.0
    %5303 = vmatpush.msra.mxu0 %v5269
    %5304 = vmatmul.f32.gmra.mxu0 %v5286
    %v5305 = vpop.f32.mrf.mxu0
    %v5306 = vadd.f32 0.0, %v5305
    %5307 = vdwg.mxu0
    %5308 = vmatpush.msra.mxu0 0.0
    %5309 = vmatpush.msra.mxu0 0.0
    %5310 = vmatpush.msra.mxu0 0.0
    %5311 = vmatpush.msra.mxu0 0.0
    %5312 = vmatpush.msra.mxu0 0.0
    %5313 = vmatpush.msra.mxu0 0.0
    %5314 = vmatpush.msra.mxu0 0.0
    %5315 = vmatpush.msra.mxu0 0.0
    %5316 = vmatpush.msra.mxu0 0.0
    %5317 = vmatpush.msra.mxu0 0.0
    %5318 = vmatpush.msra.mxu0 0.0
    %5319 = vmatpush.msra.mxu0 0.0
    %5320 = vmatpush.msra.mxu0 0.0
    %5321 = vmatpush.msra.mxu0 0.0
    %5322 = vmatpush.msra.mxu0 0.0
    %5323 = vmatpush.msra.mxu0 %v5270
    %5324 = vmatmul.f32.gmra.mxu0 %v5286
    %v5325 = vpop.f32.mrf.mxu0
    %v5326 = vadd.f32 0.0, %v5325
    %5327 = vdwg.mxu0
    %5328 = vmatpush.msra.mxu0 0.0
    %5329 = vmatpush.msra.mxu0 0.0
    %5330 = vmatpush.msra.mxu0 0.0
    %5331 = vmatpush.msra.mxu0 0.0
    %5332 = vmatpush.msra.mxu0 0.0
    %5333 = vmatpush.msra.mxu0 0.0
    %5334 = vmatpush.msra.mxu0 0.0
    %5335 = vmatpush.msra.mxu0 0.0
    %5336 = vmatpush.msra.mxu0 0.0
    %5337 = vmatpush.msra.mxu0 0.0
    %5338 = vmatpush.msra.mxu0 0.0
    %5339 = vmatpush.msra.mxu0 0.0
    %5340 = vmatpush.msra.mxu0 0.0
    %5341 = vmatpush.msra.mxu0 0.0
    %5342 = vmatpush.msra.mxu0 0.0
    %5343 = vmatpush.msra.mxu0 %v5271
    %5344 = vmatmul.f32.gmra.mxu0 %v5286
    %v5345 = vpop.f32.mrf.mxu0
    %v5346 = vadd.f32 0.0, %v5345
    %5347 = vdwg.mxu0
    %5348 = vmatpush.msra.mxu0 0.0
    %5349 = vmatpush.msra.mxu0 0.0
    %5350 = vmatpush.msra.mxu0 0.0
    %5351 = vmatpush.msra.mxu0 0.0
    %5352 = vmatpush.msra.mxu0 0.0
    %5353 = vmatpush.msra.mxu0 0.0
    %5354 = vmatpush.msra.mxu0 0.0
    %5355 = vmatpush.msra.mxu0 0.0
    %5356 = vmatpush.msra.mxu0 0.0
    %5357 = vmatpush.msra.mxu0 0.0
    %5358 = vmatpush.msra.mxu0 0.0
    %5359 = vmatpush.msra.mxu0 0.0
    %5360 = vmatpush.msra.mxu0 0.0
    %5361 = vmatpush.msra.mxu0 0.0
    %5362 = vmatpush.msra.mxu0 0.0
    %5363 = vmatpush.msra.mxu0 %v5272
    %5364 = vmatmul.f32.gmra.mxu0 %v5286
    %v5365 = vpop.f32.mrf.mxu0
    %v5366 = vadd.f32 0.0, %v5365
    %5367 = vdwg.mxu0
    %5368 = vmatpush.msra.mxu0 0.0
    %5369 = vmatpush.msra.mxu0 0.0
    %5370 = vmatpush.msra.mxu0 0.0
    %5371 = vmatpush.msra.mxu0 0.0
    %5372 = vmatpush.msra.mxu0 0.0
    %5373 = vmatpush.msra.mxu0 0.0
    %5374 = vmatpush.msra.mxu0 0.0
    %5375 = vmatpush.msra.mxu0 0.0
    %5376 = vmatpush.msra.mxu0 0.0
    %5377 = vmatpush.msra.mxu0 0.0
    %5378 = vmatpush.msra.mxu0 0.0
    %5379 = vmatpush.msra.mxu0 0.0
    %5380 = vmatpush.msra.mxu0 0.0
    %5381 = vmatpush.msra.mxu0 0.0
    %5382 = vmatpush.msra.mxu0 0.0
    %5383 = vmatpush.msra.mxu0 %v5273
    %5384 = vmatmul.f32.gmra.mxu0 %v5286
    %v5385 = vpop.f32.mrf.mxu0
    %v5386 = vadd.f32 0.0, %v5385
    %5387 = vdwg.mxu0
    %5388 = vmatpush.msra.mxu0 0.0
    %5389 = vmatpush.msra.mxu0 0.0
    %5390 = vmatpush.msra.mxu0 0.0
    %5391 = vmatpush.msra.mxu0 0.0
    %5392 = vmatpush.msra.mxu0 0.0
    %5393 = vmatpush.msra.mxu0 0.0
    %5394 = vmatpush.msra.mxu0 0.0
    %5395 = vmatpush.msra.mxu0 0.0
    %5396 = vmatpush.msra.mxu0 0.0
    %5397 = vmatpush.msra.mxu0 0.0
    %5398 = vmatpush.msra.mxu0 0.0
    %5399 = vmatpush.msra.mxu0 0.0
    %5400 = vmatpush.msra.mxu0 0.0
    %5401 = vmatpush.msra.mxu0 0.0
    %5402 = vmatpush.msra.mxu0 0.0
    %5403 = vmatpush.msra.mxu0 %v5274
    %5404 = vmatmul.f32.gmra.mxu0 %v5286
    %v5405 = vpop.f32.mrf.mxu0
    %v5406 = vadd.f32 0.0, %v5405
    %5407 = vdwg.mxu0
    %5408 = vmatpush.msra.mxu0 0.0
    %5409 = vmatpush.msra.mxu0 0.0
    %5410 = vmatpush.msra.mxu0 0.0
    %5411 = vmatpush.msra.mxu0 0.0
    %5412 = vmatpush.msra.mxu0 0.0
    %5413 = vmatpush.msra.mxu0 0.0
    %5414 = vmatpush.msra.mxu0 0.0
    %5415 = vmatpush.msra.mxu0 0.0
    %5416 = vmatpush.msra.mxu0 0.0
    %5417 = vmatpush.msra.mxu0 0.0
    %5418 = vmatpush.msra.mxu0 0.0
    %5419 = vmatpush.msra.mxu0 0.0
    %5420 = vmatpush.msra.mxu0 0.0
    %5421 = vmatpush.msra.mxu0 0.0
    %5422 = vmatpush.msra.mxu0 0.0
    %5423 = vmatpush.msra.mxu0 %v5275
    %5424 = vmatmul.f32.gmra.mxu0 %v5286
    %v5425 = vpop.f32.mrf.mxu0
    %v5426 = vadd.f32 0.0, %v5425
    %5427 = vdwg.mxu0
    %5428 = vmatpush.msra.mxu0 0.0
    %5429 = vmatpush.msra.mxu0 0.0
    %5430 = vmatpush.msra.mxu0 0.0
    %5431 = vmatpush.msra.mxu0 0.0
    %5432 = vmatpush.msra.mxu0 0.0
    %5433 = vmatpush.msra.mxu0 0.0
    %5434 = vmatpush.msra.mxu0 0.0
    %5435 = vmatpush.msra.mxu0 0.0
    %5436 = vmatpush.msra.mxu0 0.0
    %5437 = vmatpush.msra.mxu0 0.0
    %5438 = vmatpush.msra.mxu0 0.0
    %5439 = vmatpush.msra.mxu0 0.0
    %5440 = vmatpush.msra.mxu0 0.0
    %5441 = vmatpush.msra.mxu0 0.0
    %5442 = vmatpush.msra.mxu0 0.0
    %5443 = vmatpush.msra.mxu0 %v5276
    %5444 = vmatmul.f32.gmra.mxu0 %v5286
    %v5445 = vpop.f32.mrf.mxu0
    %v5446 = vadd.f32 0.0, %v5445
    %5447 = vdwg.mxu0
    %v5448 = vadd.f32 %v5191, %v5306
    %v5449 = vadd.f32 %v5192, %v5326
    %v5450 = vadd.f32 %v5193, %v5346
    %v5451 = vadd.f32 %v5194, %v5366
    %v5452 = vadd.f32 %v5195, %v5386
    %v5453 = vadd.f32 %v5196, %v5406
    %v5454 = vadd.f32 %v5197, %v5426
    %v5455 = vadd.f32 %v5198, %v5446
    %5457 = vset.pattern.permute.xlu0 0
    %5458 = vperm.xlu0 %5457, %v3338
    %v5459 = vpop.permute.xlu0 %5458
    %v5461 = vadd.f32 %v5448, %v5459
    %v5462 = vadd.f32 %v5449, %v5459
    %v5463 = vadd.f32 %v5450, %v5459
    %v5464 = vadd.f32 %v5451, %v5459
    %v5465 = vadd.f32 %v5452, %v5459
    %v5466 = vadd.f32 %v5453, %v5459
    %v5467 = vadd.f32 %v5454, %v5459
    %v5468 = vadd.f32 %v5455, %v5459
    %v5469 = vmax.f32 %v5461, 0.0
    %v5470 = vmax.f32 %v5462, 0.0
    %v5471 = vmax.f32 %v5463, 0.0
    %v5472 = vmax.f32 %v5464, 0.0
    %v5473 = vmax.f32 %v5465, 0.0
    %v5474 = vmax.f32 %v5466, 0.0
    %v5475 = vmax.f32 %v5467, 0.0
    %v5476 = vmax.f32 %v5468, 0.0
    %5477 = vst [vmem:[#allocation8] sm:$0xff] %v5469
    %5478 = vst [vmem:[#allocation8 + $0x8] sm:$0xff] %v5470
    %5479 = vst [vmem:[#allocation8 + $0x10] sm:$0xff] %v5471
    %5480 = vst [vmem:[#allocation8 + $0x18] sm:$0xff] %v5472
    %5481 = vst [vmem:[#allocation8 + $0x20] sm:$0xff] %v5473
    %5482 = vst [vmem:[#allocation8 + $0x28] sm:$0xff] %v5474
    %5483 = vst [vmem:[#allocation8 + $0x30] sm:$0xff] %v5475
    %5484 = vst [vmem:[#allocation8 + $0x38] sm:$0xff] %v5476
    // Predicated region
    $region38: #{tpu_custom_call.1} parent=1 // pred_check
      _
    $region39: #{tpu_custom_call.1} parent=1 // pred_check_branch
      %5486 = sbr.rel (0) target = $region41
    $region40: #{tpu_custom_call.1} parent=1 // pred_region
      %5488 = vsyncadd [#allocation5], 0
      %s5490 = sshll.u32 [#allocation8], 4
      %s5491 = int_to_ptr.vmem [resolvable:$true] %s5490
      %s5492 = sshll.u32 %s7, 4
      %s5493 = int_to_ptr.hbm [resolvable:$true] %s5492
      %5495 = dma.vmem_to_hbm [thread:$0]  %s5491, 1024, %s5493, [#allocation5]
    $region41: #{tpu_custom_call.1} parent=1 // pred_fallthru
      _
    // Predicated region
    $region42: #{tpu_custom_call.1} parent=1 // pred_check
      _
    $region43: #{tpu_custom_call.1} parent=1 // pred_check_branch
      %5497 = sbr.rel (0) target = $region45
    $region44: #{tpu_custom_call.1} parent=1 // pred_region
      %5499 = dma.done [#allocation5], 1024
    $region45: #{tpu_custom_call.1} parent=1 // pred_fallthru
      _
    %5500 = vsyncpa [#allocation4], 1
    %5501 = vsyncpa [#allocation7], 1
    %5502 = vsyncpa [#allocation5], 1

</llo_original>
